<compile_context>
chip_gen: v6e
topology: v6e:2x2x1
jax: 0.10.0
libtpu: 0.0.40
codegen_flags: <defaults>
</compile_context>

<pallas_src>
import functools

import numpy as np
import jax
import jax.numpy as jnp
from jax.experimental import pallas as pl
from jax.experimental.pallas import tpu as pltpu


NEG_SLOPE = 0.01   # PyTorch F.leaky_relu default negative_slope
BN_EPS = 1e-5      # PyTorch BatchNorm1d default eps


# ----------------------------- Pallas kernel ---------------------------------
def action_classifier_kernel(xs_ref, xa_ref, w1s_ref, w1a_ref,
                             w2_ref, w3_ref, w4_ref, sst_ref, out_ref):
    """One batch-row tile of the full ActionClassifier forward.

    xs_ref : (TB, Ds)   x_state tile (caller dtype, cast in-kernel)
    xa_ref : (TB, Da)   x_action tile
    w1s/w1a: (Ds,H1)/(Da,H1) fc1_1 weight split by input source (VMEM-resident)
    w2/w3  : (H1,H2)/(H2,H3) fc1_2 / fc1_3 weights (resident)
    w4     : (H3, NOUT_pad)  fc1_out weight zero-padded to lane width (resident)
    sst_ref: (8, LW) f32 slab: rows [s1,t1,s2,t2,s3,t3,b4,unused]
             scale = gamma*rsqrt(var+eps), shift = (bias-mean)*scale + beta
    out_ref: (TB, NOUT_pad)  logits tile (lane-dense)
    """
    cdt = w1s_ref.dtype            # matmul compute dtype (bf16 or f32)
    H1 = w2_ref.shape[0]
    H2 = w3_ref.shape[0]
    H3 = w4_ref.shape[0]
    npad = out_ref.shape[1]
    sst = sst_ref[...]             # (8, LW) f32

    def leaky(v):
        return jnp.where(v > 0, v, NEG_SLOPE * v)

    # per-tile cast to the MXU dtype (free VPU work; no extra HBM traffic)
    xs = xs_ref[...].astype(cdt)
    xa = xa_ref[...].astype(cdt)

    # ---- fc1_1 on cat(x_state, x_action): two dots share one f32 accumulator
    h = jnp.dot(xs, w1s_ref[...], preferred_element_type=jnp.float32)
    h = h + jnp.dot(xa, w1a_ref[...], preferred_element_type=jnp.float32)
    h = leaky(h * sst[0:1, :H1] + sst[1:2, :H1])          # BN128 + leaky_relu

    # ---- fc1_2 ----
    h = jnp.dot(h.astype(cdt), w2_ref[...], preferred_element_type=jnp.float32)
    h = leaky(h * sst[2:3, :H2] + sst[3:4, :H2])          # BN64 + leaky_relu

    # ---- fc1_3 ----
    h = jnp.dot(h.astype(cdt), w3_ref[...], preferred_element_type=jnp.float32)
    h = leaky(h * sst[4:5, :H3] + sst[5:6, :H3])          # BN32 + leaky_relu

    # ---- fc1_out (no BN / activation) ----
    out = jnp.dot(h.astype(cdt), w4_ref[...], preferred_element_type=jnp.float32)
    out_ref[...] = (out + sst[6:7, :npad]).astype(out_ref.dtype)


# -------------------- one-time parameter preparation --------------------------
def prepare_params(params, d_state, *, matmul_dtype=jnp.bfloat16):
    """Fold inference BN, transpose/split/pad weights. Run ONCE, outside jit."""
    (w1, b1, w2, b2, w3, b3, w4, b4, bn1, bn2, bn3) = params
    H1, din = w1.shape
    H2, H3, nout = w2.shape[0], w3.shape[0], w4.shape[0]
    d_action = din - d_state
    assert d_action > 0

    # PyTorch (out,in) -> (in,out); split fc1_1 by input source; pad fc1_out.
    w1_t = jnp.transpose(w1).astype(matmul_dtype)            # (Ds+Da, H1)
    w1s, w1a = w1_t[:d_state], w1_t[d_state:]
    w2_t = jnp.transpose(w2).astype(matmul_dtype)             # (H1, H2)
    w3_t = jnp.transpose(w3).astype(matmul_dtype)             # (H2, H3)
    nout_pad = 128 * pl.cdiv(nout, 128)
    w4_p = jnp.zeros((H3, nout_pad), matmul_dtype)
    w4_p = w4_p.at[:, :nout].set(jnp.transpose(w4).astype(matmul_dtype))

    lane_w = 128 * pl.cdiv(max(H1, H2, H3, nout_pad), 128)

    def scale_shift(bias, bn, width):
        if bn is not None:
            gamma, beta, mean, var = bn
            s = gamma * jax.lax.rsqrt(var + BN_EPS)
            t = (bias - mean) * s + beta
        else:
            s = jnp.ones((width,), jnp.float32)
            t = bias
        return s.astype(jnp.float32), t.astype(jnp.float32)

    def pack_slab(use_bn):
        s1, t1 = scale_shift(b1, bn1 if use_bn else None, H1)
        s2, t2 = scale_shift(b2, bn2 if use_bn else None, H2)
        s3, t3 = scale_shift(b3, bn3 if use_bn else None, H3)
        slab = jnp.zeros((8, lane_w), jnp.float32)
        slab = slab.at[0, :H1].set(s1).at[1, :H1].set(t1)
        slab = slab.at[2, :H2].set(s2).at[3, :H2].set(t2)
        slab = slab.at[4, :H3].set(s3).at[5, :H3].set(t3)
        slab = slab.at[6, :nout].set(b4.astype(jnp.float32))
        return slab

    return {
        "w1s": w1s, "w1a": w1a, "w2": w2_t, "w3": w3_t, "w4": w4_p,
        "sst_bn": pack_slab(True),       # BN folded (eval stats)
        "sst_plain": pack_slab(False),   # bias only (module's batch==1 path)
    }


# ------------------------------ JAX wrapper ------------------------------------
def _resident_spec(shape, single_buffer):
    """VMEM-resident (constant index_map) block; single-buffered if supported."""
    idx = lambda i: (0, 0)
    if single_buffer and hasattr(pl, "Buffered"):
        try:
            return pl.BlockSpec(shape, idx, pipeline_mode=pl.Buffered(1))
        except TypeError:
            pass
    return pl.BlockSpec(shape, idx)


def action_classifier_forward(x_state, x_action, prep, *, num_outputs,
                              apply_bn=True, block_rows=512,
                              single_buffer_weights=True):
    """x_state:(B,Ds) f32, x_action:(B,Da) f32, prep: prepare_params() output."""
    B, Ds = x_state.shape
    _, Da = x_action.shape
    w1s, w1a = prep["w1s"], prep["w1a"]
    w2, w3, w4 = prep["w2"], prep["w3"], prep["w4"]
    assert w1s.shape[0] == Ds and w1a.shape[0] == Da
    H1, H2, H3 = w1s.shape[1], w2.shape[1], w3.shape[1]
    nout_pad = w4.shape[1]
    lane_w = prep["sst_bn"].shape[1]

    # Module semantics: BN only when batch > 1 (static under jit).
    sst = prep["sst_bn"] if (apply_bn and B > 1) else prep["sst_plain"]

    # ---- batch tile: >=2 grid steps when possible (v7x megacore), aligned for
    #      clean MXU/DMA layout (16 rows when the matmul dtype is bf16).
    mm_dtype = w1s.dtype
    align = 16 if mm_dtype == jnp.bfloat16 else 8
    block_rows = align * max(1, block_rows // align)
    tb = min(block_rows, align * pl.cdiv(pl.cdiv(B, 2), align))
    tb = max(align, tb)
    grid = (pl.cdiv(B, tb),)          # ragged last block: no wrapper-side pad

    # ---- advisory cost estimate for XLA's scheduler
    flops = 2 * B * ((Ds + Da) * H1 + H1 * H2 + H2 * H3 + H3 * nout_pad)
    w_bytes = sum(int(a.size) * a.dtype.itemsize
                  for a in (w1s, w1a, w2, w3, w4, sst))
    bytes_accessed = (B * (Ds + Da) * x_state.dtype.itemsize
                      + w_bytes + B * nout_pad * 4)
    cost = pl.CostEstimate(flops=flops, transcendentals=0,
                           bytes_accessed=bytes_accessed)

    row = lambda shape: pl.BlockSpec(shape, lambda i: (i, 0))       # batch-tiled
    res = lambda shape: _resident_spec(shape, single_buffer_weights)

    out = pl.pallas_call(
        action_classifier_kernel,
        out_shape=jax.ShapeDtypeStruct((B, nout_pad), jnp.float32),
        grid=grid,
        in_specs=[row((tb, Ds)), row((tb, Da)),
                  res((Ds, H1)), res((Da, H1)),
                  res((H1, H2)), res((H2, H3)), res((H3, nout_pad)),
                  res((8, lane_w))],
        out_specs=row((tb, nout_pad)),
        compiler_params=pltpu.CompilerParams(
            dimension_semantics=("parallel",),
            vmem_limit_bytes=48 * 1024 * 1024),
        cost_estimate=cost,
    )(x_state, x_action, w1s, w1a, w2, w3, w4, sst)

    return out[:, :num_outputs]


# --------------------------- pure-JAX reference --------------------------------
def action_classifier_ref(x_state, x_action, params, *, apply_bn=True,
                          matmul_dtype=jnp.float32):
    (w1, b1, w2, b2, w3, b3, w4, b4, bn1, bn2, bn3) = params
    B = x_state.shape[0]
    prec = jax.lax.Precision.HIGHEST

    def dot(a, w):
        return jnp.dot(a.astype(matmul_dtype),
                       jnp.transpose(w).astype(matmul_dtype),
                       preferred_element_type=jnp.float32, precision=prec)

    def block(v, w, b, bn):
        y = dot(v, w) + b
        if apply_bn and B > 1:
            gamma, beta, mean, var = bn
            y = (y - mean) / jnp.sqrt(var + BN_EPS) * gamma + beta
        return jnp.where(y > 0, y, NEG_SLOPE * y)

    x = jnp.concatenate([x_state, x_action], axis=1)
    h = block(x, w1, b1, bn1)
    h = block(h, w2, b2, bn2)
    h = block(h, w3, b3, bn3)
    return dot(h, w4) + b4


# ------------------------------------ main --------------------------------------
if __name__ == "__main__":
    D_STATE, D_ACTION = 2808, 6          # cat -> 2814 = fc1_1 in_features
    H1, H2, H3, NOUT = 128, 64, 32, 6    # len(action_dict) == 6
    B = 16

    key = jax.random.PRNGKey(0)
    keys = jax.random.split(key, 17)

    x_state = jax.random.normal(keys[0], (B, D_STATE), jnp.float32)
    x_action = jax.random.normal(keys[1], (B, D_ACTION), jnp.float32)
    # larger, non-tile-divisible batch to exercise the ragged multi-step grid
    xs_big = jax.random.normal(keys[13], (300, D_STATE), jnp.float32)
    xa_big = jax.random.normal(keys[14], (300, D_ACTION), jnp.float32)

    def kaiming(k, out_f, in_f):          # kaiming_normal_ (fan_in, gain sqrt(2))
        return jax.random.normal(k, (out_f, in_f), jnp.float32) * np.sqrt(2.0 / in_f)

    def lin_bias(k, out_f, in_f):         # PyTorch Linear default bias init
        lim = 1.0 / np.sqrt(in_f)
        return jax.random.uniform(k, (out_f,), jnp.float32, -lim, lim)

    DIN = D_STATE + D_ACTION
    w1 = kaiming(keys[2], H1, DIN);  b1 = lin_bias(keys[3], H1, DIN)
    w2 = kaiming(keys[4], H2, H1);   b2 = lin_bias(keys[5], H2, H1)
    w3 = kaiming(keys[6], H3, H2);   b3 = lin_bias(keys[7], H3, H2)
    w4 = kaiming(keys[8], NOUT, H3); b4 = lin_bias(keys[9], NOUT, H3)

    def bn_params(k, f):                  # non-trivial eval-mode BN parameters
        kg, kb, km, kv = jax.random.split(k, 4)
        gamma = jax.random.uniform(kg, (f,), jnp.float32, 0.5, 1.5)
        beta = 0.1 * jax.random.normal(kb, (f,), jnp.float32)
        mean = 0.5 * jax.random.normal(km, (f,), jnp.float32)
        var = jax.random.uniform(kv, (f,), jnp.float32, 0.5, 1.5)
        return gamma, beta, mean, var

    bn1 = bn_params(keys[10], H1)
    bn2 = bn_params(keys[11], H2)
    bn3 = bn_params(keys[12], H3)

    params = (w1, b1, w2, b2, w3, b3, w4, b4, bn1, bn2, bn3)

    # One-time layout prep (hoisted out of the per-call forward).
    prep_bf16 = prepare_params(params, D_STATE, matmul_dtype=jnp.bfloat16)
    prep_f32 = prepare_params(params, D_STATE, matmul_dtype=jnp.float32)
    jax.block_until_ready((prep_bf16, prep_f32))

    def run_all(single_buffer):
        fwd = jax.jit(functools.partial(action_classifier_forward,
                                        num_outputs=NOUT,
                                        single_buffer_weights=single_buffer))

        # ---- f32 matmul path vs f32 reference (tight) ----
        out_f32 = fwd(x_state, x_action, prep_f32)
        jax.block_until_ready(out_f32)
        ref_f32 = action_classifier_ref(x_state, x_action, params)
        np.testing.assert_allclose(np.asarray(out_f32), np.asarray(ref_f32),
                                   rtol=2e-3, atol=2e-3)

        # ---- default bf16 matmul path ----
        out_bf16 = fwd(x_state, x_action, prep_bf16)
        jax.block_until_ready(out_bf16)
        ref_bf16 = action_classifier_ref(x_state, x_action, params,
                                         matmul_dtype=jnp.bfloat16)
        np.testing.assert_allclose(np.asarray(out_bf16), np.asarray(ref_bf16),
                                   rtol=5e-3, atol=5e-3)
        # ... and against the true f32 model within the bf16 quantization budget
        np.testing.assert_allclose(np.asarray(out_bf16), np.asarray(ref_f32),
                                   rtol=1e-1, atol=1e-1)

        # ---- batch == 1: module skips BatchNorm ----
        out_one = fwd(x_state[:1], x_action[:1], prep_f32)
        jax.block_until_ready(out_one)
        ref_one = action_classifier_ref(x_state[:1], x_action[:1], params)
        np.testing.assert_allclose(np.asarray(out_one), np.asarray(ref_one),
                                   rtol=2e-3, atol=2e-3)

        # ---- B=300: >=2 grid steps + ragged (masked) last block ----
        out_big = fwd(xs_big, xa_big, prep_bf16)
        jax.block_until_ready(out_big)
        ref_big = action_classifier_ref(xs_big, xa_big, params,
                                        matmul_dtype=jnp.bfloat16)
        np.testing.assert_allclose(np.asarray(out_big), np.asarray(ref_big),
                                   rtol=5e-3, atol=5e-3)

    try:
        run_all(single_buffer=True)      # pl.Buffered(1) resident weights
    except Exception:
        run_all(single_buffer=False)     # fallback: default double-buffering

    print("KERNEL_OK")
</pallas_src>

<mosaic_0001>
module attributes {stable_mosaic.version = 11 : i64} {
  func.func @action_classifier_kernel(%arg0: i32, %arg1: memref<8x2808xf32, #tpu.memory_space<vmem>>, %arg2: memref<8x6xf32, #tpu.memory_space<vmem>>, %arg3: memref<2808x128xf32, #tpu.memory_space<vmem>>, %arg4: memref<6x128xf32, #tpu.memory_space<vmem>>, %arg5: memref<128x64xf32, #tpu.memory_space<vmem>>, %arg6: memref<64x32xf32, #tpu.memory_space<vmem>>, %arg7: memref<32x128xf32, #tpu.memory_space<vmem>>, %arg8: memref<8x128xf32, #tpu.memory_space<vmem>>, %arg9: memref<8x128xf32, #tpu.memory_space<vmem>>) attributes {dimension_semantics = [#tpu.dimension_semantics<parallel>], iteration_bounds = array<i64: 2>, scalar_prefetch = 0 : i64, scratch_operands = 0 : i64, tpu.core_type = #tpu.core_type<tc>, window_params = [{transform_indices = @transform_0, window_bounds = array<i64: 8, 2808>}, {transform_indices = @transform_1, window_bounds = array<i64: 8, 6>}, {pipeline_mode = #tpu.pipeline_mode<synchronous>, transform_indices = @transform_2, window_bounds = array<i64: 2808, 128>}, {pipeline_mode = #tpu.pipeline_mode<synchronous>, transform_indices = @transform_3, window_bounds = array<i64: 6, 128>}, {pipeline_mode = #tpu.pipeline_mode<synchronous>, transform_indices = @transform_4, window_bounds = array<i64: 128, 64>}, {pipeline_mode = #tpu.pipeline_mode<synchronous>, transform_indices = @transform_5, window_bounds = array<i64: 64, 32>}, {pipeline_mode = #tpu.pipeline_mode<synchronous>, transform_indices = @transform_6, window_bounds = array<i64: 32, 128>}, {pipeline_mode = #tpu.pipeline_mode<synchronous>, transform_indices = @transform_7, window_bounds = array<i64: 8, 128>}, {transform_indices = @transform_8, window_bounds = array<i64: 8, 128>}]} {
    %c0 = arith.constant 0 : index
    %c0_0 = arith.constant 0 : index
    %0 = vector.load %arg8[%c0, %c0_0] : memref<8x128xf32, #tpu.memory_space<vmem>>, vector<8x128xf32>
    %c0_1 = arith.constant 0 : index
    %c0_2 = arith.constant 0 : index
    %1 = vector.load %arg1[%c0_1, %c0_2] : memref<8x2808xf32, #tpu.memory_space<vmem>>, vector<8x2808xf32>
    %c0_3 = arith.constant 0 : index
    %c0_4 = arith.constant 0 : index
    %2 = vector.load %arg2[%c0_3, %c0_4] : memref<8x6xf32, #tpu.memory_space<vmem>>, vector<8x6xf32>
    %c0_5 = arith.constant 0 : index
    %c0_6 = arith.constant 0 : index
    %3 = vector.load %arg3[%c0_5, %c0_6] : memref<2808x128xf32, #tpu.memory_space<vmem>>, vector<2808x128xf32>
    %cst = arith.constant dense<0.000000e+00> : vector<8x128xf32>
    %4 = tpu.matmul %1, %3, %cst {dimension_numbers = #tpu.dot_dimension_numbers<[1], [0], [0], [1], [0, 0, 1, 1], [], []>} : vector<8x2808xf32>, vector<2808x128xf32>, vector<8x128xf32> -> vector<8x128xf32>
    %c0_7 = arith.constant 0 : index
    %c0_8 = arith.constant 0 : index
    %5 = vector.load %arg4[%c0_7, %c0_8] : memref<6x128xf32, #tpu.memory_space<vmem>>, vector<6x128xf32>
    %cst_9 = arith.constant dense<0.000000e+00> : vector<8x128xf32>
    %6 = tpu.matmul %2, %5, %cst_9 {dimension_numbers = #tpu.dot_dimension_numbers<[1], [0], [0], [1], [0, 0, 1, 1], [], []>} : vector<8x6xf32>, vector<6x128xf32>, vector<8x128xf32> -> vector<8x128xf32>
    %7 = arith.addf %4, %6 : vector<8x128xf32>
    %8 = vector.extract_strided_slice %0 {offsets = [0, 0], sizes = [1, 128], strides = [1, 1]} : vector<8x128xf32> to vector<1x128xf32>
    %9 = vector.broadcast %8 : vector<1x128xf32> to vector<8x128xf32>
    %10 = arith.mulf %7, %9 : vector<8x128xf32>
    %11 = vector.extract_strided_slice %0 {offsets = [1, 0], sizes = [1, 128], strides = [1, 1]} : vector<8x128xf32> to vector<1x128xf32>
    %12 = vector.broadcast %11 : vector<1x128xf32> to vector<8x128xf32>
    %13 = arith.addf %10, %12 : vector<8x128xf32>
    %cst_10 = arith.constant 0.000000e+00 : f32
    %14 = vector.broadcast %cst_10 : f32 to vector<8x128xf32>
    %15 = arith.cmpf ogt, %13, %14 : vector<8x128xf32>
    %cst_11 = arith.constant 0.00999999977 : f32
    %16 = vector.broadcast %cst_11 : f32 to vector<8x128xf32>
    %17 = arith.mulf %16, %13 : vector<8x128xf32>
    %18 = arith.select %15, %13, %17 : vector<8x128xi1>, vector<8x128xf32>
    %c0_12 = arith.constant 0 : index
    %c0_13 = arith.constant 0 : index
    %19 = vector.load %arg5[%c0_12, %c0_13] : memref<128x64xf32, #tpu.memory_space<vmem>>, vector<128x64xf32>
    %cst_14 = arith.constant dense<0.000000e+00> : vector<8x64xf32>
    %20 = tpu.matmul %18, %19, %cst_14 {dimension_numbers = #tpu.dot_dimension_numbers<[1], [0], [0], [1], [0, 0, 1, 1], [], []>} : vector<8x128xf32>, vector<128x64xf32>, vector<8x64xf32> -> vector<8x64xf32>
    %21 = vector.extract_strided_slice %0 {offsets = [2, 0], sizes = [1, 64], strides = [1, 1]} : vector<8x128xf32> to vector<1x64xf32>
    %22 = vector.broadcast %21 : vector<1x64xf32> to vector<8x64xf32>
    %23 = arith.mulf %20, %22 : vector<8x64xf32>
    %24 = vector.extract_strided_slice %0 {offsets = [3, 0], sizes = [1, 64], strides = [1, 1]} : vector<8x128xf32> to vector<1x64xf32>
    %25 = vector.broadcast %24 : vector<1x64xf32> to vector<8x64xf32>
    %26 = arith.addf %23, %25 : vector<8x64xf32>
    %cst_15 = arith.constant 0.000000e+00 : f32
    %27 = vector.broadcast %cst_15 : f32 to vector<8x64xf32>
    %28 = arith.cmpf ogt, %26, %27 : vector<8x64xf32>
    %cst_16 = arith.constant 0.00999999977 : f32
    %29 = vector.broadcast %cst_16 : f32 to vector<8x64xf32>
    %30 = arith.mulf %29, %26 : vector<8x64xf32>
    %31 = arith.select %28, %26, %30 : vector<8x64xi1>, vector<8x64xf32>
    %c0_17 = arith.constant 0 : index
    %c0_18 = arith.constant 0 : index
    %32 = vector.load %arg6[%c0_17, %c0_18] : memref<64x32xf32, #tpu.memory_space<vmem>>, vector<64x32xf32>
    %cst_19 = arith.constant dense<0.000000e+00> : vector<8x32xf32>
    %33 = tpu.matmul %31, %32, %cst_19 {dimension_numbers = #tpu.dot_dimension_numbers<[1], [0], [0], [1], [0, 0, 1, 1], [], []>} : vector<8x64xf32>, vector<64x32xf32>, vector<8x32xf32> -> vector<8x32xf32>
    %34 = vector.extract_strided_slice %0 {offsets = [4, 0], sizes = [1, 32], strides = [1, 1]} : vector<8x128xf32> to vector<1x32xf32>
    %35 = vector.broadcast %34 : vector<1x32xf32> to vector<8x32xf32>
    %36 = arith.mulf %33, %35 : vector<8x32xf32>
    %37 = vector.extract_strided_slice %0 {offsets = [5, 0], sizes = [1, 32], strides = [1, 1]} : vector<8x128xf32> to vector<1x32xf32>
    %38 = vector.broadcast %37 : vector<1x32xf32> to vector<8x32xf32>
    %39 = arith.addf %36, %38 : vector<8x32xf32>
    %cst_20 = arith.constant 0.000000e+00 : f32
    %40 = vector.broadcast %cst_20 : f32 to vector<8x32xf32>
    %41 = arith.cmpf ogt, %39, %40 : vector<8x32xf32>
    %cst_21 = arith.constant 0.00999999977 : f32
    %42 = vector.broadcast %cst_21 : f32 to vector<8x32xf32>
    %43 = arith.mulf %42, %39 : vector<8x32xf32>
    %44 = arith.select %41, %39, %43 : vector<8x32xi1>, vector<8x32xf32>
    %c0_22 = arith.constant 0 : index
    %c0_23 = arith.constant 0 : index
    %45 = vector.load %arg7[%c0_22, %c0_23] : memref<32x128xf32, #tpu.memory_space<vmem>>, vector<32x128xf32>
    %cst_24 = arith.constant dense<0.000000e+00> : vector<8x128xf32>
    %46 = tpu.matmul %44, %45, %cst_24 {dimension_numbers = #tpu.dot_dimension_numbers<[1], [0], [0], [1], [0, 0, 1, 1], [], []>} : vector<8x32xf32>, vector<32x128xf32>, vector<8x128xf32> -> vector<8x128xf32>
    %47 = vector.extract_strided_slice %0 {offsets = [6, 0], sizes = [1, 128], strides = [1, 1]} : vector<8x128xf32> to vector<1x128xf32>
    %48 = vector.broadcast %47 : vector<1x128xf32> to vector<8x128xf32>
    %49 = arith.addf %46, %48 : vector<8x128xf32>
    %c0_25 = arith.constant 0 : index
    %c0_26 = arith.constant 0 : index
    %50 = vector.load %arg9[%c0_25, %c0_26] : memref<8x128xf32, #tpu.memory_space<vmem>>, vector<8x128xf32>
    tpu.vector_store %arg9[%c0_25, %c0_26], %49 {strides = array<i32>} : memref<8x128xf32, #tpu.memory_space<vmem>>, vector<8x128xf32>,
    return
  }
  func.func @transform_0(%arg0: i32) -> (i32, i32) {
    %c0_i32 = arith.constant 0 : i32
    %c0_i32_0 = arith.constant 0 : i32
    return %arg0, %c0_i32 : i32, i32
  }
  func.func @transform_1(%arg0: i32) -> (i32, i32) {
    %c0_i32 = arith.constant 0 : i32
    %c0_i32_0 = arith.constant 0 : i32
    return %arg0, %c0_i32 : i32, i32
  }
  func.func @transform_2(%arg0: i32) -> (i32, i32) {
    %c0_i32 = arith.constant 0 : i32
    %c0_i32_0 = arith.constant 0 : i32
    %c0_i32_1 = arith.constant 0 : i32
    return %c0_i32, %c0_i32_0 : i32, i32
  }
  func.func @transform_3(%arg0: i32) -> (i32, i32) {
    %c0_i32 = arith.constant 0 : i32
    %c0_i32_0 = arith.constant 0 : i32
    %c0_i32_1 = arith.constant 0 : i32
    return %c0_i32, %c0_i32_0 : i32, i32
  }
  func.func @transform_4(%arg0: i32) -> (i32, i32) {
    %c0_i32 = arith.constant 0 : i32
    %c0_i32_0 = arith.constant 0 : i32
    %c0_i32_1 = arith.constant 0 : i32
    return %c0_i32, %c0_i32_0 : i32, i32
  }
  func.func @transform_5(%arg0: i32) -> (i32, i32) {
    %c0_i32 = arith.constant 0 : i32
    %c0_i32_0 = arith.constant 0 : i32
    %c0_i32_1 = arith.constant 0 : i32
    return %c0_i32, %c0_i32_0 : i32, i32
  }
  func.func @transform_6(%arg0: i32) -> (i32, i32) {
    %c0_i32 = arith.constant 0 : i32
    %c0_i32_0 = arith.constant 0 : i32
    %c0_i32_1 = arith.constant 0 : i32
    return %c0_i32, %c0_i32_0 : i32, i32
  }
  func.func @transform_7(%arg0: i32) -> (i32, i32) {
    %c0_i32 = arith.constant 0 : i32
    %c0_i32_0 = arith.constant 0 : i32
    %c0_i32_1 = arith.constant 0 : i32
    return %c0_i32, %c0_i32_0 : i32, i32
  }
  func.func @transform_8(%arg0: i32) -> (i32, i32) {
    %c0_i32 = arith.constant 0 : i32
    %c0_i32_0 = arith.constant 0 : i32
    return %arg0, %c0_i32 : i32, i32
  }
}

module attributes {stable_mosaic.version = 11 : i64} {
  func.func @action_classifier_kernel(%arg0: i32, %arg1: memref<8x2808xf32, #tpu.memory_space<vmem>>, %arg2: memref<8x6xf32, #tpu.memory_space<vmem>>, %arg3: memref<2808x128xf32, #tpu.memory_space<vmem>>, %arg4: memref<6x128xf32, #tpu.memory_space<vmem>>, %arg5: memref<128x64xf32, #tpu.memory_space<vmem>>, %arg6: memref<64x32xf32, #tpu.memory_space<vmem>>, %arg7: memref<32x128xf32, #tpu.memory_space<vmem>>, %arg8: memref<8x128xf32, #tpu.memory_space<vmem>>, %arg9: memref<8x128xf32, #tpu.memory_space<vmem>>) attributes {dimension_semantics = [#tpu.dimension_semantics<parallel>], iteration_bounds = array<i64: 2>, scalar_prefetch = 0 : i64, scratch_operands = 0 : i64, tpu.core_type = #tpu.core_type<tc>, window_params = [{transform_indices = @transform_0, window_bounds = array<i64: 8, 2808>}, {transform_indices = @transform_1, window_bounds = array<i64: 8, 6>}, {pipeline_mode = #tpu.pipeline_mode<synchronous>, transform_indices = @transform_2, window_bounds = array<i64: 2808, 128>}, {pipeline_mode = #tpu.pipeline_mode<synchronous>, transform_indices = @transform_3, window_bounds = array<i64: 6, 128>}, {pipeline_mode = #tpu.pipeline_mode<synchronous>, transform_indices = @transform_4, window_bounds = array<i64: 128, 64>}, {pipeline_mode = #tpu.pipeline_mode<synchronous>, transform_indices = @transform_5, window_bounds = array<i64: 64, 32>}, {pipeline_mode = #tpu.pipeline_mode<synchronous>, transform_indices = @transform_6, window_bounds = array<i64: 32, 128>}, {pipeline_mode = #tpu.pipeline_mode<synchronous>, transform_indices = @transform_7, window_bounds = array<i64: 8, 128>}, {transform_indices = @transform_8, window_bounds = array<i64: 8, 128>}]} {
    %c0 = arith.constant 0 : index
    %c0_0 = arith.constant 0 : index
    %0 = vector.load %arg8[%c0, %c0_0] : memref<8x128xf32, #tpu.memory_space<vmem>>, vector<8x128xf32>
    %c0_1 = arith.constant 0 : index
    %c0_2 = arith.constant 0 : index
    %1 = vector.load %arg1[%c0_1, %c0_2] : memref<8x2808xf32, #tpu.memory_space<vmem>>, vector<8x2808xf32>
    %c0_3 = arith.constant 0 : index
    %c0_4 = arith.constant 0 : index
    %2 = vector.load %arg2[%c0_3, %c0_4] : memref<8x6xf32, #tpu.memory_space<vmem>>, vector<8x6xf32>
    %c0_5 = arith.constant 0 : index
    %c0_6 = arith.constant 0 : index
    %3 = vector.load %arg3[%c0_5, %c0_6] : memref<2808x128xf32, #tpu.memory_space<vmem>>, vector<2808x128xf32>
    %cst = arith.constant dense<0.000000e+00> : vector<8x128xf32>
    %4 = tpu.matmul %1, %3, %cst {dimension_numbers = #tpu.dot_dimension_numbers<[1], [0], [0], [1], [0, 0, 1, 1], [], []>} : vector<8x2808xf32>, vector<2808x128xf32>, vector<8x128xf32> -> vector<8x128xf32>
    %c0_7 = arith.constant 0 : index
    %c0_8 = arith.constant 0 : index
    %5 = vector.load %arg4[%c0_7, %c0_8] : memref<6x128xf32, #tpu.memory_space<vmem>>, vector<6x128xf32>
    %cst_9 = arith.constant dense<0.000000e+00> : vector<8x128xf32>
    %6 = tpu.matmul %2, %5, %cst_9 {dimension_numbers = #tpu.dot_dimension_numbers<[1], [0], [0], [1], [0, 0, 1, 1], [], []>} : vector<8x6xf32>, vector<6x128xf32>, vector<8x128xf32> -> vector<8x128xf32>
    %7 = arith.addf %4, %6 : vector<8x128xf32>
    %8 = vector.extract_strided_slice %0 {offsets = [0, 0], sizes = [1, 128], strides = [1, 1]} : vector<8x128xf32> to vector<1x128xf32>
    %9 = vector.broadcast %8 : vector<1x128xf32> to vector<8x128xf32>
    %10 = arith.mulf %7, %9 : vector<8x128xf32>
    %11 = vector.extract_strided_slice %0 {offsets = [1, 0], sizes = [1, 128], strides = [1, 1]} : vector<8x128xf32> to vector<1x128xf32>
    %12 = vector.broadcast %11 : vector<1x128xf32> to vector<8x128xf32>
    %13 = arith.addf %10, %12 : vector<8x128xf32>
    %cst_10 = arith.constant 0.000000e+00 : f32
    %14 = vector.broadcast %cst_10 : f32 to vector<8x128xf32>
    %15 = arith.cmpf ogt, %13, %14 : vector<8x128xf32>
    %cst_11 = arith.constant 0.00999999977 : f32
    %16 = vector.broadcast %cst_11 : f32 to vector<8x128xf32>
    %17 = arith.mulf %16, %13 : vector<8x128xf32>
    %18 = arith.select %15, %13, %17 : vector<8x128xi1>, vector<8x128xf32>
    %c0_12 = arith.constant 0 : index
    %c0_13 = arith.constant 0 : index
    %19 = vector.load %arg5[%c0_12, %c0_13] : memref<128x64xf32, #tpu.memory_space<vmem>>, vector<128x64xf32>
    %cst_14 = arith.constant dense<0.000000e+00> : vector<8x64xf32>
    %20 = tpu.matmul %18, %19, %cst_14 {dimension_numbers = #tpu.dot_dimension_numbers<[1], [0], [0], [1], [0, 0, 1, 1], [], []>} : vector<8x128xf32>, vector<128x64xf32>, vector<8x64xf32> -> vector<8x64xf32>
    %21 = vector.extract_strided_slice %0 {offsets = [2, 0], sizes = [1, 64], strides = [1, 1]} : vector<8x128xf32> to vector<1x64xf32>
    %22 = vector.broadcast %21 : vector<1x64xf32> to vector<8x64xf32>
    %23 = arith.mulf %20, %22 : vector<8x64xf32>
    %24 = vector.extract_strided_slice %0 {offsets = [3, 0], sizes = [1, 64], strides = [1, 1]} : vector<8x128xf32> to vector<1x64xf32>
    %25 = vector.broadcast %24 : vector<1x64xf32> to vector<8x64xf32>
    %26 = arith.addf %23, %25 : vector<8x64xf32>
    %cst_15 = arith.constant 0.000000e+00 : f32
    %27 = vector.broadcast %cst_15 : f32 to vector<8x64xf32>
    %28 = arith.cmpf ogt, %26, %27 : vector<8x64xf32>
    %cst_16 = arith.constant 0.00999999977 : f32
    %29 = vector.broadcast %cst_16 : f32 to vector<8x64xf32>
    %30 = arith.mulf %29, %26 : vector<8x64xf32>
    %31 = arith.select %28, %26, %30 : vector<8x64xi1>, vector<8x64xf32>
    %c0_17 = arith.constant 0 : index
    %c0_18 = arith.constant 0 : index
    %32 = vector.load %arg6[%c0_17, %c0_18] : memref<64x32xf32, #tpu.memory_space<vmem>>, vector<64x32xf32>
    %cst_19 = arith.constant dense<0.000000e+00> : vector<8x32xf32>
    %33 = tpu.matmul %31, %32, %cst_19 {dimension_numbers = #tpu.dot_dimension_numbers<[1], [0], [0], [1], [0, 0, 1, 1], [], []>} : vector<8x64xf32>, vector<64x32xf32>, vector<8x32xf32> -> vector<8x32xf32>
    %34 = vector.extract_strided_slice %0 {offsets = [4, 0], sizes = [1, 32], strides = [1, 1]} : vector<8x128xf32> to vector<1x32xf32>
    %35 = vector.broadcast %34 : vector<1x32xf32> to vector<8x32xf32>
    %36 = arith.mulf %33, %35 : vector<8x32xf32>
    %37 = vector.extract_strided_slice %0 {offsets = [5, 0], sizes = [1, 32], strides = [1, 1]} : vector<8x128xf32> to vector<1x32xf32>
    %38 = vector.broadcast %37 : vector<1x32xf32> to vector<8x32xf32>
    %39 = arith.addf %36, %38 : vector<8x32xf32>
    %cst_20 = arith.constant 0.000000e+00 : f32
    %40 = vector.broadcast %cst_20 : f32 to vector<8x32xf32>
    %41 = arith.cmpf ogt, %39, %40 : vector<8x32xf32>
    %cst_21 = arith.constant 0.00999999977 : f32
    %42 = vector.broadcast %cst_21 : f32 to vector<8x32xf32>
    %43 = arith.mulf %42, %39 : vector<8x32xf32>
    %44 = arith.select %41, %39, %43 : vector<8x32xi1>, vector<8x32xf32>
    %c0_22 = arith.constant 0 : index
    %c0_23 = arith.constant 0 : index
    %45 = vector.load %arg7[%c0_22, %c0_23] : memref<32x128xf32, #tpu.memory_space<vmem>>, vector<32x128xf32>
    %cst_24 = arith.constant dense<0.000000e+00> : vector<8x128xf32>
    %46 = tpu.matmul %44, %45, %cst_24 {dimension_numbers = #tpu.dot_dimension_numbers<[1], [0], [0], [1], [0, 0, 1, 1], [], []>} : vector<8x32xf32>, vector<32x128xf32>, vector<8x128xf32> -> vector<8x128xf32>
    %47 = vector.extract_strided_slice %0 {offsets = [6, 0], sizes = [1, 128], strides = [1, 1]} : vector<8x128xf32> to vector<1x128xf32>
    %48 = vector.broadcast %47 : vector<1x128xf32> to vector<8x128xf32>
    %49 = arith.addf %46, %48 : vector<8x128xf32>
    %c0_25 = arith.constant 0 : index
    %c0_26 = arith.constant 0 : index
    %50 = vector.load %arg9[%c0_25, %c0_26] : memref<8x128xf32, #tpu.memory_space<vmem>>, vector<8x128xf32>
    tpu.vector_store %arg9[%c0_25, %c0_26], %49 {strides = array<i32>} : memref<8x128xf32, #tpu.memory_space<vmem>>, vector<8x128xf32>,
    return
  }
  func.func @transform_0(%arg0: i32) -> (i32, i32) {
    %c0_i32 = arith.constant 0 : i32
    %c0_i32_0 = arith.constant 0 : i32
    return %arg0, %c0_i32 : i32, i32
  }
  func.func @transform_1(%arg0: i32) -> (i32, i32) {
    %c0_i32 = arith.constant 0 : i32
    %c0_i32_0 = arith.constant 0 : i32
    return %arg0, %c0_i32 : i32, i32
  }
  func.func @transform_2(%arg0: i32) -> (i32, i32) {
    %c0_i32 = arith.constant 0 : i32
    %c0_i32_0 = arith.constant 0 : i32
    %c0_i32_1 = arith.constant 0 : i32
    return %c0_i32, %c0_i32_0 : i32, i32
  }
  func.func @transform_3(%arg0: i32) -> (i32, i32) {
    %c0_i32 = arith.constant 0 : i32
    %c0_i32_0 = arith.constant 0 : i32
    %c0_i32_1 = arith.constant 0 : i32
    return %c0_i32, %c0_i32_0 : i32, i32
  }
  func.func @transform_4(%arg0: i32) -> (i32, i32) {
    %c0_i32 = arith.constant 0 : i32
    %c0_i32_0 = arith.constant 0 : i32
    %c0_i32_1 = arith.constant 0 : i32
    return %c0_i32, %c0_i32_0 : i32, i32
  }
  func.func @transform_5(%arg0: i32) -> (i32, i32) {
    %c0_i32 = arith.constant 0 : i32
    %c0_i32_0 = arith.constant 0 : i32
    %c0_i32_1 = arith.constant 0 : i32
    return %c0_i32, %c0_i32_0 : i32, i32
  }
  func.func @transform_6(%arg0: i32) -> (i32, i32) {
    %c0_i32 = arith.constant 0 : i32
    %c0_i32_0 = arith.constant 0 : i32
    %c0_i32_1 = arith.constant 0 : i32
    return %c0_i32, %c0_i32_0 : i32, i32
  }
  func.func @transform_7(%arg0: i32) -> (i32, i32) {
    %c0_i32 = arith.constant 0 : i32
    %c0_i32_0 = arith.constant 0 : i32
    %c0_i32_1 = arith.constant 0 : i32
    return %c0_i32, %c0_i32_0 : i32, i32
  }
  func.func @transform_8(%arg0: i32) -> (i32, i32) {
    %c0_i32 = arith.constant 0 : i32
    %c0_i32_0 = arith.constant 0 : i32
    return %arg0, %c0_i32 : i32, i32
  }
}

</mosaic_0001>

<llo_original>
// kernel: action_classifier_forward.1
$region0: #{action_classifier_forward.1}
  #allocation0 [shape = 'u32[]', space=smem, size = 0x4, offset = 0x4, fixed_abs, tag = 'smem constant byte address 0x4 - core index']
  #allocation1 [shape = 'u32[144,128]{1,0:T(1,128)}', space=vmem, size = 0x12000, scoped, tag = 'internal scratch']
  %s0 = inlined_call_operand.hbm [shape: f32[16,2808], index: 0, kind: input, shape index: {}]
  %s1 = inlined_call_operand.vmem [shape: f32[16,6], index: 1, kind: input, shape index: {}]
  %s2 = inlined_call_operand.hbm [shape: f32[2808,128], index: 2, kind: input, shape index: {}]
  %s3 = inlined_call_operand.hbm [shape: f32[6,128], index: 3, kind: input, shape index: {}]
  %s4 = inlined_call_operand.vmem [shape: f32[128,64], index: 4, kind: input, shape index: {}]
  %s5 = inlined_call_operand.vmem [shape: f32[64,32], index: 5, kind: input, shape index: {}]
  %s6 = inlined_call_operand.hbm [shape: f32[32,128], index: 6, kind: input, shape index: {}]
  %s7 = inlined_call_operand.hbm [shape: f32[8,128], index: 7, kind: input, shape index: {}]
  %s8 = inlined_call_operand.vmem [shape: f32[16,128], index: 8, kind: output, shape index: {}]
  %s9 = sld [smem:[#allocation0]]
  $region85: #{action_classifier_forward.1} parent=0
    _
  %s11 = ssub.s32 1, %s9
  %s12 = scalar_select 0, %s11, %s9
  $region1: #{action_classifier_forward.1} parent=0
    #allocation2 [shape = 'u8[180224]{0}', space=vmem, size = 0x2c000, scoped, tag = 'input window, operand 0']
    #allocation3 [shape = 's32[2]{0}', space=sflag, size = 0x8, scoped, tag = 'scoped memory for action_classifier_forward.1']
    #allocation4 [shape = 'u8[1437696]{0}', space=vmem, size = 0x15f000, scoped, tag = 'input window, operand 2, single buffered']
    #allocation5 [shape = 's32[1]{0}', space=sflag, size = 0x4, scoped, tag = 'scoped memory for action_classifier_forward.1']
    #allocation6 [shape = 'u8[4096]{0}', space=vmem, size = 0x1000, scoped, tag = 'input window, operand 3, single buffered']
    #allocation7 [shape = 'u8[16384]{0}', space=vmem, size = 0x4000, scoped, tag = 'input window, operand 6, single buffered']
    #allocation8 [shape = 's32[1]{0}', space=sflag, size = 0x4, scoped, tag = 'scoped memory for action_classifier_forward.1']
    #allocation9 [shape = 'u8[4096]{0}', space=vmem, size = 0x1000, scoped, tag = 'input window, operand 7, single buffered']
    %13 = vsyncpa [#allocation3], 0
    %s14 = scalar_lea.sflag [#allocation3], 1
    %15 = vsyncpa %s14, 0
    %16 = vsyncpa [#allocation5], 0
    %17 = vsyncpa [#allocation8], 0
    loop: start=0, step=1, limit=4
    $region2: #{action_classifier_forward.1} parent=1 // loop_pre_header
      _
    $region3: #{action_classifier_forward.1} parent=1 // loop_header
      %s19 = sphi 0, %s23
      %p20 = scmp.ge.s32.totalorder %s19, 4
      %s29 = sphi 0, %s31
      %s32 = sphi 0, %s29
      %s33 = sphi 0, %s32
      %s49 = sphi 0, %s33
      %s55 = sphi 0, %s57
      %s58 = sphi 0, %s55
      %s59 = sphi 0, %s58
      %s75 = sphi 0, %s59
      %s79 = sphi 0, %s79
      %s81 = sphi 0, %s79
      %s82 = sphi 0, %s81
      %s96 = sphi 0, %s82
      %s100 = sphi 0, %s100
      %s102 = sphi 0, %s100
      %s103 = sphi 0, %s102
      %s117 = sphi 0, %s103
      %s121 = sphi 0, %s121
      %s123 = sphi 0, %s121
      %s124 = sphi 0, %s123
      %s138 = sphi 0, %s124
      %s142 = sphi 0, %s142
      %s144 = sphi 0, %s142
      %s145 = sphi 0, %s144
      %s159 = sphi 0, %s145
      %s163 = sphi 0, %s163
      %s165 = sphi 0, %s163
      %s166 = sphi 0, %s165
      %s180 = sphi 0, %s166
      %s184 = sphi 0, %s184
      %s186 = sphi 0, %s184
      %s187 = sphi 0, %s186
      %s201 = sphi 0, %s187
      %s207 = sphi 0, %s209
      %s210 = sphi 0, %s207
      %s211 = sphi 0, %s210
      %s227 = sphi 0, %s211
    $region4: #{action_classifier_forward.1} parent=1 // loop_header_branch
      %22 = sbr.rel (%p20) target = $region8
    $region5: #{action_classifier_forward.1} parent=1 // loop_body
      %s24 = ssub.s32 %s19, 1
      %s25 = ssub.s32 %s19, 2
      %s26 = sadd.s32 %s19, 1
      %s27 = ssub.s32 %s19, %s26
      %p28 = scmp.eq.s32.totalorder %s27, 0
      %s30 = sadd.s32 %s29, 1
      %s31 = scalar_select %p28, %s29, %s30
      %p34 = pneg %p28
      %p35 = scmp.eq.s32.totalorder %s19, 1
      %p36 = por %p34, %p35
      %p37 = scmp.ne.s32.totalorder %s29, %s32
      %p38 = scmp.eq.s32.totalorder %s19, 0
      %p39 = por %p37, %p38
      %p40 = scmp.ne.s32.totalorder %s29, %s32
      %p41 = scmp.eq.s32.totalorder %s24, 1
      %p42 = por %p40, %p41
      %p43 = scmp.ne.s32.totalorder %s32, %s33
      %p44 = scmp.eq.s32.totalorder %s24, 0
      %p45 = por %p43, %p44
      %p46 = scmp.ne.s32.totalorder %s32, %s33
      %p47 = scmp.eq.s32.totalorder %s25, 1
      %p48 = por %p46, %p47
      %p50 = scmp.ne.s32.totalorder %s33, %s49
      %p51 = scmp.eq.s32.totalorder %s25, 0
      %p52 = por %p50, %p51
      %s53 = ssub.s32 %s19, %s26
      %p54 = scmp.eq.s32.totalorder %s53, 0
      %s56 = sadd.s32 %s55, 1
      %s57 = scalar_select %p54, %s55, %s56
      %p60 = pneg %p54
      %p61 = scmp.eq.s32.totalorder %s19, 1
      %p62 = por %p60, %p61
      %p63 = scmp.ne.s32.totalorder %s55, %s58
      %p64 = scmp.eq.s32.totalorder %s19, 0
      %p65 = por %p63, %p64
      %p66 = scmp.ne.s32.totalorder %s55, %s58
      %p67 = scmp.eq.s32.totalorder %s24, 1
      %p68 = por %p66, %p67
      %p69 = scmp.ne.s32.totalorder %s58, %s59
      %p70 = scmp.eq.s32.totalorder %s24, 0
      %p71 = por %p69, %p70
      %p72 = scmp.ne.s32.totalorder %s58, %s59
      %p73 = scmp.eq.s32.totalorder %s25, 1
      %p74 = por %p72, %p73
      %p76 = scmp.ne.s32.totalorder %s59, %s75
      %p77 = scmp.eq.s32.totalorder %s25, 0
      %p78 = por %p76, %p77
      %s80 = sadd.s32 %s79, 1
      %p83 = scmp.eq.s32.totalorder %s19, 1
      %p84 = scmp.ne.s32.totalorder %s79, %s81
      %p85 = scmp.eq.s32.totalorder %s19, 0
      %p86 = por %p84, %p85
      %p87 = scmp.ne.s32.totalorder %s79, %s81
      %p88 = scmp.eq.s32.totalorder %s24, 1
      %p89 = por %p87, %p88
      %p90 = scmp.ne.s32.totalorder %s81, %s82
      %p91 = scmp.eq.s32.totalorder %s24, 0
      %p92 = por %p90, %p91
      %p93 = scmp.ne.s32.totalorder %s81, %s82
      %p94 = scmp.eq.s32.totalorder %s25, 1
      %p95 = por %p93, %p94
      %p97 = scmp.ne.s32.totalorder %s82, %s96
      %p98 = scmp.eq.s32.totalorder %s25, 0
      %p99 = por %p97, %p98
      %s101 = sadd.s32 %s100, 1
      %p104 = scmp.eq.s32.totalorder %s19, 1
      %p105 = scmp.ne.s32.totalorder %s100, %s102
      %p106 = scmp.eq.s32.totalorder %s19, 0
      %p107 = por %p105, %p106
      %p108 = scmp.ne.s32.totalorder %s100, %s102
      %p109 = scmp.eq.s32.totalorder %s24, 1
      %p110 = por %p108, %p109
      %p111 = scmp.ne.s32.totalorder %s102, %s103
      %p112 = scmp.eq.s32.totalorder %s24, 0
      %p113 = por %p111, %p112
      %p114 = scmp.ne.s32.totalorder %s102, %s103
      %p115 = scmp.eq.s32.totalorder %s25, 1
      %p116 = por %p114, %p115
      %p118 = scmp.ne.s32.totalorder %s103, %s117
      %p119 = scmp.eq.s32.totalorder %s25, 0
      %p120 = por %p118, %p119
      %s122 = sadd.s32 %s121, 1
      %p125 = scmp.eq.s32.totalorder %s19, 1
      %p126 = scmp.ne.s32.totalorder %s121, %s123
      %p127 = scmp.eq.s32.totalorder %s19, 0
      %p128 = por %p126, %p127
      %p129 = scmp.ne.s32.totalorder %s121, %s123
      %p130 = scmp.eq.s32.totalorder %s24, 1
      %p131 = por %p129, %p130
      %p132 = scmp.ne.s32.totalorder %s123, %s124
      %p133 = scmp.eq.s32.totalorder %s24, 0
      %p134 = por %p132, %p133
      %p135 = scmp.ne.s32.totalorder %s123, %s124
      %p136 = scmp.eq.s32.totalorder %s25, 1
      %p137 = por %p135, %p136
      %p139 = scmp.ne.s32.totalorder %s124, %s138
      %p140 = scmp.eq.s32.totalorder %s25, 0
      %p141 = por %p139, %p140
      %s143 = sadd.s32 %s142, 1
      %p146 = scmp.eq.s32.totalorder %s19, 1
      %p147 = scmp.ne.s32.totalorder %s142, %s144
      %p148 = scmp.eq.s32.totalorder %s19, 0
      %p149 = por %p147, %p148
      %p150 = scmp.ne.s32.totalorder %s142, %s144
      %p151 = scmp.eq.s32.totalorder %s24, 1
      %p152 = por %p150, %p151
      %p153 = scmp.ne.s32.totalorder %s144, %s145
      %p154 = scmp.eq.s32.totalorder %s24, 0
      %p155 = por %p153, %p154
      %p156 = scmp.ne.s32.totalorder %s144, %s145
      %p157 = scmp.eq.s32.totalorder %s25, 1
      %p158 = por %p156, %p157
      %p160 = scmp.ne.s32.totalorder %s145, %s159
      %p161 = scmp.eq.s32.totalorder %s25, 0
      %p162 = por %p160, %p161
      %s164 = sadd.s32 %s163, 1
      %p167 = scmp.eq.s32.totalorder %s19, 1
      %p168 = scmp.ne.s32.totalorder %s163, %s165
      %p169 = scmp.eq.s32.totalorder %s19, 0
      %p170 = por %p168, %p169
      %p171 = scmp.ne.s32.totalorder %s163, %s165
      %p172 = scmp.eq.s32.totalorder %s24, 1
      %p173 = por %p171, %p172
      %p174 = scmp.ne.s32.totalorder %s165, %s166
      %p175 = scmp.eq.s32.totalorder %s24, 0
      %p176 = por %p174, %p175
      %p177 = scmp.ne.s32.totalorder %s165, %s166
      %p178 = scmp.eq.s32.totalorder %s25, 1
      %p179 = por %p177, %p178
      %p181 = scmp.ne.s32.totalorder %s166, %s180
      %p182 = scmp.eq.s32.totalorder %s25, 0
      %p183 = por %p181, %p182
      %s185 = sadd.s32 %s184, 1
      %p188 = scmp.eq.s32.totalorder %s19, 1
      %p189 = scmp.ne.s32.totalorder %s184, %s186
      %p190 = scmp.eq.s32.totalorder %s19, 0
      %p191 = por %p189, %p190
      %p192 = scmp.ne.s32.totalorder %s184, %s186
      %p193 = scmp.eq.s32.totalorder %s24, 1
      %p194 = por %p192, %p193
      %p195 = scmp.ne.s32.totalorder %s186, %s187
      %p196 = scmp.eq.s32.totalorder %s24, 0
      %p197 = por %p195, %p196
      %p198 = scmp.ne.s32.totalorder %s186, %s187
      %p199 = scmp.eq.s32.totalorder %s25, 1
      %p200 = por %p198, %p199
      %p202 = scmp.ne.s32.totalorder %s187, %s201
      %p203 = scmp.eq.s32.totalorder %s25, 0
      %p204 = por %p202, %p203
      %s205 = ssub.s32 %s19, %s26
      %p206 = scmp.eq.s32.totalorder %s205, 0
      %s208 = sadd.s32 %s207, 1
      %s209 = scalar_select %p206, %s207, %s208
      %p212 = pneg %p206
      %p213 = scmp.eq.s32.totalorder %s19, 1
      %p214 = por %p212, %p213
      %p215 = scmp.ne.s32.totalorder %s207, %s210
      %p216 = scmp.eq.s32.totalorder %s19, 0
      %p217 = por %p215, %p216
      %p218 = scmp.ne.s32.totalorder %s207, %s210
      %p219 = scmp.eq.s32.totalorder %s24, 1
      %p220 = por %p218, %p219
      %p221 = scmp.ne.s32.totalorder %s210, %s211
      %p222 = scmp.eq.s32.totalorder %s24, 0
      %p223 = por %p221, %p222
      %p224 = scmp.ne.s32.totalorder %s210, %s211
      %p225 = scmp.eq.s32.totalorder %s25, 1
      %p226 = por %p224, %p225
      %p228 = scmp.ne.s32.totalorder %s211, %s227
      %p229 = scmp.eq.s32.totalorder %s25, 0
      %p230 = por %p228, %p229
      %p231 = scmp.le.s32.totalorder 1, %s19
      %p232 = scmp.lt.s32.totalorder %s19, 3
      %p233 = pnand %p231, %p232
      %p234 = pneg %p233
      // Predicated region
      $region9: #{action_classifier_forward.1} parent=5 // pred_check
        _
      $region10: #{action_classifier_forward.1} parent=5 // pred_check_branch
        %236 = sbr.rel (%p233) target = $region12
      $region11: #{action_classifier_forward.1} parent=5 // pred_region
        %s237 = ssub.s32 %s19, 1
        // Predicated region
        $region13: #{action_classifier_forward.1} parent=11 // pred_check
          %p238 = pneg %p92
        $region14: #{action_classifier_forward.1} parent=11 // pred_check_branch
          %240 = sbr.rel (%p238) target = $region16
        $region15: #{action_classifier_forward.1} parent=11 // pred_region
          %s242 = ssub.s32 44928, 44928
          %243 = vsyncadd [#allocation5], %s242
          %s244 = sshll.u32 [#allocation4], 4
          %s245 = int_to_ptr.vmem [resolvable:$true] %s244
          %250 = dma.hbm_to_vmem [thread:$0]  %s2, 44928, %s245, [#allocation5], 128, 128, 8
        $region16: #{action_classifier_forward.1} parent=11 // pred_fallthru
          _
        // Predicated region
        $region17: #{action_classifier_forward.1} parent=11 // pred_check
          %p251 = pneg %p113
        $region18: #{action_classifier_forward.1} parent=11 // pred_check_branch
          %253 = sbr.rel (%p251) target = $region20
        $region19: #{action_classifier_forward.1} parent=11 // pred_region
          %s255 = ssub.s32 128, 128
          %256 = vsyncadd [#allocation5], %s255
          %s258 = sshll.u32 [#allocation6], 4
          %s259 = int_to_ptr.vmem [resolvable:$true] %s258
          %261 = dma.hbm_to_vmem [thread:$0]  %s3, 128, %s259, [#allocation5]
        $region20: #{action_classifier_forward.1} parent=11 // pred_fallthru
          _
        // Predicated region
        $region21: #{action_classifier_forward.1} parent=11 // pred_check
          %p262 = pneg %p134
        $region22: #{action_classifier_forward.1} parent=11 // pred_check_branch
          %264 = sbr.rel (%p262) target = $region24
        $region23: #{action_classifier_forward.1} parent=11 // pred_region
          _
        $region24: #{action_classifier_forward.1} parent=11 // pred_fallthru
          _
        // Predicated region
        $region25: #{action_classifier_forward.1} parent=11 // pred_check
          %p265 = pneg %p155
        $region26: #{action_classifier_forward.1} parent=11 // pred_check_branch
          %267 = sbr.rel (%p265) target = $region28
        $region27: #{action_classifier_forward.1} parent=11 // pred_region
          _
        $region28: #{action_classifier_forward.1} parent=11 // pred_fallthru
          _
        // Predicated region
        $region29: #{action_classifier_forward.1} parent=11 // pred_check
          %p268 = pneg %p176
        $region30: #{action_classifier_forward.1} parent=11 // pred_check_branch
          %270 = sbr.rel (%p268) target = $region32
        $region31: #{action_classifier_forward.1} parent=11 // pred_region
          %s272 = ssub.s32 512, 512
          %273 = vsyncadd [#allocation8], %s272
          %s274 = sshll.u32 [#allocation7], 4
          %s275 = int_to_ptr.vmem [resolvable:$true] %s274
          %280 = dma.hbm_to_vmem [thread:$0]  %s6, 512, %s275, [#allocation8], 128, 128, 8
        $region32: #{action_classifier_forward.1} parent=11 // pred_fallthru
          _
        // Predicated region
        $region33: #{action_classifier_forward.1} parent=11 // pred_check
          %p281 = pneg %p197
        $region34: #{action_classifier_forward.1} parent=11 // pred_check_branch
          %283 = sbr.rel (%p281) target = $region36
        $region35: #{action_classifier_forward.1} parent=11 // pred_region
          %s285 = ssub.s32 128, 128
          %286 = vsyncadd [#allocation8], %s285
          %s288 = sshll.u32 [#allocation9], 4
          %s289 = int_to_ptr.vmem [resolvable:$true] %s288
          %291 = dma.hbm_to_vmem [thread:$0]  %s7, 128, %s289, [#allocation8]
        $region36: #{action_classifier_forward.1} parent=11 // pred_fallthru
          _
      $region12: #{action_classifier_forward.1} parent=5 // pred_fallthru
        _
      %p292 = scmp.lt.s32.totalorder %s19, 2
      // Predicated region
      $region37: #{action_classifier_forward.1} parent=5 // pred_check
        %p293 = pneg %p292
      $region38: #{action_classifier_forward.1} parent=5 // pred_check_branch
        %295 = sbr.rel (%p293) target = $region40
      $region39: #{action_classifier_forward.1} parent=5 // pred_region
        // Predicated region
        $region41: #{action_classifier_forward.1} parent=39 // pred_check
          %p296 = pneg %p39
        $region42: #{action_classifier_forward.1} parent=39 // pred_check_branch
          %298 = sbr.rel (%p296) target = $region44
        $region43: #{action_classifier_forward.1} parent=39 // pred_region
          %s299 = sand.u32 %s29, 1
          %s300 = scalar_lea.sflag [#allocation3], %s299
          %s301 = sand.u32 %s29, 1
          %s302 = smul.addr %s301, 176
          %s303 = scalar_lea.vmem [#allocation2], %s302
          %s305 = ssub.s32 2816, 2816
          %306 = vsyncadd %s300, %s305
          %s307 = smul.addr %s19, 22
          %s308 = smul.addr %s307, 128
          %s309 = scalar_lea.hbm %s0, %s308
          %s311 = sshll.u32 %s303, 4
          %s312 = int_to_ptr.vmem [resolvable:$true] %s311
          %314 = dma.hbm_to_vmem [thread:$0]  %s309, 2816, %s312, %s300
        $region44: #{action_classifier_forward.1} parent=39 // pred_fallthru
          _
        // Predicated region
        $region45: #{action_classifier_forward.1} parent=39 // pred_check
          %p315 = pneg %p65
        $region46: #{action_classifier_forward.1} parent=39 // pred_check_branch
          %317 = sbr.rel (%p315) target = $region48
        $region47: #{action_classifier_forward.1} parent=39 // pred_region
          %p318 = scmp.lt.s32.totalorder %s19, 1
          %s319 = scalar_select %p318, %s19, 1
          %s320 = smul.addr %s319, 8
          %s321 = scalar_lea.vmem %s1, %s320
        $region48: #{action_classifier_forward.1} parent=39 // pred_fallthru
          _
      $region40: #{action_classifier_forward.1} parent=5 // pred_fallthru
        _
      %p322 = scmp.le.s32.totalorder 1, %s19
      %p323 = scmp.lt.s32.totalorder %s19, 3
      %p324 = pnand %p322, %p323
      %p325 = pneg %p324
      // Predicated region
      $region49: #{action_classifier_forward.1} parent=5 // pred_check
        _
      $region50: #{action_classifier_forward.1} parent=5 // pred_check_branch
        %327 = sbr.rel (%p324) target = $region52
      $region51: #{action_classifier_forward.1} parent=5 // pred_region
        %s328 = ssub.s32 %s19, 1
        %s329 = sand.u32 %s32, 1
        %s330 = scalar_lea.sflag [#allocation3], %s329
        %s331 = sand.u32 %s32, 1
        %s332 = smul.addr %s331, 176
        %s333 = scalar_lea.vmem [#allocation2], %s332
        // Predicated region
        $region53: #{action_classifier_forward.1} parent=51 // pred_check
          %p334 = pneg %p45
        $region54: #{action_classifier_forward.1} parent=51 // pred_check_branch
          %336 = sbr.rel (%p334) target = $region56
        $region55: #{action_classifier_forward.1} parent=51 // pred_region
          %337 = dma.done %s330, 2816
        $region56: #{action_classifier_forward.1} parent=51 // pred_fallthru
          _
        // Predicated region
        $region57: #{action_classifier_forward.1} parent=51 // pred_check
          %p338 = pneg %p92
        $region58: #{action_classifier_forward.1} parent=51 // pred_check_branch
          %340 = sbr.rel (%p338) target = $region60
        $region59: #{action_classifier_forward.1} parent=51 // pred_region
          %341 = dma.done [#allocation5], 44928
        $region60: #{action_classifier_forward.1} parent=51 // pred_fallthru
          _
        // Predicated region
        $region61: #{action_classifier_forward.1} parent=51 // pred_check
          %p342 = pneg %p113
        $region62: #{action_classifier_forward.1} parent=51 // pred_check_branch
          %344 = sbr.rel (%p342) target = $region64
        $region63: #{action_classifier_forward.1} parent=51 // pred_region
          %345 = dma.done [#allocation5], 128
        $region64: #{action_classifier_forward.1} parent=51 // pred_fallthru
          _
        // Predicated region
        $region65: #{action_classifier_forward.1} parent=51 // pred_check
          %p346 = pneg %p176
        $region66: #{action_classifier_forward.1} parent=51 // pred_check_branch
          %348 = sbr.rel (%p346) target = $region68
        $region67: #{action_classifier_forward.1} parent=51 // pred_region
          %349 = dma.done [#allocation8], 512
        $region68: #{action_classifier_forward.1} parent=51 // pred_fallthru
          _
        // Predicated region
        $region69: #{action_classifier_forward.1} parent=51 // pred_check
          %p350 = pneg %p197
        $region70: #{action_classifier_forward.1} parent=51 // pred_check_branch
          %352 = sbr.rel (%p350) target = $region72
        $region71: #{action_classifier_forward.1} parent=51 // pred_region
          %353 = dma.done [#allocation8], 128
        $region72: #{action_classifier_forward.1} parent=51 // pred_fallthru
          _
        %s354 = sand.u32 %s32, 1
        %s355 = scalar_lea.sflag [#allocation3], %s354
        %s356 = sand.u32 %s32, 1
        %s357 = smul.addr %s356, 176
        %s358 = scalar_lea.vmem [#allocation2], %s357
        %p359 = pneg %p45
        %p360 = pneg %p42
        %p361 = scmp.lt.s32.totalorder %s24, 1
        %s362 = scalar_select %p361, %s24, 1
        %s363 = smul.addr %s362, 8
        %s364 = scalar_lea.vmem %s1, %s363
        %p365 = pneg %p71
        %p366 = pneg %p68
        %p367 = pneg %p92
        %p368 = pneg %p89
        %p369 = pneg %p113
        %p370 = pneg %p110
        %p371 = pneg %p134
        %p372 = pneg %p131
        %p373 = pneg %p155
        %p374 = pneg %p152
        %p375 = pneg %p176
        %p376 = pneg %p173
        %p377 = pneg %p197
        %p378 = pneg %p194
        %p379 = pneg %p223
        %p380 = pneg %p220
        %p381 = scmp.lt.s32.totalorder %s24, 1
        %s382 = scalar_select %p381, %s24, 1
        %s383 = smul.addr %s382, 8
        %s384 = scalar_lea.vmem %s8, %s383
        %p385 = scmp.lt.s32.totalorder %s24, 1
        %s386 = scalar_select %p385, %s24, 1
        %s387 = smul.addr %s386, 8
        %s388 = scalar_lea.vmem %s1, %s387
        %p389 = scmp.lt.s32.totalorder %s24, 1
        %s390 = scalar_select %p389, %s24, 1
        %s391 = smul.addr %s390, 8
        %s392 = scalar_lea.vmem %s8, %s391
        %v393 = vld [vmem:[#allocation9] sm:$0xff]
        %v394 = vld [vmem:[%s333] sm:$0xff]
        %v395 = vld [vmem:[%s333 + $0x8] sm:$0xff]
        %v396 = vld [vmem:[%s333 + $0x10] sm:$0xff]
        %v397 = vld [vmem:[%s333 + $0x18] sm:$0xff]
        %v398 = vld [vmem:[%s333 + $0x20] sm:$0xff]
        %v399 = vld [vmem:[%s333 + $0x28] sm:$0xff]
        %v400 = vld [vmem:[%s333 + $0x30] sm:$0xff]
        %v401 = vld [vmem:[%s333 + $0x38] sm:$0xff]
        %v402 = vld [vmem:[%s333 + $0x40] sm:$0xff]
        %v403 = vld [vmem:[%s333 + $0x48] sm:$0xff]
        %v404 = vld [vmem:[%s333 + $0x50] sm:$0xff]
        %v405 = vld [vmem:[%s333 + $0x58] sm:$0xff]
        %v406 = vld [vmem:[%s333 + $0x60] sm:$0xff]
        %v407 = vld [vmem:[%s333 + $0x68] sm:$0xff]
        %v408 = vld [vmem:[%s333 + $0x70] sm:$0xff]
        %v409 = vld [vmem:[%s333 + $0x78] sm:$0xff]
        %v410 = vld [vmem:[%s333 + $0x80] sm:$0xff]
        %v411 = vld [vmem:[%s333 + $0x88] sm:$0xff]
        %v412 = vld [vmem:[%s333 + $0x90] sm:$0xff]
        %v413 = vld [vmem:[%s333 + $0x98] sm:$0xff]
        %v414 = vld [vmem:[%s333 + $0xa0] sm:$0xff]
        %v415 = vld [vmem:[%s333 + $0xa8] sm:$0xff]
        %v416 = vld [vmem:[%s388] sm:$0xff]
        %v417 = vld [vmem:[#allocation4] sm:$0xff]
        %v418 = vld [vmem:[#allocation4 + $0x8] sm:$0xff]
        %v419 = vld [vmem:[#allocation4 + $0x10] sm:$0xff]
        %v420 = vld [vmem:[#allocation4 + $0x18] sm:$0xff]
        %v421 = vld [vmem:[#allocation4 + $0x20] sm:$0xff]
        %v422 = vld [vmem:[#allocation4 + $0x28] sm:$0xff]
        %v423 = vld [vmem:[#allocation4 + $0x30] sm:$0xff]
        %v424 = vld [vmem:[#allocation4 + $0x38] sm:$0xff]
        %v425 = vld [vmem:[#allocation4 + $0x40] sm:$0xff]
        %v426 = vld [vmem:[#allocation4 + $0x48] sm:$0xff]
        %v427 = vld [vmem:[#allocation4 + $0x50] sm:$0xff]
        %v428 = vld [vmem:[#allocation4 + $0x58] sm:$0xff]
        %v429 = vld [vmem:[#allocation4 + $0x60] sm:$0xff]
        %v430 = vld [vmem:[#allocation4 + $0x68] sm:$0xff]
        %v431 = vld [vmem:[#allocation4 + $0x70] sm:$0xff]
        %v432 = vld [vmem:[#allocation4 + $0x78] sm:$0xff]
        %v433 = vld [vmem:[#allocation4 + $0x80] sm:$0xff]
        %v434 = vld [vmem:[#allocation4 + $0x88] sm:$0xff]
        %v435 = vld [vmem:[#allocation4 + $0x90] sm:$0xff]
        %v436 = vld [vmem:[#allocation4 + $0x98] sm:$0xff]
        %v437 = vld [vmem:[#allocation4 + $0xa0] sm:$0xff]
        %v438 = vld [vmem:[#allocation4 + $0xa8] sm:$0xff]
        %v439 = vld [vmem:[#allocation4 + $0xb0] sm:$0xff]
        %v440 = vld [vmem:[#allocation4 + $0xb8] sm:$0xff]
        %v441 = vld [vmem:[#allocation4 + $0xc0] sm:$0xff]
        %v442 = vld [vmem:[#allocation4 + $0xc8] sm:$0xff]
        %v443 = vld [vmem:[#allocation4 + $0xd0] sm:$0xff]
        %v444 = vld [vmem:[#allocation4 + $0xd8] sm:$0xff]
        %v445 = vld [vmem:[#allocation4 + $0xe0] sm:$0xff]
        %v446 = vld [vmem:[#allocation4 + $0xe8] sm:$0xff]
        %v447 = vld [vmem:[#allocation4 + $0xf0] sm:$0xff]
        %v448 = vld [vmem:[#allocation4 + $0xf8] sm:$0xff]
        %v449 = vld [vmem:[#allocation4 + $0x100] sm:$0xff]
        %v450 = vld [vmem:[#allocation4 + $0x108] sm:$0xff]
        %v451 = vld [vmem:[#allocation4 + $0x110] sm:$0xff]
        %v452 = vld [vmem:[#allocation4 + $0x118] sm:$0xff]
        %v453 = vld [vmem:[#allocation4 + $0x120] sm:$0xff]
        %v454 = vld [vmem:[#allocation4 + $0x128] sm:$0xff]
        %v455 = vld [vmem:[#allocation4 + $0x130] sm:$0xff]
        %v456 = vld [vmem:[#allocation4 + $0x138] sm:$0xff]
        %v457 = vld [vmem:[#allocation4 + $0x140] sm:$0xff]
        %v458 = vld [vmem:[#allocation4 + $0x148] sm:$0xff]
        %v459 = vld [vmem:[#allocation4 + $0x150] sm:$0xff]
        %v460 = vld [vmem:[#allocation4 + $0x158] sm:$0xff]
        %v461 = vld [vmem:[#allocation4 + $0x160] sm:$0xff]
        %v462 = vld [vmem:[#allocation4 + $0x168] sm:$0xff]
        %v463 = vld [vmem:[#allocation4 + $0x170] sm:$0xff]
        %v464 = vld [vmem:[#allocation4 + $0x178] sm:$0xff]
        %v465 = vld [vmem:[#allocation4 + $0x180] sm:$0xff]
        %v466 = vld [vmem:[#allocation4 + $0x188] sm:$0xff]
        %v467 = vld [vmem:[#allocation4 + $0x190] sm:$0xff]
        %v468 = vld [vmem:[#allocation4 + $0x198] sm:$0xff]
        %v469 = vld [vmem:[#allocation4 + $0x1a0] sm:$0xff]
        %v470 = vld [vmem:[#allocation4 + $0x1a8] sm:$0xff]
        %v471 = vld [vmem:[#allocation4 + $0x1b0] sm:$0xff]
        %v472 = vld [vmem:[#allocation4 + $0x1b8] sm:$0xff]
        %v473 = vld [vmem:[#allocation4 + $0x1c0] sm:$0xff]
        %v474 = vld [vmem:[#allocation4 + $0x1c8] sm:$0xff]
        %v475 = vld [vmem:[#allocation4 + $0x1d0] sm:$0xff]
        %v476 = vld [vmem:[#allocation4 + $0x1d8] sm:$0xff]
        %v477 = vld [vmem:[#allocation4 + $0x1e0] sm:$0xff]
        %v478 = vld [vmem:[#allocation4 + $0x1e8] sm:$0xff]
        %v479 = vld [vmem:[#allocation4 + $0x1f0] sm:$0xff]
        %v480 = vld [vmem:[#allocation4 + $0x1f8] sm:$0xff]
        %v481 = vld [vmem:[#allocation4 + $0x200] sm:$0xff]
        %v482 = vld [vmem:[#allocation4 + $0x208] sm:$0xff]
        %v483 = vld [vmem:[#allocation4 + $0x210] sm:$0xff]
        %v484 = vld [vmem:[#allocation4 + $0x218] sm:$0xff]
        %v485 = vld [vmem:[#allocation4 + $0x220] sm:$0xff]
        %v486 = vld [vmem:[#allocation4 + $0x228] sm:$0xff]
        %v487 = vld [vmem:[#allocation4 + $0x230] sm:$0xff]
        %v488 = vld [vmem:[#allocation4 + $0x238] sm:$0xff]
        %v489 = vld [vmem:[#allocation4 + $0x240] sm:$0xff]
        %v490 = vld [vmem:[#allocation4 + $0x248] sm:$0xff]
        %v491 = vld [vmem:[#allocation4 + $0x250] sm:$0xff]
        %v492 = vld [vmem:[#allocation4 + $0x258] sm:$0xff]
        %v493 = vld [vmem:[#allocation4 + $0x260] sm:$0xff]
        %v494 = vld [vmem:[#allocation4 + $0x268] sm:$0xff]
        %v495 = vld [vmem:[#allocation4 + $0x270] sm:$0xff]
        %v496 = vld [vmem:[#allocation4 + $0x278] sm:$0xff]
        %v497 = vld [vmem:[#allocation4 + $0x280] sm:$0xff]
        %v498 = vld [vmem:[#allocation4 + $0x288] sm:$0xff]
        %v499 = vld [vmem:[#allocation4 + $0x290] sm:$0xff]
        %v500 = vld [vmem:[#allocation4 + $0x298] sm:$0xff]
        %v501 = vld [vmem:[#allocation4 + $0x2a0] sm:$0xff]
        %v502 = vld [vmem:[#allocation4 + $0x2a8] sm:$0xff]
        %v503 = vld [vmem:[#allocation4 + $0x2b0] sm:$0xff]
        %v504 = vld [vmem:[#allocation4 + $0x2b8] sm:$0xff]
        %v505 = vld [vmem:[#allocation4 + $0x2c0] sm:$0xff]
        %v506 = vld [vmem:[#allocation4 + $0x2c8] sm:$0xff]
        %v507 = vld [vmem:[#allocation4 + $0x2d0] sm:$0xff]
        %v508 = vld [vmem:[#allocation4 + $0x2d8] sm:$0xff]
        %v509 = vld [vmem:[#allocation4 + $0x2e0] sm:$0xff]
        %v510 = vld [vmem:[#allocation4 + $0x2e8] sm:$0xff]
        %v511 = vld [vmem:[#allocation4 + $0x2f0] sm:$0xff]
        %v512 = vld [vmem:[#allocation4 + $0x2f8] sm:$0xff]
        %v513 = vld [vmem:[#allocation4 + $0x300] sm:$0xff]
        %v514 = vld [vmem:[#allocation4 + $0x308] sm:$0xff]
        %v515 = vld [vmem:[#allocation4 + $0x310] sm:$0xff]
        %v516 = vld [vmem:[#allocation4 + $0x318] sm:$0xff]
        %v517 = vld [vmem:[#allocation4 + $0x320] sm:$0xff]
        %v518 = vld [vmem:[#allocation4 + $0x328] sm:$0xff]
        %v519 = vld [vmem:[#allocation4 + $0x330] sm:$0xff]
        %v520 = vld [vmem:[#allocation4 + $0x338] sm:$0xff]
        %v521 = vld [vmem:[#allocation4 + $0x340] sm:$0xff]
        %v522 = vld [vmem:[#allocation4 + $0x348] sm:$0xff]
        %v523 = vld [vmem:[#allocation4 + $0x350] sm:$0xff]
        %v524 = vld [vmem:[#allocation4 + $0x358] sm:$0xff]
        %v525 = vld [vmem:[#allocation4 + $0x360] sm:$0xff]
        %v526 = vld [vmem:[#allocation4 + $0x368] sm:$0xff]
        %v527 = vld [vmem:[#allocation4 + $0x370] sm:$0xff]
        %v528 = vld [vmem:[#allocation4 + $0x378] sm:$0xff]
        %v529 = vld [vmem:[#allocation4 + $0x380] sm:$0xff]
        %v530 = vld [vmem:[#allocation4 + $0x388] sm:$0xff]
        %v531 = vld [vmem:[#allocation4 + $0x390] sm:$0xff]
        %v532 = vld [vmem:[#allocation4 + $0x398] sm:$0xff]
        %v533 = vld [vmem:[#allocation4 + $0x3a0] sm:$0xff]
        %v534 = vld [vmem:[#allocation4 + $0x3a8] sm:$0xff]
        %v535 = vld [vmem:[#allocation4 + $0x3b0] sm:$0xff]
        %v536 = vld [vmem:[#allocation4 + $0x3b8] sm:$0xff]
        %v537 = vld [vmem:[#allocation4 + $0x3c0] sm:$0xff]
        %v538 = vld [vmem:[#allocation4 + $0x3c8] sm:$0xff]
        %v539 = vld [vmem:[#allocation4 + $0x3d0] sm:$0xff]
        %v540 = vld [vmem:[#allocation4 + $0x3d8] sm:$0xff]
        %v541 = vld [vmem:[#allocation4 + $0x3e0] sm:$0xff]
        %v542 = vld [vmem:[#allocation4 + $0x3e8] sm:$0xff]
        %v543 = vld [vmem:[#allocation4 + $0x3f0] sm:$0xff]
        %v544 = vld [vmem:[#allocation4 + $0x3f8] sm:$0xff]
        %v545 = vld [vmem:[#allocation4 + $0x400] sm:$0xff]
        %v546 = vld [vmem:[#allocation4 + $0x408] sm:$0xff]
        %v547 = vld [vmem:[#allocation4 + $0x410] sm:$0xff]
        %v548 = vld [vmem:[#allocation4 + $0x418] sm:$0xff]
        %v549 = vld [vmem:[#allocation4 + $0x420] sm:$0xff]
        %v550 = vld [vmem:[#allocation4 + $0x428] sm:$0xff]
        %v551 = vld [vmem:[#allocation4 + $0x430] sm:$0xff]
        %v552 = vld [vmem:[#allocation4 + $0x438] sm:$0xff]
        %v553 = vld [vmem:[#allocation4 + $0x440] sm:$0xff]
        %v554 = vld [vmem:[#allocation4 + $0x448] sm:$0xff]
        %v555 = vld [vmem:[#allocation4 + $0x450] sm:$0xff]
        %v556 = vld [vmem:[#allocation4 + $0x458] sm:$0xff]
        %v557 = vld [vmem:[#allocation4 + $0x460] sm:$0xff]
        %v558 = vld [vmem:[#allocation4 + $0x468] sm:$0xff]
        %v559 = vld [vmem:[#allocation4 + $0x470] sm:$0xff]
        %v560 = vld [vmem:[#allocation4 + $0x478] sm:$0xff]
        %v561 = vld [vmem:[#allocation4 + $0x480] sm:$0xff]
        %v562 = vld [vmem:[#allocation4 + $0x488] sm:$0xff]
        %v563 = vld [vmem:[#allocation4 + $0x490] sm:$0xff]
        %v564 = vld [vmem:[#allocation4 + $0x498] sm:$0xff]
        %v565 = vld [vmem:[#allocation4 + $0x4a0] sm:$0xff]
        %v566 = vld [vmem:[#allocation4 + $0x4a8] sm:$0xff]
        %v567 = vld [vmem:[#allocation4 + $0x4b0] sm:$0xff]
        %v568 = vld [vmem:[#allocation4 + $0x4b8] sm:$0xff]
        %v569 = vld [vmem:[#allocation4 + $0x4c0] sm:$0xff]
        %v570 = vld [vmem:[#allocation4 + $0x4c8] sm:$0xff]
        %v571 = vld [vmem:[#allocation4 + $0x4d0] sm:$0xff]
        %v572 = vld [vmem:[#allocation4 + $0x4d8] sm:$0xff]
        %v573 = vld [vmem:[#allocation4 + $0x4e0] sm:$0xff]
        %v574 = vld [vmem:[#allocation4 + $0x4e8] sm:$0xff]
        %v575 = vld [vmem:[#allocation4 + $0x4f0] sm:$0xff]
        %v576 = vld [vmem:[#allocation4 + $0x4f8] sm:$0xff]
        %v577 = vld [vmem:[#allocation4 + $0x500] sm:$0xff]
        %v578 = vld [vmem:[#allocation4 + $0x508] sm:$0xff]
        %v579 = vld [vmem:[#allocation4 + $0x510] sm:$0xff]
        %v580 = vld [vmem:[#allocation4 + $0x518] sm:$0xff]
        %v581 = vld [vmem:[#allocation4 + $0x520] sm:$0xff]
        %v582 = vld [vmem:[#allocation4 + $0x528] sm:$0xff]
        %v583 = vld [vmem:[#allocation4 + $0x530] sm:$0xff]
        %v584 = vld [vmem:[#allocation4 + $0x538] sm:$0xff]
        %v585 = vld [vmem:[#allocation4 + $0x540] sm:$0xff]
        %v586 = vld [vmem:[#allocation4 + $0x548] sm:$0xff]
        %v587 = vld [vmem:[#allocation4 + $0x550] sm:$0xff]
        %v588 = vld [vmem:[#allocation4 + $0x558] sm:$0xff]
        %v589 = vld [vmem:[#allocation4 + $0x560] sm:$0xff]
        %v590 = vld [vmem:[#allocation4 + $0x568] sm:$0xff]
        %v591 = vld [vmem:[#allocation4 + $0x570] sm:$0xff]
        %v592 = vld [vmem:[#allocation4 + $0x578] sm:$0xff]
        %v593 = vld [vmem:[#allocation4 + $0x580] sm:$0xff]
        %v594 = vld [vmem:[#allocation4 + $0x588] sm:$0xff]
        %v595 = vld [vmem:[#allocation4 + $0x590] sm:$0xff]
        %v596 = vld [vmem:[#allocation4 + $0x598] sm:$0xff]
        %v597 = vld [vmem:[#allocation4 + $0x5a0] sm:$0xff]
        %v598 = vld [vmem:[#allocation4 + $0x5a8] sm:$0xff]
        %v599 = vld [vmem:[#allocation4 + $0x5b0] sm:$0xff]
        %v600 = vld [vmem:[#allocation4 + $0x5b8] sm:$0xff]
        %v601 = vld [vmem:[#allocation4 + $0x5c0] sm:$0xff]
        %v602 = vld [vmem:[#allocation4 + $0x5c8] sm:$0xff]
        %v603 = vld [vmem:[#allocation4 + $0x5d0] sm:$0xff]
        %v604 = vld [vmem:[#allocation4 + $0x5d8] sm:$0xff]
        %v605 = vld [vmem:[#allocation4 + $0x5e0] sm:$0xff]
        %v606 = vld [vmem:[#allocation4 + $0x5e8] sm:$0xff]
        %v607 = vld [vmem:[#allocation4 + $0x5f0] sm:$0xff]
        %v608 = vld [vmem:[#allocation4 + $0x5f8] sm:$0xff]
        %v609 = vld [vmem:[#allocation4 + $0x600] sm:$0xff]
        %v610 = vld [vmem:[#allocation4 + $0x608] sm:$0xff]
        %v611 = vld [vmem:[#allocation4 + $0x610] sm:$0xff]
        %v612 = vld [vmem:[#allocation4 + $0x618] sm:$0xff]
        %v613 = vld [vmem:[#allocation4 + $0x620] sm:$0xff]
        %v614 = vld [vmem:[#allocation4 + $0x628] sm:$0xff]
        %v615 = vld [vmem:[#allocation4 + $0x630] sm:$0xff]
        %v616 = vld [vmem:[#allocation4 + $0x638] sm:$0xff]
        %v617 = vld [vmem:[#allocation4 + $0x640] sm:$0xff]
        %v618 = vld [vmem:[#allocation4 + $0x648] sm:$0xff]
        %v619 = vld [vmem:[#allocation4 + $0x650] sm:$0xff]
        %v620 = vld [vmem:[#allocation4 + $0x658] sm:$0xff]
        %v621 = vld [vmem:[#allocation4 + $0x660] sm:$0xff]
        %v622 = vld [vmem:[#allocation4 + $0x668] sm:$0xff]
        %v623 = vld [vmem:[#allocation4 + $0x670] sm:$0xff]
        %v624 = vld [vmem:[#allocation4 + $0x678] sm:$0xff]
        %v625 = vld [vmem:[#allocation4 + $0x680] sm:$0xff]
        %v626 = vld [vmem:[#allocation4 + $0x688] sm:$0xff]
        %v627 = vld [vmem:[#allocation4 + $0x690] sm:$0xff]
        %v628 = vld [vmem:[#allocation4 + $0x698] sm:$0xff]
        %v629 = vld [vmem:[#allocation4 + $0x6a0] sm:$0xff]
        %v630 = vld [vmem:[#allocation4 + $0x6a8] sm:$0xff]
        %v631 = vld [vmem:[#allocation4 + $0x6b0] sm:$0xff]
        %v632 = vld [vmem:[#allocation4 + $0x6b8] sm:$0xff]
        %v633 = vld [vmem:[#allocation4 + $0x6c0] sm:$0xff]
        %v634 = vld [vmem:[#allocation4 + $0x6c8] sm:$0xff]
        %v635 = vld [vmem:[#allocation4 + $0x6d0] sm:$0xff]
        %v636 = vld [vmem:[#allocation4 + $0x6d8] sm:$0xff]
        %v637 = vld [vmem:[#allocation4 + $0x6e0] sm:$0xff]
        %v638 = vld [vmem:[#allocation4 + $0x6e8] sm:$0xff]
        %v639 = vld [vmem:[#allocation4 + $0x6f0] sm:$0xff]
        %v640 = vld [vmem:[#allocation4 + $0x6f8] sm:$0xff]
        %v641 = vld [vmem:[#allocation4 + $0x700] sm:$0xff]
        %v642 = vld [vmem:[#allocation4 + $0x708] sm:$0xff]
        %v643 = vld [vmem:[#allocation4 + $0x710] sm:$0xff]
        %v644 = vld [vmem:[#allocation4 + $0x718] sm:$0xff]
        %v645 = vld [vmem:[#allocation4 + $0x720] sm:$0xff]
        %v646 = vld [vmem:[#allocation4 + $0x728] sm:$0xff]
        %v647 = vld [vmem:[#allocation4 + $0x730] sm:$0xff]
        %v648 = vld [vmem:[#allocation4 + $0x738] sm:$0xff]
        %v649 = vld [vmem:[#allocation4 + $0x740] sm:$0xff]
        %v650 = vld [vmem:[#allocation4 + $0x748] sm:$0xff]
        %v651 = vld [vmem:[#allocation4 + $0x750] sm:$0xff]
        %v652 = vld [vmem:[#allocation4 + $0x758] sm:$0xff]
        %v653 = vld [vmem:[#allocation4 + $0x760] sm:$0xff]
        %v654 = vld [vmem:[#allocation4 + $0x768] sm:$0xff]
        %v655 = vld [vmem:[#allocation4 + $0x770] sm:$0xff]
        %v656 = vld [vmem:[#allocation4 + $0x778] sm:$0xff]
        %v657 = vld [vmem:[#allocation4 + $0x780] sm:$0xff]
        %v658 = vld [vmem:[#allocation4 + $0x788] sm:$0xff]
        %v659 = vld [vmem:[#allocation4 + $0x790] sm:$0xff]
        %v660 = vld [vmem:[#allocation4 + $0x798] sm:$0xff]
        %v661 = vld [vmem:[#allocation4 + $0x7a0] sm:$0xff]
        %v662 = vld [vmem:[#allocation4 + $0x7a8] sm:$0xff]
        %v663 = vld [vmem:[#allocation4 + $0x7b0] sm:$0xff]
        %v664 = vld [vmem:[#allocation4 + $0x7b8] sm:$0xff]
        %v665 = vld [vmem:[#allocation4 + $0x7c0] sm:$0xff]
        %v666 = vld [vmem:[#allocation4 + $0x7c8] sm:$0xff]
        %v667 = vld [vmem:[#allocation4 + $0x7d0] sm:$0xff]
        %v668 = vld [vmem:[#allocation4 + $0x7d8] sm:$0xff]
        %v669 = vld [vmem:[#allocation4 + $0x7e0] sm:$0xff]
        %v670 = vld [vmem:[#allocation4 + $0x7e8] sm:$0xff]
        %v671 = vld [vmem:[#allocation4 + $0x7f0] sm:$0xff]
        %v672 = vld [vmem:[#allocation4 + $0x7f8] sm:$0xff]
        %v673 = vld [vmem:[#allocation4 + $0x800] sm:$0xff]
        %v674 = vld [vmem:[#allocation4 + $0x808] sm:$0xff]
        %v675 = vld [vmem:[#allocation4 + $0x810] sm:$0xff]
        %v676 = vld [vmem:[#allocation4 + $0x818] sm:$0xff]
        %v677 = vld [vmem:[#allocation4 + $0x820] sm:$0xff]
        %v678 = vld [vmem:[#allocation4 + $0x828] sm:$0xff]
        %v679 = vld [vmem:[#allocation4 + $0x830] sm:$0xff]
        %v680 = vld [vmem:[#allocation4 + $0x838] sm:$0xff]
        %v681 = vld [vmem:[#allocation4 + $0x840] sm:$0xff]
        %v682 = vld [vmem:[#allocation4 + $0x848] sm:$0xff]
        %v683 = vld [vmem:[#allocation4 + $0x850] sm:$0xff]
        %v684 = vld [vmem:[#allocation4 + $0x858] sm:$0xff]
        %v685 = vld [vmem:[#allocation4 + $0x860] sm:$0xff]
        %v686 = vld [vmem:[#allocation4 + $0x868] sm:$0xff]
        %v687 = vld [vmem:[#allocation4 + $0x870] sm:$0xff]
        %v688 = vld [vmem:[#allocation4 + $0x878] sm:$0xff]
        %v689 = vld [vmem:[#allocation4 + $0x880] sm:$0xff]
        %v690 = vld [vmem:[#allocation4 + $0x888] sm:$0xff]
        %v691 = vld [vmem:[#allocation4 + $0x890] sm:$0xff]
        %v692 = vld [vmem:[#allocation4 + $0x898] sm:$0xff]
        %v693 = vld [vmem:[#allocation4 + $0x8a0] sm:$0xff]
        %v694 = vld [vmem:[#allocation4 + $0x8a8] sm:$0xff]
        %v695 = vld [vmem:[#allocation4 + $0x8b0] sm:$0xff]
        %v696 = vld [vmem:[#allocation4 + $0x8b8] sm:$0xff]
        %v697 = vld [vmem:[#allocation4 + $0x8c0] sm:$0xff]
        %v698 = vld [vmem:[#allocation4 + $0x8c8] sm:$0xff]
        %v699 = vld [vmem:[#allocation4 + $0x8d0] sm:$0xff]
        %v700 = vld [vmem:[#allocation4 + $0x8d8] sm:$0xff]
        %v701 = vld [vmem:[#allocation4 + $0x8e0] sm:$0xff]
        %v702 = vld [vmem:[#allocation4 + $0x8e8] sm:$0xff]
        %v703 = vld [vmem:[#allocation4 + $0x8f0] sm:$0xff]
        %v704 = vld [vmem:[#allocation4 + $0x8f8] sm:$0xff]
        %v705 = vld [vmem:[#allocation4 + $0x900] sm:$0xff]
        %v706 = vld [vmem:[#allocation4 + $0x908] sm:$0xff]
        %v707 = vld [vmem:[#allocation4 + $0x910] sm:$0xff]
        %v708 = vld [vmem:[#allocation4 + $0x918] sm:$0xff]
        %v709 = vld [vmem:[#allocation4 + $0x920] sm:$0xff]
        %v710 = vld [vmem:[#allocation4 + $0x928] sm:$0xff]
        %v711 = vld [vmem:[#allocation4 + $0x930] sm:$0xff]
        %v712 = vld [vmem:[#allocation4 + $0x938] sm:$0xff]
        %v713 = vld [vmem:[#allocation4 + $0x940] sm:$0xff]
        %v714 = vld [vmem:[#allocation4 + $0x948] sm:$0xff]
        %v715 = vld [vmem:[#allocation4 + $0x950] sm:$0xff]
        %v716 = vld [vmem:[#allocation4 + $0x958] sm:$0xff]
        %v717 = vld [vmem:[#allocation4 + $0x960] sm:$0xff]
        %v718 = vld [vmem:[#allocation4 + $0x968] sm:$0xff]
        %v719 = vld [vmem:[#allocation4 + $0x970] sm:$0xff]
        %v720 = vld [vmem:[#allocation4 + $0x978] sm:$0xff]
        %v721 = vld [vmem:[#allocation4 + $0x980] sm:$0xff]
        %v722 = vld [vmem:[#allocation4 + $0x988] sm:$0xff]
        %v723 = vld [vmem:[#allocation4 + $0x990] sm:$0xff]
        %v724 = vld [vmem:[#allocation4 + $0x998] sm:$0xff]
        %v725 = vld [vmem:[#allocation4 + $0x9a0] sm:$0xff]
        %v726 = vld [vmem:[#allocation4 + $0x9a8] sm:$0xff]
        %v727 = vld [vmem:[#allocation4 + $0x9b0] sm:$0xff]
        %v728 = vld [vmem:[#allocation4 + $0x9b8] sm:$0xff]
        %v729 = vld [vmem:[#allocation4 + $0x9c0] sm:$0xff]
        %v730 = vld [vmem:[#allocation4 + $0x9c8] sm:$0xff]
        %v731 = vld [vmem:[#allocation4 + $0x9d0] sm:$0xff]
        %v732 = vld [vmem:[#allocation4 + $0x9d8] sm:$0xff]
        %v733 = vld [vmem:[#allocation4 + $0x9e0] sm:$0xff]
        %v734 = vld [vmem:[#allocation4 + $0x9e8] sm:$0xff]
        %v735 = vld [vmem:[#allocation4 + $0x9f0] sm:$0xff]
        %v736 = vld [vmem:[#allocation4 + $0x9f8] sm:$0xff]
        %v737 = vld [vmem:[#allocation4 + $0xa00] sm:$0xff]
        %v738 = vld [vmem:[#allocation4 + $0xa08] sm:$0xff]
        %v739 = vld [vmem:[#allocation4 + $0xa10] sm:$0xff]
        %v740 = vld [vmem:[#allocation4 + $0xa18] sm:$0xff]
        %v741 = vld [vmem:[#allocation4 + $0xa20] sm:$0xff]
        %v742 = vld [vmem:[#allocation4 + $0xa28] sm:$0xff]
        %v743 = vld [vmem:[#allocation4 + $0xa30] sm:$0xff]
        %v744 = vld [vmem:[#allocation4 + $0xa38] sm:$0xff]
        %v745 = vld [vmem:[#allocation4 + $0xa40] sm:$0xff]
        %v746 = vld [vmem:[#allocation4 + $0xa48] sm:$0xff]
        %v747 = vld [vmem:[#allocation4 + $0xa50] sm:$0xff]
        %v748 = vld [vmem:[#allocation4 + $0xa58] sm:$0xff]
        %v749 = vld [vmem:[#allocation4 + $0xa60] sm:$0xff]
        %v750 = vld [vmem:[#allocation4 + $0xa68] sm:$0xff]
        %v751 = vld [vmem:[#allocation4 + $0xa70] sm:$0xff]
        %v752 = vld [vmem:[#allocation4 + $0xa78] sm:$0xff]
        %v753 = vld [vmem:[#allocation4 + $0xa80] sm:$0xff]
        %v754 = vld [vmem:[#allocation4 + $0xa88] sm:$0xff]
        %v755 = vld [vmem:[#allocation4 + $0xa90] sm:$0xff]
        %v756 = vld [vmem:[#allocation4 + $0xa98] sm:$0xff]
        %v757 = vld [vmem:[#allocation4 + $0xaa0] sm:$0xff]
        %v758 = vld [vmem:[#allocation4 + $0xaa8] sm:$0xff]
        %v759 = vld [vmem:[#allocation4 + $0xab0] sm:$0xff]
        %v760 = vld [vmem:[#allocation4 + $0xab8] sm:$0xff]
        %v761 = vld [vmem:[#allocation4 + $0xac0] sm:$0xff]
        %v762 = vld [vmem:[#allocation4 + $0xac8] sm:$0xff]
        %v763 = vld [vmem:[#allocation4 + $0xad0] sm:$0xff]
        %v764 = vld [vmem:[#allocation4 + $0xad8] sm:$0xff]
        %v765 = vld [vmem:[#allocation4 + $0xae0] sm:$0xff]
        %v766 = vld [vmem:[#allocation4 + $0xae8] sm:$0xff]
        %v767 = vld [vmem:[#allocation4 + $0xaf0] sm:$0xff]
        %v768 = vld [vmem:[#allocation6] sm:$0x3f]
        %vm769 = vcmask 48128
        %v771 = vsel %vm769, %v416, 0
        %vm773 = vcmask 1045504
        %v775 = vsel %vm773, %v768, 0
        %777 = vmatprep.subr.mxu0 0.0
        %778 = vmatpush1.msra.mxu0 0.0
        %779 = vmatprep.subr.mxu0 0.0
        %780 = vmatpush1.msra.mxu0 0.0
        %781 = vmatprep.subr.mxu0 0.0
        %782 = vmatpush1.msra.mxu0 0.0
        %783 = vmatprep.subr.mxu0 0.0
        %784 = vmatpush1.msra.mxu0 0.0
        %785 = vmatprep.subr.mxu0 0.0
        %786 = vmatpush1.msra.mxu0 0.0
        %787 = vmatprep.subr.mxu0 0.0
        %788 = vmatpush1.msra.mxu0 0.0
        %789 = vmatprep.subr.mxu0 0.0
        %790 = vmatpush1.msra.mxu0 0.0
        %791 = vmatprep.subr.mxu0 0.0
        %792 = vmatpush1.msra.mxu0 0.0
        %793 = vmatprep.subr.mxu0 0.0
        %794 = vmatpush1.msra.mxu0 0.0
        %795 = vmatprep.subr.mxu0 0.0
        %796 = vmatpush1.msra.mxu0 0.0
        %797 = vmatprep.subr.mxu0 0.0
        %798 = vmatpush1.msra.mxu0 0.0
        %799 = vmatprep.subr.mxu0 0.0
        %800 = vmatpush1.msra.mxu0 0.0
        %801 = vmatprep.subr.mxu0 0.0
        %802 = vmatpush1.msra.mxu0 0.0
        %803 = vmatprep.subr.mxu0 0.0
        %804 = vmatpush1.msra.mxu0 0.0
        %805 = vmatprep.subr.mxu0 0.0
        %806 = vmatpush1.msra.mxu0 0.0
        %807 = vmatprep.subr.mxu0 0.0
        %808 = vmatpush1.msra.mxu0 %v775
        %809 = vmatprep.subr.mxu0 0.0
        %810 = vmatpush2.msra.mxu0 0.0
        %811 = vmatprep.subr.mxu0 0.0
        %812 = vmatpush2.msra.mxu0 0.0
        %813 = vmatprep.subr.mxu0 0.0
        %814 = vmatpush2.msra.mxu0 0.0
        %815 = vmatprep.subr.mxu0 0.0
        %816 = vmatpush2.msra.mxu0 0.0
        %817 = vmatprep.subr.mxu0 0.0
        %818 = vmatpush2.msra.mxu0 0.0
        %819 = vmatprep.subr.mxu0 0.0
        %820 = vmatpush2.msra.mxu0 0.0
        %821 = vmatprep.subr.mxu0 0.0
        %822 = vmatpush2.msra.mxu0 0.0
        %823 = vmatprep.subr.mxu0 0.0
        %824 = vmatpush2.msra.mxu0 0.0
        %825 = vmatprep.subr.mxu0 0.0
        %826 = vmatpush2.msra.mxu0 0.0
        %827 = vmatprep.subr.mxu0 0.0
        %828 = vmatpush2.msra.mxu0 0.0
        %829 = vmatprep.subr.mxu0 0.0
        %830 = vmatpush2.msra.mxu0 0.0
        %831 = vmatprep.subr.mxu0 0.0
        %832 = vmatpush2.msra.mxu0 0.0
        %833 = vmatprep.subr.mxu0 0.0
        %834 = vmatpush2.msra.mxu0 0.0
        %835 = vmatprep.subr.mxu0 0.0
        %836 = vmatpush2.msra.mxu0 0.0
        %837 = vmatprep.subr.mxu0 0.0
        %838 = vmatpush2.msra.mxu0 0.0
        %839 = vmatprep.subr.mxu0 0.0
        %840 = vmatpush2.msra.mxu0 0.0
        %841 = vmatprep.mubr.f32.mxu0 0.0
        %842 = vmatmul.mubr.f32.gmra.mxu0 %v771
        %v843 = vpop.f32.mrf.mxu0
        %v844 = vadd.f32 0.0, %v843
        %v845 = vpop.f32.mrf.mxu0
        %846 = vdwg.mxu0
        %vm847 = vcmask 982016
        %v849 = vsel %vm847, %v415, 0
        %851 = vmatprep.subr.mxu0 0.0
        %852 = vmatpush1.msra.mxu0 %v432
        %853 = vmatprep.subr.mxu0 0.0
        %854 = vmatpush1.msra.mxu0 %v431
        %855 = vmatprep.subr.mxu0 0.0
        %856 = vmatpush1.msra.mxu0 %v430
        %857 = vmatprep.subr.mxu0 0.0
        %858 = vmatpush1.msra.mxu0 %v429
        %859 = vmatprep.subr.mxu0 0.0
        %860 = vmatpush1.msra.mxu0 %v428
        %861 = vmatprep.subr.mxu0 0.0
        %862 = vmatpush1.msra.mxu0 %v427
        %863 = vmatprep.subr.mxu0 0.0
        %864 = vmatpush1.msra.mxu0 %v426
        %865 = vmatprep.subr.mxu0 0.0
        %866 = vmatpush1.msra.mxu0 %v425
        %867 = vmatprep.subr.mxu0 0.0
        %868 = vmatpush1.msra.mxu0 %v424
        %869 = vmatprep.subr.mxu0 0.0
        %870 = vmatpush1.msra.mxu0 %v423
        %871 = vmatprep.subr.mxu0 0.0
        %872 = vmatpush1.msra.mxu0 %v422
        %873 = vmatprep.subr.mxu0 0.0
        %874 = vmatpush1.msra.mxu0 %v421
        %875 = vmatprep.subr.mxu0 0.0
        %876 = vmatpush1.msra.mxu0 %v420
        %877 = vmatprep.subr.mxu0 0.0
        %878 = vmatpush1.msra.mxu0 %v419
        %879 = vmatprep.subr.mxu0 0.0
        %880 = vmatpush1.msra.mxu0 %v418
        %881 = vmatprep.subr.mxu0 0.0
        %882 = vmatpush1.msra.mxu0 %v417
        %883 = vmatprep.subr.mxu0 0.0
        %884 = vmatpush2.msra.mxu0 %v448
        %885 = vmatprep.subr.mxu0 0.0
        %886 = vmatpush2.msra.mxu0 %v447
        %887 = vmatprep.subr.mxu0 0.0
        %888 = vmatpush2.msra.mxu0 %v446
        %889 = vmatprep.subr.mxu0 0.0
        %890 = vmatpush2.msra.mxu0 %v445
        %891 = vmatprep.subr.mxu0 0.0
        %892 = vmatpush2.msra.mxu0 %v444
        %893 = vmatprep.subr.mxu0 0.0
        %894 = vmatpush2.msra.mxu0 %v443
        %895 = vmatprep.subr.mxu0 0.0
        %896 = vmatpush2.msra.mxu0 %v442
        %897 = vmatprep.subr.mxu0 0.0
        %898 = vmatpush2.msra.mxu0 %v441
        %899 = vmatprep.subr.mxu0 0.0
        %900 = vmatpush2.msra.mxu0 %v440
        %901 = vmatprep.subr.mxu0 0.0
        %902 = vmatpush2.msra.mxu0 %v439
        %903 = vmatprep.subr.mxu0 0.0
        %904 = vmatpush2.msra.mxu0 %v438
        %905 = vmatprep.subr.mxu0 0.0
        %906 = vmatpush2.msra.mxu0 %v437
        %907 = vmatprep.subr.mxu0 0.0
        %908 = vmatpush2.msra.mxu0 %v436
        %909 = vmatprep.subr.mxu0 0.0
        %910 = vmatpush2.msra.mxu0 %v435
        %911 = vmatprep.subr.mxu0 0.0
        %912 = vmatpush2.msra.mxu0 %v434
        %913 = vmatprep.subr.mxu0 0.0
        %914 = vmatpush2.msra.mxu0 %v433
        %915 = vmatprep.mubr.f32.mxu0 %v395
        %916 = vmatmul.mubr.f32.gmra.mxu0 %v394
        %v917 = vpop.f32.mrf.mxu0
        %v918 = vadd.f32 %v844, %v917
        %v919 = vpop.f32.mrf.mxu0
        %920 = vdwg.mxu0
        %921 = vmatprep.subr.mxu0 0.0
        %922 = vmatpush1.msra.mxu0 %v464
        %923 = vmatprep.subr.mxu0 0.0
        %924 = vmatpush1.msra.mxu0 %v463
        %925 = vmatprep.subr.mxu0 0.0
        %926 = vmatpush1.msra.mxu0 %v462
        %927 = vmatprep.subr.mxu0 0.0
        %928 = vmatpush1.msra.mxu0 %v461
        %929 = vmatprep.subr.mxu0 0.0
        %930 = vmatpush1.msra.mxu0 %v460
        %931 = vmatprep.subr.mxu0 0.0
        %932 = vmatpush1.msra.mxu0 %v459
        %933 = vmatprep.subr.mxu0 0.0
        %934 = vmatpush1.msra.mxu0 %v458
        %935 = vmatprep.subr.mxu0 0.0
        %936 = vmatpush1.msra.mxu0 %v457
        %937 = vmatprep.subr.mxu0 0.0
        %938 = vmatpush1.msra.mxu0 %v456
        %939 = vmatprep.subr.mxu0 0.0
        %940 = vmatpush1.msra.mxu0 %v455
        %941 = vmatprep.subr.mxu0 0.0
        %942 = vmatpush1.msra.mxu0 %v454
        %943 = vmatprep.subr.mxu0 0.0
        %944 = vmatpush1.msra.mxu0 %v453
        %945 = vmatprep.subr.mxu0 0.0
        %946 = vmatpush1.msra.mxu0 %v452
        %947 = vmatprep.subr.mxu0 0.0
        %948 = vmatpush1.msra.mxu0 %v451
        %949 = vmatprep.subr.mxu0 0.0
        %950 = vmatpush1.msra.mxu0 %v450
        %951 = vmatprep.subr.mxu0 0.0
        %952 = vmatpush1.msra.mxu0 %v449
        %953 = vmatprep.subr.mxu0 0.0
        %954 = vmatpush2.msra.mxu0 %v480
        %955 = vmatprep.subr.mxu0 0.0
        %956 = vmatpush2.msra.mxu0 %v479
        %957 = vmatprep.subr.mxu0 0.0
        %958 = vmatpush2.msra.mxu0 %v478
        %959 = vmatprep.subr.mxu0 0.0
        %960 = vmatpush2.msra.mxu0 %v477
        %961 = vmatprep.subr.mxu0 0.0
        %962 = vmatpush2.msra.mxu0 %v476
        %963 = vmatprep.subr.mxu0 0.0
        %964 = vmatpush2.msra.mxu0 %v475
        %965 = vmatprep.subr.mxu0 0.0
        %966 = vmatpush2.msra.mxu0 %v474
        %967 = vmatprep.subr.mxu0 0.0
        %968 = vmatpush2.msra.mxu0 %v473
        %969 = vmatprep.subr.mxu0 0.0
        %970 = vmatpush2.msra.mxu0 %v472
        %971 = vmatprep.subr.mxu0 0.0
        %972 = vmatpush2.msra.mxu0 %v471
        %973 = vmatprep.subr.mxu0 0.0
        %974 = vmatpush2.msra.mxu0 %v470
        %975 = vmatprep.subr.mxu0 0.0
        %976 = vmatpush2.msra.mxu0 %v469
        %977 = vmatprep.subr.mxu0 0.0
        %978 = vmatpush2.msra.mxu0 %v468
        %979 = vmatprep.subr.mxu0 0.0
        %980 = vmatpush2.msra.mxu0 %v467
        %981 = vmatprep.subr.mxu0 0.0
        %982 = vmatpush2.msra.mxu0 %v466
        %983 = vmatprep.subr.mxu0 0.0
        %984 = vmatpush2.msra.mxu0 %v465
        %985 = vmatprep.mubr.f32.mxu0 %v397
        %986 = vmatmul.mubr.f32.gmra.mxu0 %v396
        %v987 = vpop.f32.mrf.mxu0
        %v988 = vadd.f32 %v918, %v987
        %v989 = vpop.f32.mrf.mxu0
        %990 = vdwg.mxu0
        %991 = vmatprep.subr.mxu0 0.0
        %992 = vmatpush1.msra.mxu0 %v496
        %993 = vmatprep.subr.mxu0 0.0
        %994 = vmatpush1.msra.mxu0 %v495
        %995 = vmatprep.subr.mxu0 0.0
        %996 = vmatpush1.msra.mxu0 %v494
        %997 = vmatprep.subr.mxu0 0.0
        %998 = vmatpush1.msra.mxu0 %v493
        %999 = vmatprep.subr.mxu0 0.0
        %1000 = vmatpush1.msra.mxu0 %v492
        %1001 = vmatprep.subr.mxu0 0.0
        %1002 = vmatpush1.msra.mxu0 %v491
        %1003 = vmatprep.subr.mxu0 0.0
        %1004 = vmatpush1.msra.mxu0 %v490
        %1005 = vmatprep.subr.mxu0 0.0
        %1006 = vmatpush1.msra.mxu0 %v489
        %1007 = vmatprep.subr.mxu0 0.0
        %1008 = vmatpush1.msra.mxu0 %v488
        %1009 = vmatprep.subr.mxu0 0.0
        %1010 = vmatpush1.msra.mxu0 %v487
        %1011 = vmatprep.subr.mxu0 0.0
        %1012 = vmatpush1.msra.mxu0 %v486
        %1013 = vmatprep.subr.mxu0 0.0
        %1014 = vmatpush1.msra.mxu0 %v485
        %1015 = vmatprep.subr.mxu0 0.0
        %1016 = vmatpush1.msra.mxu0 %v484
        %1017 = vmatprep.subr.mxu0 0.0
        %1018 = vmatpush1.msra.mxu0 %v483
        %1019 = vmatprep.subr.mxu0 0.0
        %1020 = vmatpush1.msra.mxu0 %v482
        %1021 = vmatprep.subr.mxu0 0.0
        %1022 = vmatpush1.msra.mxu0 %v481
        %1023 = vmatprep.subr.mxu0 0.0
        %1024 = vmatpush2.msra.mxu0 %v512
        %1025 = vmatprep.subr.mxu0 0.0
        %1026 = vmatpush2.msra.mxu0 %v511
        %1027 = vmatprep.subr.mxu0 0.0
        %1028 = vmatpush2.msra.mxu0 %v510
        %1029 = vmatprep.subr.mxu0 0.0
        %1030 = vmatpush2.msra.mxu0 %v509
        %1031 = vmatprep.subr.mxu0 0.0
        %1032 = vmatpush2.msra.mxu0 %v508
        %1033 = vmatprep.subr.mxu0 0.0
        %1034 = vmatpush2.msra.mxu0 %v507
        %1035 = vmatprep.subr.mxu0 0.0
        %1036 = vmatpush2.msra.mxu0 %v506
        %1037 = vmatprep.subr.mxu0 0.0
        %1038 = vmatpush2.msra.mxu0 %v505
        %1039 = vmatprep.subr.mxu0 0.0
        %1040 = vmatpush2.msra.mxu0 %v504
        %1041 = vmatprep.subr.mxu0 0.0
        %1042 = vmatpush2.msra.mxu0 %v503
        %1043 = vmatprep.subr.mxu0 0.0
        %1044 = vmatpush2.msra.mxu0 %v502
        %1045 = vmatprep.subr.mxu0 0.0
        %1046 = vmatpush2.msra.mxu0 %v501
        %1047 = vmatprep.subr.mxu0 0.0
        %1048 = vmatpush2.msra.mxu0 %v500
        %1049 = vmatprep.subr.mxu0 0.0
        %1050 = vmatpush2.msra.mxu0 %v499
        %1051 = vmatprep.subr.mxu0 0.0
        %1052 = vmatpush2.msra.mxu0 %v498
        %1053 = vmatprep.subr.mxu0 0.0
        %1054 = vmatpush2.msra.mxu0 %v497
        %1055 = vmatprep.mubr.f32.mxu0 %v399
        %1056 = vmatmul.mubr.f32.gmra.mxu0 %v398
        %v1057 = vpop.f32.mrf.mxu0
        %v1058 = vadd.f32 %v988, %v1057
        %v1059 = vpop.f32.mrf.mxu0
        %1060 = vdwg.mxu0
        %1061 = vmatprep.subr.mxu0 0.0
        %1062 = vmatpush1.msra.mxu0 %v528
        %1063 = vmatprep.subr.mxu0 0.0
        %1064 = vmatpush1.msra.mxu0 %v527
        %1065 = vmatprep.subr.mxu0 0.0
        %1066 = vmatpush1.msra.mxu0 %v526
        %1067 = vmatprep.subr.mxu0 0.0
        %1068 = vmatpush1.msra.mxu0 %v525
        %1069 = vmatprep.subr.mxu0 0.0
        %1070 = vmatpush1.msra.mxu0 %v524
        %1071 = vmatprep.subr.mxu0 0.0
        %1072 = vmatpush1.msra.mxu0 %v523
        %1073 = vmatprep.subr.mxu0 0.0
        %1074 = vmatpush1.msra.mxu0 %v522
        %1075 = vmatprep.subr.mxu0 0.0
        %1076 = vmatpush1.msra.mxu0 %v521
        %1077 = vmatprep.subr.mxu0 0.0
        %1078 = vmatpush1.msra.mxu0 %v520
        %1079 = vmatprep.subr.mxu0 0.0
        %1080 = vmatpush1.msra.mxu0 %v519
        %1081 = vmatprep.subr.mxu0 0.0
        %1082 = vmatpush1.msra.mxu0 %v518
        %1083 = vmatprep.subr.mxu0 0.0
        %1084 = vmatpush1.msra.mxu0 %v517
        %1085 = vmatprep.subr.mxu0 0.0
        %1086 = vmatpush1.msra.mxu0 %v516
        %1087 = vmatprep.subr.mxu0 0.0
        %1088 = vmatpush1.msra.mxu0 %v515
        %1089 = vmatprep.subr.mxu0 0.0
        %1090 = vmatpush1.msra.mxu0 %v514
        %1091 = vmatprep.subr.mxu0 0.0
        %1092 = vmatpush1.msra.mxu0 %v513
        %1093 = vmatprep.subr.mxu0 0.0
        %1094 = vmatpush2.msra.mxu0 %v544
        %1095 = vmatprep.subr.mxu0 0.0
        %1096 = vmatpush2.msra.mxu0 %v543
        %1097 = vmatprep.subr.mxu0 0.0
        %1098 = vmatpush2.msra.mxu0 %v542
        %1099 = vmatprep.subr.mxu0 0.0
        %1100 = vmatpush2.msra.mxu0 %v541
        %1101 = vmatprep.subr.mxu0 0.0
        %1102 = vmatpush2.msra.mxu0 %v540
        %1103 = vmatprep.subr.mxu0 0.0
        %1104 = vmatpush2.msra.mxu0 %v539
        %1105 = vmatprep.subr.mxu0 0.0
        %1106 = vmatpush2.msra.mxu0 %v538
        %1107 = vmatprep.subr.mxu0 0.0
        %1108 = vmatpush2.msra.mxu0 %v537
        %1109 = vmatprep.subr.mxu0 0.0
        %1110 = vmatpush2.msra.mxu0 %v536
        %1111 = vmatprep.subr.mxu0 0.0
        %1112 = vmatpush2.msra.mxu0 %v535
        %1113 = vmatprep.subr.mxu0 0.0
        %1114 = vmatpush2.msra.mxu0 %v534
        %1115 = vmatprep.subr.mxu0 0.0
        %1116 = vmatpush2.msra.mxu0 %v533
        %1117 = vmatprep.subr.mxu0 0.0
        %1118 = vmatpush2.msra.mxu0 %v532
        %1119 = vmatprep.subr.mxu0 0.0
        %1120 = vmatpush2.msra.mxu0 %v531
        %1121 = vmatprep.subr.mxu0 0.0
        %1122 = vmatpush2.msra.mxu0 %v530
        %1123 = vmatprep.subr.mxu0 0.0
        %1124 = vmatpush2.msra.mxu0 %v529
        %1125 = vmatprep.mubr.f32.mxu0 %v401
        %1126 = vmatmul.mubr.f32.gmra.mxu0 %v400
        %v1127 = vpop.f32.mrf.mxu0
        %v1128 = vadd.f32 %v1058, %v1127
        %v1129 = vpop.f32.mrf.mxu0
        %1130 = vdwg.mxu0
        %1131 = vmatprep.subr.mxu0 0.0
        %1132 = vmatpush1.msra.mxu0 %v560
        %1133 = vmatprep.subr.mxu0 0.0
        %1134 = vmatpush1.msra.mxu0 %v559
        %1135 = vmatprep.subr.mxu0 0.0
        %1136 = vmatpush1.msra.mxu0 %v558
        %1137 = vmatprep.subr.mxu0 0.0
        %1138 = vmatpush1.msra.mxu0 %v557
        %1139 = vmatprep.subr.mxu0 0.0
        %1140 = vmatpush1.msra.mxu0 %v556
        %1141 = vmatprep.subr.mxu0 0.0
        %1142 = vmatpush1.msra.mxu0 %v555
        %1143 = vmatprep.subr.mxu0 0.0
        %1144 = vmatpush1.msra.mxu0 %v554
        %1145 = vmatprep.subr.mxu0 0.0
        %1146 = vmatpush1.msra.mxu0 %v553
        %1147 = vmatprep.subr.mxu0 0.0
        %1148 = vmatpush1.msra.mxu0 %v552
        %1149 = vmatprep.subr.mxu0 0.0
        %1150 = vmatpush1.msra.mxu0 %v551
        %1151 = vmatprep.subr.mxu0 0.0
        %1152 = vmatpush1.msra.mxu0 %v550
        %1153 = vmatprep.subr.mxu0 0.0
        %1154 = vmatpush1.msra.mxu0 %v549
        %1155 = vmatprep.subr.mxu0 0.0
        %1156 = vmatpush1.msra.mxu0 %v548
        %1157 = vmatprep.subr.mxu0 0.0
        %1158 = vmatpush1.msra.mxu0 %v547
        %1159 = vmatprep.subr.mxu0 0.0
        %1160 = vmatpush1.msra.mxu0 %v546
        %1161 = vmatprep.subr.mxu0 0.0
        %1162 = vmatpush1.msra.mxu0 %v545
        %1163 = vmatprep.subr.mxu0 0.0
        %1164 = vmatpush2.msra.mxu0 %v576
        %1165 = vmatprep.subr.mxu0 0.0
        %1166 = vmatpush2.msra.mxu0 %v575
        %1167 = vmatprep.subr.mxu0 0.0
        %1168 = vmatpush2.msra.mxu0 %v574
        %1169 = vmatprep.subr.mxu0 0.0
        %1170 = vmatpush2.msra.mxu0 %v573
        %1171 = vmatprep.subr.mxu0 0.0
        %1172 = vmatpush2.msra.mxu0 %v572
        %1173 = vmatprep.subr.mxu0 0.0
        %1174 = vmatpush2.msra.mxu0 %v571
        %1175 = vmatprep.subr.mxu0 0.0
        %1176 = vmatpush2.msra.mxu0 %v570
        %1177 = vmatprep.subr.mxu0 0.0
        %1178 = vmatpush2.msra.mxu0 %v569
        %1179 = vmatprep.subr.mxu0 0.0
        %1180 = vmatpush2.msra.mxu0 %v568
        %1181 = vmatprep.subr.mxu0 0.0
        %1182 = vmatpush2.msra.mxu0 %v567
        %1183 = vmatprep.subr.mxu0 0.0
        %1184 = vmatpush2.msra.mxu0 %v566
        %1185 = vmatprep.subr.mxu0 0.0
        %1186 = vmatpush2.msra.mxu0 %v565
        %1187 = vmatprep.subr.mxu0 0.0
        %1188 = vmatpush2.msra.mxu0 %v564
        %1189 = vmatprep.subr.mxu0 0.0
        %1190 = vmatpush2.msra.mxu0 %v563
        %1191 = vmatprep.subr.mxu0 0.0
        %1192 = vmatpush2.msra.mxu0 %v562
        %1193 = vmatprep.subr.mxu0 0.0
        %1194 = vmatpush2.msra.mxu0 %v561
        %1195 = vmatprep.mubr.f32.mxu0 %v403
        %1196 = vmatmul.mubr.f32.gmra.mxu0 %v402
        %v1197 = vpop.f32.mrf.mxu0
        %v1198 = vadd.f32 %v1128, %v1197
        %v1199 = vpop.f32.mrf.mxu0
        %1200 = vdwg.mxu0
        %1201 = vmatprep.subr.mxu0 0.0
        %1202 = vmatpush1.msra.mxu0 %v592
        %1203 = vmatprep.subr.mxu0 0.0
        %1204 = vmatpush1.msra.mxu0 %v591
        %1205 = vmatprep.subr.mxu0 0.0
        %1206 = vmatpush1.msra.mxu0 %v590
        %1207 = vmatprep.subr.mxu0 0.0
        %1208 = vmatpush1.msra.mxu0 %v589
        %1209 = vmatprep.subr.mxu0 0.0
        %1210 = vmatpush1.msra.mxu0 %v588
        %1211 = vmatprep.subr.mxu0 0.0
        %1212 = vmatpush1.msra.mxu0 %v587
        %1213 = vmatprep.subr.mxu0 0.0
        %1214 = vmatpush1.msra.mxu0 %v586
        %1215 = vmatprep.subr.mxu0 0.0
        %1216 = vmatpush1.msra.mxu0 %v585
        %1217 = vmatprep.subr.mxu0 0.0
        %1218 = vmatpush1.msra.mxu0 %v584
        %1219 = vmatprep.subr.mxu0 0.0
        %1220 = vmatpush1.msra.mxu0 %v583
        %1221 = vmatprep.subr.mxu0 0.0
        %1222 = vmatpush1.msra.mxu0 %v582
        %1223 = vmatprep.subr.mxu0 0.0
        %1224 = vmatpush1.msra.mxu0 %v581
        %1225 = vmatprep.subr.mxu0 0.0
        %1226 = vmatpush1.msra.mxu0 %v580
        %1227 = vmatprep.subr.mxu0 0.0
        %1228 = vmatpush1.msra.mxu0 %v579
        %1229 = vmatprep.subr.mxu0 0.0
        %1230 = vmatpush1.msra.mxu0 %v578
        %1231 = vmatprep.subr.mxu0 0.0
        %1232 = vmatpush1.msra.mxu0 %v577
        %1233 = vmatprep.subr.mxu0 0.0
        %1234 = vmatpush2.msra.mxu0 %v608
        %1235 = vmatprep.subr.mxu0 0.0
        %1236 = vmatpush2.msra.mxu0 %v607
        %1237 = vmatprep.subr.mxu0 0.0
        %1238 = vmatpush2.msra.mxu0 %v606
        %1239 = vmatprep.subr.mxu0 0.0
        %1240 = vmatpush2.msra.mxu0 %v605
        %1241 = vmatprep.subr.mxu0 0.0
        %1242 = vmatpush2.msra.mxu0 %v604
        %1243 = vmatprep.subr.mxu0 0.0
        %1244 = vmatpush2.msra.mxu0 %v603
        %1245 = vmatprep.subr.mxu0 0.0
        %1246 = vmatpush2.msra.mxu0 %v602
        %1247 = vmatprep.subr.mxu0 0.0
        %1248 = vmatpush2.msra.mxu0 %v601
        %1249 = vmatprep.subr.mxu0 0.0
        %1250 = vmatpush2.msra.mxu0 %v600
        %1251 = vmatprep.subr.mxu0 0.0
        %1252 = vmatpush2.msra.mxu0 %v599
        %1253 = vmatprep.subr.mxu0 0.0
        %1254 = vmatpush2.msra.mxu0 %v598
        %1255 = vmatprep.subr.mxu0 0.0
        %1256 = vmatpush2.msra.mxu0 %v597
        %1257 = vmatprep.subr.mxu0 0.0
        %1258 = vmatpush2.msra.mxu0 %v596
        %1259 = vmatprep.subr.mxu0 0.0
        %1260 = vmatpush2.msra.mxu0 %v595
        %1261 = vmatprep.subr.mxu0 0.0
        %1262 = vmatpush2.msra.mxu0 %v594
        %1263 = vmatprep.subr.mxu0 0.0
        %1264 = vmatpush2.msra.mxu0 %v593
        %1265 = vmatprep.mubr.f32.mxu0 %v405
        %1266 = vmatmul.mubr.f32.gmra.mxu0 %v404
        %v1267 = vpop.f32.mrf.mxu0
        %v1268 = vadd.f32 %v1198, %v1267
        %v1269 = vpop.f32.mrf.mxu0
        %1270 = vdwg.mxu0
        %1271 = vmatprep.subr.mxu0 0.0
        %1272 = vmatpush1.msra.mxu0 %v624
        %1273 = vmatprep.subr.mxu0 0.0
        %1274 = vmatpush1.msra.mxu0 %v623
        %1275 = vmatprep.subr.mxu0 0.0
        %1276 = vmatpush1.msra.mxu0 %v622
        %1277 = vmatprep.subr.mxu0 0.0
        %1278 = vmatpush1.msra.mxu0 %v621
        %1279 = vmatprep.subr.mxu0 0.0
        %1280 = vmatpush1.msra.mxu0 %v620
        %1281 = vmatprep.subr.mxu0 0.0
        %1282 = vmatpush1.msra.mxu0 %v619
        %1283 = vmatprep.subr.mxu0 0.0
        %1284 = vmatpush1.msra.mxu0 %v618
        %1285 = vmatprep.subr.mxu0 0.0
        %1286 = vmatpush1.msra.mxu0 %v617
        %1287 = vmatprep.subr.mxu0 0.0
        %1288 = vmatpush1.msra.mxu0 %v616
        %1289 = vmatprep.subr.mxu0 0.0
        %1290 = vmatpush1.msra.mxu0 %v615
        %1291 = vmatprep.subr.mxu0 0.0
        %1292 = vmatpush1.msra.mxu0 %v614
        %1293 = vmatprep.subr.mxu0 0.0
        %1294 = vmatpush1.msra.mxu0 %v613
        %1295 = vmatprep.subr.mxu0 0.0
        %1296 = vmatpush1.msra.mxu0 %v612
        %1297 = vmatprep.subr.mxu0 0.0
        %1298 = vmatpush1.msra.mxu0 %v611
        %1299 = vmatprep.subr.mxu0 0.0
        %1300 = vmatpush1.msra.mxu0 %v610
        %1301 = vmatprep.subr.mxu0 0.0
        %1302 = vmatpush1.msra.mxu0 %v609
        %1303 = vmatprep.subr.mxu0 0.0
        %1304 = vmatpush2.msra.mxu0 %v640
        %1305 = vmatprep.subr.mxu0 0.0
        %1306 = vmatpush2.msra.mxu0 %v639
        %1307 = vmatprep.subr.mxu0 0.0
        %1308 = vmatpush2.msra.mxu0 %v638
        %1309 = vmatprep.subr.mxu0 0.0
        %1310 = vmatpush2.msra.mxu0 %v637
        %1311 = vmatprep.subr.mxu0 0.0
        %1312 = vmatpush2.msra.mxu0 %v636
        %1313 = vmatprep.subr.mxu0 0.0
        %1314 = vmatpush2.msra.mxu0 %v635
        %1315 = vmatprep.subr.mxu0 0.0
        %1316 = vmatpush2.msra.mxu0 %v634
        %1317 = vmatprep.subr.mxu0 0.0
        %1318 = vmatpush2.msra.mxu0 %v633
        %1319 = vmatprep.subr.mxu0 0.0
        %1320 = vmatpush2.msra.mxu0 %v632
        %1321 = vmatprep.subr.mxu0 0.0
        %1322 = vmatpush2.msra.mxu0 %v631
        %1323 = vmatprep.subr.mxu0 0.0
        %1324 = vmatpush2.msra.mxu0 %v630
        %1325 = vmatprep.subr.mxu0 0.0
        %1326 = vmatpush2.msra.mxu0 %v629
        %1327 = vmatprep.subr.mxu0 0.0
        %1328 = vmatpush2.msra.mxu0 %v628
        %1329 = vmatprep.subr.mxu0 0.0
        %1330 = vmatpush2.msra.mxu0 %v627
        %1331 = vmatprep.subr.mxu0 0.0
        %1332 = vmatpush2.msra.mxu0 %v626
        %1333 = vmatprep.subr.mxu0 0.0
        %1334 = vmatpush2.msra.mxu0 %v625
        %1335 = vmatprep.mubr.f32.mxu0 %v407
        %1336 = vmatmul.mubr.f32.gmra.mxu0 %v406
        %v1337 = vpop.f32.mrf.mxu0
        %v1338 = vadd.f32 %v1268, %v1337
        %v1339 = vpop.f32.mrf.mxu0
        %1340 = vdwg.mxu0
        %1341 = vmatprep.subr.mxu0 0.0
        %1342 = vmatpush1.msra.mxu0 %v656
        %1343 = vmatprep.subr.mxu0 0.0
        %1344 = vmatpush1.msra.mxu0 %v655
        %1345 = vmatprep.subr.mxu0 0.0
        %1346 = vmatpush1.msra.mxu0 %v654
        %1347 = vmatprep.subr.mxu0 0.0
        %1348 = vmatpush1.msra.mxu0 %v653
        %1349 = vmatprep.subr.mxu0 0.0
        %1350 = vmatpush1.msra.mxu0 %v652
        %1351 = vmatprep.subr.mxu0 0.0
        %1352 = vmatpush1.msra.mxu0 %v651
        %1353 = vmatprep.subr.mxu0 0.0
        %1354 = vmatpush1.msra.mxu0 %v650
        %1355 = vmatprep.subr.mxu0 0.0
        %1356 = vmatpush1.msra.mxu0 %v649
        %1357 = vmatprep.subr.mxu0 0.0
        %1358 = vmatpush1.msra.mxu0 %v648
        %1359 = vmatprep.subr.mxu0 0.0
        %1360 = vmatpush1.msra.mxu0 %v647
        %1361 = vmatprep.subr.mxu0 0.0
        %1362 = vmatpush1.msra.mxu0 %v646
        %1363 = vmatprep.subr.mxu0 0.0
        %1364 = vmatpush1.msra.mxu0 %v645
        %1365 = vmatprep.subr.mxu0 0.0
        %1366 = vmatpush1.msra.mxu0 %v644
        %1367 = vmatprep.subr.mxu0 0.0
        %1368 = vmatpush1.msra.mxu0 %v643
        %1369 = vmatprep.subr.mxu0 0.0
        %1370 = vmatpush1.msra.mxu0 %v642
        %1371 = vmatprep.subr.mxu0 0.0
        %1372 = vmatpush1.msra.mxu0 %v641
        %1373 = vmatprep.subr.mxu0 0.0
        %1374 = vmatpush2.msra.mxu0 %v672
        %1375 = vmatprep.subr.mxu0 0.0
        %1376 = vmatpush2.msra.mxu0 %v671
        %1377 = vmatprep.subr.mxu0 0.0
        %1378 = vmatpush2.msra.mxu0 %v670
        %1379 = vmatprep.subr.mxu0 0.0
        %1380 = vmatpush2.msra.mxu0 %v669
        %1381 = vmatprep.subr.mxu0 0.0
        %1382 = vmatpush2.msra.mxu0 %v668
        %1383 = vmatprep.subr.mxu0 0.0
        %1384 = vmatpush2.msra.mxu0 %v667
        %1385 = vmatprep.subr.mxu0 0.0
        %1386 = vmatpush2.msra.mxu0 %v666
        %1387 = vmatprep.subr.mxu0 0.0
        %1388 = vmatpush2.msra.mxu0 %v665
        %1389 = vmatprep.subr.mxu0 0.0
        %1390 = vmatpush2.msra.mxu0 %v664
        %1391 = vmatprep.subr.mxu0 0.0
        %1392 = vmatpush2.msra.mxu0 %v663
        %1393 = vmatprep.subr.mxu0 0.0
        %1394 = vmatpush2.msra.mxu0 %v662
        %1395 = vmatprep.subr.mxu0 0.0
        %1396 = vmatpush2.msra.mxu0 %v661
        %1397 = vmatprep.subr.mxu0 0.0
        %1398 = vmatpush2.msra.mxu0 %v660
        %1399 = vmatprep.subr.mxu0 0.0
        %1400 = vmatpush2.msra.mxu0 %v659
        %1401 = vmatprep.subr.mxu0 0.0
        %1402 = vmatpush2.msra.mxu0 %v658
        %1403 = vmatprep.subr.mxu0 0.0
        %1404 = vmatpush2.msra.mxu0 %v657
        %1405 = vmatprep.mubr.f32.mxu0 %v409
        %1406 = vmatmul.mubr.f32.gmra.mxu0 %v408
        %v1407 = vpop.f32.mrf.mxu0
        %v1408 = vadd.f32 %v1338, %v1407
        %v1409 = vpop.f32.mrf.mxu0
        %1410 = vdwg.mxu0
        %1411 = vmatprep.subr.mxu0 0.0
        %1412 = vmatpush1.msra.mxu0 %v688
        %1413 = vmatprep.subr.mxu0 0.0
        %1414 = vmatpush1.msra.mxu0 %v687
        %1415 = vmatprep.subr.mxu0 0.0
        %1416 = vmatpush1.msra.mxu0 %v686
        %1417 = vmatprep.subr.mxu0 0.0
        %1418 = vmatpush1.msra.mxu0 %v685
        %1419 = vmatprep.subr.mxu0 0.0
        %1420 = vmatpush1.msra.mxu0 %v684
        %1421 = vmatprep.subr.mxu0 0.0
        %1422 = vmatpush1.msra.mxu0 %v683
        %1423 = vmatprep.subr.mxu0 0.0
        %1424 = vmatpush1.msra.mxu0 %v682
        %1425 = vmatprep.subr.mxu0 0.0
        %1426 = vmatpush1.msra.mxu0 %v681
        %1427 = vmatprep.subr.mxu0 0.0
        %1428 = vmatpush1.msra.mxu0 %v680
        %1429 = vmatprep.subr.mxu0 0.0
        %1430 = vmatpush1.msra.mxu0 %v679
        %1431 = vmatprep.subr.mxu0 0.0
        %1432 = vmatpush1.msra.mxu0 %v678
        %1433 = vmatprep.subr.mxu0 0.0
        %1434 = vmatpush1.msra.mxu0 %v677
        %1435 = vmatprep.subr.mxu0 0.0
        %1436 = vmatpush1.msra.mxu0 %v676
        %1437 = vmatprep.subr.mxu0 0.0
        %1438 = vmatpush1.msra.mxu0 %v675
        %1439 = vmatprep.subr.mxu0 0.0
        %1440 = vmatpush1.msra.mxu0 %v674
        %1441 = vmatprep.subr.mxu0 0.0
        %1442 = vmatpush1.msra.mxu0 %v673
        %1443 = vmatprep.subr.mxu0 0.0
        %1444 = vmatpush2.msra.mxu0 %v704
        %1445 = vmatprep.subr.mxu0 0.0
        %1446 = vmatpush2.msra.mxu0 %v703
        %1447 = vmatprep.subr.mxu0 0.0
        %1448 = vmatpush2.msra.mxu0 %v702
        %1449 = vmatprep.subr.mxu0 0.0
        %1450 = vmatpush2.msra.mxu0 %v701
        %1451 = vmatprep.subr.mxu0 0.0
        %1452 = vmatpush2.msra.mxu0 %v700
        %1453 = vmatprep.subr.mxu0 0.0
        %1454 = vmatpush2.msra.mxu0 %v699
        %1455 = vmatprep.subr.mxu0 0.0
        %1456 = vmatpush2.msra.mxu0 %v698
        %1457 = vmatprep.subr.mxu0 0.0
        %1458 = vmatpush2.msra.mxu0 %v697
        %1459 = vmatprep.subr.mxu0 0.0
        %1460 = vmatpush2.msra.mxu0 %v696
        %1461 = vmatprep.subr.mxu0 0.0
        %1462 = vmatpush2.msra.mxu0 %v695
        %1463 = vmatprep.subr.mxu0 0.0
        %1464 = vmatpush2.msra.mxu0 %v694
        %1465 = vmatprep.subr.mxu0 0.0
        %1466 = vmatpush2.msra.mxu0 %v693
        %1467 = vmatprep.subr.mxu0 0.0
        %1468 = vmatpush2.msra.mxu0 %v692
        %1469 = vmatprep.subr.mxu0 0.0
        %1470 = vmatpush2.msra.mxu0 %v691
        %1471 = vmatprep.subr.mxu0 0.0
        %1472 = vmatpush2.msra.mxu0 %v690
        %1473 = vmatprep.subr.mxu0 0.0
        %1474 = vmatpush2.msra.mxu0 %v689
        %1475 = vmatprep.mubr.f32.mxu0 %v411
        %1476 = vmatmul.mubr.f32.gmra.mxu0 %v410
        %v1477 = vpop.f32.mrf.mxu0
        %v1478 = vadd.f32 %v1408, %v1477
        %v1479 = vpop.f32.mrf.mxu0
        %1480 = vdwg.mxu0
        %1481 = vmatprep.subr.mxu0 0.0
        %1482 = vmatpush1.msra.mxu0 %v720
        %1483 = vmatprep.subr.mxu0 0.0
        %1484 = vmatpush1.msra.mxu0 %v719
        %1485 = vmatprep.subr.mxu0 0.0
        %1486 = vmatpush1.msra.mxu0 %v718
        %1487 = vmatprep.subr.mxu0 0.0
        %1488 = vmatpush1.msra.mxu0 %v717
        %1489 = vmatprep.subr.mxu0 0.0
        %1490 = vmatpush1.msra.mxu0 %v716
        %1491 = vmatprep.subr.mxu0 0.0
        %1492 = vmatpush1.msra.mxu0 %v715
        %1493 = vmatprep.subr.mxu0 0.0
        %1494 = vmatpush1.msra.mxu0 %v714
        %1495 = vmatprep.subr.mxu0 0.0
        %1496 = vmatpush1.msra.mxu0 %v713
        %1497 = vmatprep.subr.mxu0 0.0
        %1498 = vmatpush1.msra.mxu0 %v712
        %1499 = vmatprep.subr.mxu0 0.0
        %1500 = vmatpush1.msra.mxu0 %v711
        %1501 = vmatprep.subr.mxu0 0.0
        %1502 = vmatpush1.msra.mxu0 %v710
        %1503 = vmatprep.subr.mxu0 0.0
        %1504 = vmatpush1.msra.mxu0 %v709
        %1505 = vmatprep.subr.mxu0 0.0
        %1506 = vmatpush1.msra.mxu0 %v708
        %1507 = vmatprep.subr.mxu0 0.0
        %1508 = vmatpush1.msra.mxu0 %v707
        %1509 = vmatprep.subr.mxu0 0.0
        %1510 = vmatpush1.msra.mxu0 %v706
        %1511 = vmatprep.subr.mxu0 0.0
        %1512 = vmatpush1.msra.mxu0 %v705
        %1513 = vmatprep.subr.mxu0 0.0
        %1514 = vmatpush2.msra.mxu0 %v736
        %1515 = vmatprep.subr.mxu0 0.0
        %1516 = vmatpush2.msra.mxu0 %v735
        %1517 = vmatprep.subr.mxu0 0.0
        %1518 = vmatpush2.msra.mxu0 %v734
        %1519 = vmatprep.subr.mxu0 0.0
        %1520 = vmatpush2.msra.mxu0 %v733
        %1521 = vmatprep.subr.mxu0 0.0
        %1522 = vmatpush2.msra.mxu0 %v732
        %1523 = vmatprep.subr.mxu0 0.0
        %1524 = vmatpush2.msra.mxu0 %v731
        %1525 = vmatprep.subr.mxu0 0.0
        %1526 = vmatpush2.msra.mxu0 %v730
        %1527 = vmatprep.subr.mxu0 0.0
        %1528 = vmatpush2.msra.mxu0 %v729
        %1529 = vmatprep.subr.mxu0 0.0
        %1530 = vmatpush2.msra.mxu0 %v728
        %1531 = vmatprep.subr.mxu0 0.0
        %1532 = vmatpush2.msra.mxu0 %v727
        %1533 = vmatprep.subr.mxu0 0.0
        %1534 = vmatpush2.msra.mxu0 %v726
        %1535 = vmatprep.subr.mxu0 0.0
        %1536 = vmatpush2.msra.mxu0 %v725
        %1537 = vmatprep.subr.mxu0 0.0
        %1538 = vmatpush2.msra.mxu0 %v724
        %1539 = vmatprep.subr.mxu0 0.0
        %1540 = vmatpush2.msra.mxu0 %v723
        %1541 = vmatprep.subr.mxu0 0.0
        %1542 = vmatpush2.msra.mxu0 %v722
        %1543 = vmatprep.subr.mxu0 0.0
        %1544 = vmatpush2.msra.mxu0 %v721
        %1545 = vmatprep.mubr.f32.mxu0 %v413
        %1546 = vmatmul.mubr.f32.gmra.mxu0 %v412
        %v1547 = vpop.f32.mrf.mxu0
        %v1548 = vadd.f32 %v1478, %v1547
        %v1549 = vpop.f32.mrf.mxu0
        %1550 = vdwg.mxu0
        %1551 = vmatprep.subr.mxu0 0.0
        %1552 = vmatpush1.msra.mxu0 %v752
        %1553 = vmatprep.subr.mxu0 0.0
        %1554 = vmatpush1.msra.mxu0 %v751
        %1555 = vmatprep.subr.mxu0 0.0
        %1556 = vmatpush1.msra.mxu0 %v750
        %1557 = vmatprep.subr.mxu0 0.0
        %1558 = vmatpush1.msra.mxu0 %v749
        %1559 = vmatprep.subr.mxu0 0.0
        %1560 = vmatpush1.msra.mxu0 %v748
        %1561 = vmatprep.subr.mxu0 0.0
        %1562 = vmatpush1.msra.mxu0 %v747
        %1563 = vmatprep.subr.mxu0 0.0
        %1564 = vmatpush1.msra.mxu0 %v746
        %1565 = vmatprep.subr.mxu0 0.0
        %1566 = vmatpush1.msra.mxu0 %v745
        %1567 = vmatprep.subr.mxu0 0.0
        %1568 = vmatpush1.msra.mxu0 %v744
        %1569 = vmatprep.subr.mxu0 0.0
        %1570 = vmatpush1.msra.mxu0 %v743
        %1571 = vmatprep.subr.mxu0 0.0
        %1572 = vmatpush1.msra.mxu0 %v742
        %1573 = vmatprep.subr.mxu0 0.0
        %1574 = vmatpush1.msra.mxu0 %v741
        %1575 = vmatprep.subr.mxu0 0.0
        %1576 = vmatpush1.msra.mxu0 %v740
        %1577 = vmatprep.subr.mxu0 0.0
        %1578 = vmatpush1.msra.mxu0 %v739
        %1579 = vmatprep.subr.mxu0 0.0
        %1580 = vmatpush1.msra.mxu0 %v738
        %1581 = vmatprep.subr.mxu0 0.0
        %1582 = vmatpush1.msra.mxu0 %v737
        %1583 = vmatprep.subr.mxu0 0.0
        %1584 = vmatpush2.msra.mxu0 0.0
        %1585 = vmatprep.subr.mxu0 0.0
        %1586 = vmatpush2.msra.mxu0 %v767
        %1587 = vmatprep.subr.mxu0 0.0
        %1588 = vmatpush2.msra.mxu0 %v766
        %1589 = vmatprep.subr.mxu0 0.0
        %1590 = vmatpush2.msra.mxu0 %v765
        %1591 = vmatprep.subr.mxu0 0.0
        %1592 = vmatpush2.msra.mxu0 %v764
        %1593 = vmatprep.subr.mxu0 0.0
        %1594 = vmatpush2.msra.mxu0 %v763
        %1595 = vmatprep.subr.mxu0 0.0
        %1596 = vmatpush2.msra.mxu0 %v762
        %1597 = vmatprep.subr.mxu0 0.0
        %1598 = vmatpush2.msra.mxu0 %v761
        %1599 = vmatprep.subr.mxu0 0.0
        %1600 = vmatpush2.msra.mxu0 %v760
        %1601 = vmatprep.subr.mxu0 0.0
        %1602 = vmatpush2.msra.mxu0 %v759
        %1603 = vmatprep.subr.mxu0 0.0
        %1604 = vmatpush2.msra.mxu0 %v758
        %1605 = vmatprep.subr.mxu0 0.0
        %1606 = vmatpush2.msra.mxu0 %v757
        %1607 = vmatprep.subr.mxu0 0.0
        %1608 = vmatpush2.msra.mxu0 %v756
        %1609 = vmatprep.subr.mxu0 0.0
        %1610 = vmatpush2.msra.mxu0 %v755
        %1611 = vmatprep.subr.mxu0 0.0
        %1612 = vmatpush2.msra.mxu0 %v754
        %1613 = vmatprep.subr.mxu0 0.0
        %1614 = vmatpush2.msra.mxu0 %v753
        %1615 = vmatprep.mubr.f32.mxu0 %v849
        %1616 = vmatmul.mubr.f32.gmra.mxu0 %v414
        %v1617 = vpop.f32.mrf.mxu0
        %v1618 = vadd.f32 %v1548, %v1617
        %v1619 = vpop.f32.mrf.mxu0
        %1620 = vdwg.mxu0
        %v1621 = vlaneseq
        %v1622 = vshrl.u32 %v1621, 7
        %v1623 = vsub.s32 0, %v1622
        %v1624 = vrot.slane %v393, %v1623
        %v1625 = vmul.f32 %v1618, %v1624
        %v1626 = vlaneseq
        %v1627 = vshrl.u32 %v1626, 7
        %v1628 = vsub.s32 1, %v1627
        %v1629 = vrot.slane %v393, %v1628
        %v1630 = vadd.f32 %v1625, %v1629
        %vm1631 = vcmp.gt.f32.partialorder %v1630, 0.0
        %v1632 = vmul.f32 %v1630, 0.01
        %v1633 = vsel %vm1631, %v1630, %v1632
        %v1634 = vld [vmem:[%s4] sm:$0xff]
        %v1635 = vld [vmem:[%s4 + $0x8] sm:$0xff]
        %v1636 = vld [vmem:[%s4 + $0x10] sm:$0xff]
        %v1637 = vld [vmem:[%s4 + $0x18] sm:$0xff]
        %v1638 = vld [vmem:[%s4 + $0x20] sm:$0xff]
        %v1639 = vld [vmem:[%s4 + $0x28] sm:$0xff]
        %v1640 = vld [vmem:[%s4 + $0x30] sm:$0xff]
        %v1641 = vld [vmem:[%s4 + $0x38] sm:$0xff]
        %v1642 = vld [vmem:[%s4 + $0x40] sm:$0xff]
        %v1643 = vld [vmem:[%s4 + $0x48] sm:$0xff]
        %v1644 = vld [vmem:[%s4 + $0x50] sm:$0xff]
        %v1645 = vld [vmem:[%s4 + $0x58] sm:$0xff]
        %v1646 = vld [vmem:[%s4 + $0x60] sm:$0xff]
        %v1647 = vld [vmem:[%s4 + $0x68] sm:$0xff]
        %v1648 = vld [vmem:[%s4 + $0x70] sm:$0xff]
        %v1649 = vld [vmem:[%s4 + $0x78] sm:$0xff]
        %1650 = vmatprep.subr.mxu0 0.0
        %1651 = vmatpush1.msra.mxu0 %v1649
        %1652 = vmatprep.subr.mxu0 0.0
        %1653 = vmatpush1.msra.mxu0 %v1648
        %1654 = vmatprep.subr.mxu0 0.0
        %1655 = vmatpush1.msra.mxu0 %v1647
        %1656 = vmatprep.subr.mxu0 0.0
        %1657 = vmatpush1.msra.mxu0 %v1646
        %1658 = vmatprep.subr.mxu0 0.0
        %1659 = vmatpush1.msra.mxu0 %v1645
        %1660 = vmatprep.subr.mxu0 0.0
        %1661 = vmatpush1.msra.mxu0 %v1644
        %1662 = vmatprep.subr.mxu0 0.0
        %1663 = vmatpush1.msra.mxu0 %v1643
        %1664 = vmatprep.subr.mxu0 0.0
        %1665 = vmatpush1.msra.mxu0 %v1642
        %1666 = vmatprep.subr.mxu0 0.0
        %1667 = vmatpush1.msra.mxu0 %v1641
        %1668 = vmatprep.subr.mxu0 0.0
        %1669 = vmatpush1.msra.mxu0 %v1640
        %1670 = vmatprep.subr.mxu0 0.0
        %1671 = vmatpush1.msra.mxu0 %v1639
        %1672 = vmatprep.subr.mxu0 0.0
        %1673 = vmatpush1.msra.mxu0 %v1638
        %1674 = vmatprep.subr.mxu0 0.0
        %1675 = vmatpush1.msra.mxu0 %v1637
        %1676 = vmatprep.subr.mxu0 0.0
        %1677 = vmatpush1.msra.mxu0 %v1636
        %1678 = vmatprep.subr.mxu0 0.0
        %1679 = vmatpush1.msra.mxu0 %v1635
        %1680 = vmatprep.subr.mxu0 0.0
        %1681 = vmatpush1.msra.mxu0 %v1634
        %1682 = vmatprep.subr.mxu0 0.0
        %1683 = vmatpush2.msra.mxu0 0.0
        %1684 = vmatprep.subr.mxu0 0.0
        %1685 = vmatpush2.msra.mxu0 0.0
        %1686 = vmatprep.subr.mxu0 0.0
        %1687 = vmatpush2.msra.mxu0 0.0
        %1688 = vmatprep.subr.mxu0 0.0
        %1689 = vmatpush2.msra.mxu0 0.0
        %1690 = vmatprep.subr.mxu0 0.0
        %1691 = vmatpush2.msra.mxu0 0.0
        %1692 = vmatprep.subr.mxu0 0.0
        %1693 = vmatpush2.msra.mxu0 0.0
        %1694 = vmatprep.subr.mxu0 0.0
        %1695 = vmatpush2.msra.mxu0 0.0
        %1696 = vmatprep.subr.mxu0 0.0
        %1697 = vmatpush2.msra.mxu0 0.0
        %1698 = vmatprep.subr.mxu0 0.0
        %1699 = vmatpush2.msra.mxu0 0.0
        %1700 = vmatprep.subr.mxu0 0.0
        %1701 = vmatpush2.msra.mxu0 0.0
        %1702 = vmatprep.subr.mxu0 0.0
        %1703 = vmatpush2.msra.mxu0 0.0
        %1704 = vmatprep.subr.mxu0 0.0
        %1705 = vmatpush2.msra.mxu0 0.0
        %1706 = vmatprep.subr.mxu0 0.0
        %1707 = vmatpush2.msra.mxu0 0.0
        %1708 = vmatprep.subr.mxu0 0.0
        %1709 = vmatpush2.msra.mxu0 0.0
        %1710 = vmatprep.subr.mxu0 0.0
        %1711 = vmatpush2.msra.mxu0 0.0
        %1712 = vmatprep.subr.mxu0 0.0
        %1713 = vmatpush2.msra.mxu0 0.0
        %1714 = vmatprep.mubr.f32.mxu0 0.0
        %1715 = vmatmul.mubr.f32.gmra.mxu0 %v1633
        %v1716 = vpop.f32.mrf.mxu0
        %v1717 = vadd.f32 0.0, %v1716
        %v1718 = vpop.f32.mrf.mxu0
        %1719 = vdwg.mxu0
        %v1720 = vlaneseq
        %v1721 = vshrl.u32 %v1720, 7
        %v1722 = vsub.s32 2, %v1721
        %v1723 = vrot.slane %v393, %v1722
        %v1724 = vmul.f32 %v1717, %v1723
        %v1725 = vlaneseq
        %v1726 = vshrl.u32 %v1725, 7
        %v1727 = vsub.s32 3, %v1726
        %v1728 = vrot.slane %v393, %v1727
        %v1729 = vadd.f32 %v1724, %v1728
        %vm1730 = vcmp.gt.f32.partialorder %v1729, 0.0
        %v1731 = vmul.f32 %v1729, 0.01
        %v1732 = vsel %vm1730, %v1729, %v1731
        %v1733 = vld [vmem:[%s5] sm:$0xff]
        %v1734 = vld [vmem:[%s5 + $0x8] sm:$0xff]
        %v1735 = vld [vmem:[%s5 + $0x10] sm:$0xff]
        %v1736 = vld [vmem:[%s5 + $0x18] sm:$0xff]
        %v1737 = vld [vmem:[%s5 + $0x20] sm:$0xff]
        %v1738 = vld [vmem:[%s5 + $0x28] sm:$0xff]
        %v1739 = vld [vmem:[%s5 + $0x30] sm:$0xff]
        %v1740 = vld [vmem:[%s5 + $0x38] sm:$0xff]
        %vm1741 = vcmask 523264
        %v1743 = vsel %vm1741, %v1732, 0
        %1745 = vmatprep.subr.mxu0 0.0
        %1746 = vmatpush1.msra.mxu0 0.0
        %1747 = vmatprep.subr.mxu0 0.0
        %1748 = vmatpush1.msra.mxu0 0.0
        %1749 = vmatprep.subr.mxu0 0.0
        %1750 = vmatpush1.msra.mxu0 0.0
        %1751 = vmatprep.subr.mxu0 0.0
        %1752 = vmatpush1.msra.mxu0 0.0
        %1753 = vmatprep.subr.mxu0 0.0
        %1754 = vmatpush1.msra.mxu0 0.0
        %1755 = vmatprep.subr.mxu0 0.0
        %1756 = vmatpush1.msra.mxu0 0.0
        %1757 = vmatprep.subr.mxu0 0.0
        %1758 = vmatpush1.msra.mxu0 0.0
        %1759 = vmatprep.subr.mxu0 0.0
        %1760 = vmatpush1.msra.mxu0 0.0
        %1761 = vmatprep.subr.mxu0 0.0
        %1762 = vmatpush1.msra.mxu0 %v1740
        %1763 = vmatprep.subr.mxu0 0.0
        %1764 = vmatpush1.msra.mxu0 %v1739
        %1765 = vmatprep.subr.mxu0 0.0
        %1766 = vmatpush1.msra.mxu0 %v1738
        %1767 = vmatprep.subr.mxu0 0.0
        %1768 = vmatpush1.msra.mxu0 %v1737
        %1769 = vmatprep.subr.mxu0 0.0
        %1770 = vmatpush1.msra.mxu0 %v1736
        %1771 = vmatprep.subr.mxu0 0.0
        %1772 = vmatpush1.msra.mxu0 %v1735
        %1773 = vmatprep.subr.mxu0 0.0
        %1774 = vmatpush1.msra.mxu0 %v1734
        %1775 = vmatprep.subr.mxu0 0.0
        %1776 = vmatpush1.msra.mxu0 %v1733
        %1777 = vmatprep.subr.mxu0 0.0
        %1778 = vmatpush2.msra.mxu0 0.0
        %1779 = vmatprep.subr.mxu0 0.0
        %1780 = vmatpush2.msra.mxu0 0.0
        %1781 = vmatprep.subr.mxu0 0.0
        %1782 = vmatpush2.msra.mxu0 0.0
        %1783 = vmatprep.subr.mxu0 0.0
        %1784 = vmatpush2.msra.mxu0 0.0
        %1785 = vmatprep.subr.mxu0 0.0
        %1786 = vmatpush2.msra.mxu0 0.0
        %1787 = vmatprep.subr.mxu0 0.0
        %1788 = vmatpush2.msra.mxu0 0.0
        %1789 = vmatprep.subr.mxu0 0.0
        %1790 = vmatpush2.msra.mxu0 0.0
        %1791 = vmatprep.subr.mxu0 0.0
        %1792 = vmatpush2.msra.mxu0 0.0
        %1793 = vmatprep.subr.mxu0 0.0
        %1794 = vmatpush2.msra.mxu0 0.0
        %1795 = vmatprep.subr.mxu0 0.0
        %1796 = vmatpush2.msra.mxu0 0.0
        %1797 = vmatprep.subr.mxu0 0.0
        %1798 = vmatpush2.msra.mxu0 0.0
        %1799 = vmatprep.subr.mxu0 0.0
        %1800 = vmatpush2.msra.mxu0 0.0
        %1801 = vmatprep.subr.mxu0 0.0
        %1802 = vmatpush2.msra.mxu0 0.0
        %1803 = vmatprep.subr.mxu0 0.0
        %1804 = vmatpush2.msra.mxu0 0.0
        %1805 = vmatprep.subr.mxu0 0.0
        %1806 = vmatpush2.msra.mxu0 0.0
        %1807 = vmatprep.subr.mxu0 0.0
        %1808 = vmatpush2.msra.mxu0 0.0
        %1809 = vmatprep.mubr.f32.mxu0 0.0
        %1810 = vmatmul.mubr.f32.gmra.mxu0 %v1743
        %v1811 = vpop.f32.mrf.mxu0
        %v1812 = vadd.f32 0.0, %v1811
        %v1813 = vpop.f32.mrf.mxu0
        %1814 = vdwg.mxu0
        %v1815 = vlaneseq
        %v1816 = vshrl.u32 %v1815, 7
        %v1817 = vsub.s32 4, %v1816
        %v1818 = vrot.slane %v393, %v1817
        %v1819 = vmul.f32 %v1812, %v1818
        %v1820 = vlaneseq
        %v1821 = vshrl.u32 %v1820, 7
        %v1822 = vsub.s32 5, %v1821
        %v1823 = vrot.slane %v393, %v1822
        %v1824 = vadd.f32 %v1819, %v1823
        %vm1825 = vcmp.gt.f32.partialorder %v1824, 0.0
        %v1826 = vmul.f32 %v1824, 0.01
        %v1827 = vsel %vm1825, %v1824, %v1826
        %v1828 = vld [vmem:[#allocation7] sm:$0xff]
        %v1829 = vld [vmem:[#allocation7 + $0x8] sm:$0xff]
        %v1830 = vld [vmem:[#allocation7 + $0x10] sm:$0xff]
        %v1831 = vld [vmem:[#allocation7 + $0x18] sm:$0xff]
        %v1832 = vlaneseq
        %v1833 = vshrl.u32 %v1832, 7
        %v1834 = vsub.s32 6, %v1833
        %v1835 = vrot.slane %v393, %v1834
        %vm1836 = vcmask 261120
        %v1838 = vsel %vm1836, %v1827, 0
        %1840 = vmatprep.subr.mxu0 0.0
        %1841 = vmatpush1.msra.mxu0 0.0
        %1842 = vmatprep.subr.mxu0 0.0
        %1843 = vmatpush1.msra.mxu0 0.0
        %1844 = vmatprep.subr.mxu0 0.0
        %1845 = vmatpush1.msra.mxu0 0.0
        %1846 = vmatprep.subr.mxu0 0.0
        %1847 = vmatpush1.msra.mxu0 0.0
        %1848 = vmatprep.subr.mxu0 0.0
        %1849 = vmatpush1.msra.mxu0 0.0
        %1850 = vmatprep.subr.mxu0 0.0
        %1851 = vmatpush1.msra.mxu0 0.0
        %1852 = vmatprep.subr.mxu0 0.0
        %1853 = vmatpush1.msra.mxu0 0.0
        %1854 = vmatprep.subr.mxu0 0.0
        %1855 = vmatpush1.msra.mxu0 0.0
        %1856 = vmatprep.subr.mxu0 0.0
        %1857 = vmatpush1.msra.mxu0 0.0
        %1858 = vmatprep.subr.mxu0 0.0
        %1859 = vmatpush1.msra.mxu0 0.0
        %1860 = vmatprep.subr.mxu0 0.0
        %1861 = vmatpush1.msra.mxu0 0.0
        %1862 = vmatprep.subr.mxu0 0.0
        %1863 = vmatpush1.msra.mxu0 0.0
        %1864 = vmatprep.subr.mxu0 0.0
        %1865 = vmatpush1.msra.mxu0 %v1831
        %1866 = vmatprep.subr.mxu0 0.0
        %1867 = vmatpush1.msra.mxu0 %v1830
        %1868 = vmatprep.subr.mxu0 0.0
        %1869 = vmatpush1.msra.mxu0 %v1829
        %1870 = vmatprep.subr.mxu0 0.0
        %1871 = vmatpush1.msra.mxu0 %v1828
        %1872 = vmatprep.subr.mxu0 0.0
        %1873 = vmatpush2.msra.mxu0 0.0
        %1874 = vmatprep.subr.mxu0 0.0
        %1875 = vmatpush2.msra.mxu0 0.0
        %1876 = vmatprep.subr.mxu0 0.0
        %1877 = vmatpush2.msra.mxu0 0.0
        %1878 = vmatprep.subr.mxu0 0.0
        %1879 = vmatpush2.msra.mxu0 0.0
        %1880 = vmatprep.subr.mxu0 0.0
        %1881 = vmatpush2.msra.mxu0 0.0
        %1882 = vmatprep.subr.mxu0 0.0
        %1883 = vmatpush2.msra.mxu0 0.0
        %1884 = vmatprep.subr.mxu0 0.0
        %1885 = vmatpush2.msra.mxu0 0.0
        %1886 = vmatprep.subr.mxu0 0.0
        %1887 = vmatpush2.msra.mxu0 0.0
        %1888 = vmatprep.subr.mxu0 0.0
        %1889 = vmatpush2.msra.mxu0 0.0
        %1890 = vmatprep.subr.mxu0 0.0
        %1891 = vmatpush2.msra.mxu0 0.0
        %1892 = vmatprep.subr.mxu0 0.0
        %1893 = vmatpush2.msra.mxu0 0.0
        %1894 = vmatprep.subr.mxu0 0.0
        %1895 = vmatpush2.msra.mxu0 0.0
        %1896 = vmatprep.subr.mxu0 0.0
        %1897 = vmatpush2.msra.mxu0 0.0
        %1898 = vmatprep.subr.mxu0 0.0
        %1899 = vmatpush2.msra.mxu0 0.0
        %1900 = vmatprep.subr.mxu0 0.0
        %1901 = vmatpush2.msra.mxu0 0.0
        %1902 = vmatprep.subr.mxu0 0.0
        %1903 = vmatpush2.msra.mxu0 0.0
        %1904 = vmatprep.mubr.f32.mxu0 0.0
        %1905 = vmatmul.mubr.f32.gmra.mxu0 %v1838
        %v1906 = vpop.f32.mrf.mxu0
        %v1907 = vadd.f32 %v1835, %v1906
        %v1908 = vpop.f32.mrf.mxu0
        %1909 = vdwg.mxu0
        %1910 = vst [vmem:[%s392] sm:$0xff] %v1907
        %p1911 = scmp.lt.s32.totalorder %s24, 1
        %s1912 = scalar_select %p1911, %s24, 1
        %s1913 = smul.addr %s1912, 8
        %s1914 = scalar_lea.vmem %s8, %s1913
        // Predicated region
        $region73: #{action_classifier_forward.1} parent=51 // pred_check
          %p1915 = pneg %p220
        $region74: #{action_classifier_forward.1} parent=51 // pred_check_branch
          %1917 = sbr.rel (%p1915) target = $region76
        $region75: #{action_classifier_forward.1} parent=51 // pred_region
          _
        $region76: #{action_classifier_forward.1} parent=51 // pred_fallthru
          _
      $region52: #{action_classifier_forward.1} parent=5 // pred_fallthru
        _
      %p1918 = scmp.le.s32.totalorder 2, %s19
      // Predicated region
      $region77: #{action_classifier_forward.1} parent=5 // pred_check
        %p1919 = pneg %p1918
      $region78: #{action_classifier_forward.1} parent=5 // pred_check_branch
        %1921 = sbr.rel (%p1919) target = $region80
      $region79: #{action_classifier_forward.1} parent=5 // pred_region
        %s1922 = ssub.s32 %s19, 2
        // Predicated region
        $region81: #{action_classifier_forward.1} parent=79 // pred_check
          %p1923 = pneg %p226
        $region82: #{action_classifier_forward.1} parent=79 // pred_check_branch
          %1925 = sbr.rel (%p1923) target = $region84
        $region83: #{action_classifier_forward.1} parent=79 // pred_region
          %p1926 = scmp.lt.s32.totalorder %s25, 1
          %s1927 = scalar_select %p1926, %s25, 1
          %s1928 = smul.addr %s1927, 8
          %s1929 = scalar_lea.vmem %s8, %s1928
        $region84: #{action_classifier_forward.1} parent=79 // pred_fallthru
          _
      $region80: #{action_classifier_forward.1} parent=5 // pred_fallthru
        _
    $region6: #{action_classifier_forward.1} parent=1 // loop_footer
      %s23 = sadd.s32 1, %s19
    $region7: #{action_classifier_forward.1} parent=1 // loop_footer_branch
      %18 = sbr.rel target = $region3
    $region8: #{action_classifier_forward.1} parent=1 // loop_exit
      _
    %1930 = vsyncpa [#allocation3], 1
    %s1931 = scalar_lea.sflag [#allocation3], 1
    %1932 = vsyncpa %s1931, 1
    %1933 = vsyncpa [#allocation5], 1
    %1934 = vsyncpa [#allocation8], 1

// kernel: action_classifier_forward.1
$region0: #{action_classifier_forward.1}
  #allocation0 [shape = 'u32[]', space=smem, size = 0x4, offset = 0x4, fixed_abs, tag = 'smem constant byte address 0x4 - core index']
  #allocation1 [shape = 'u32[144,128]{1,0:T(1,128)}', space=vmem, size = 0x12000, scoped, tag = 'internal scratch']
  %s0 = inlined_call_operand.hbm [shape: f32[16,2808], index: 0, kind: input, shape index: {}]
  %s1 = inlined_call_operand.vmem [shape: f32[16,6], index: 1, kind: input, shape index: {}]
  %s2 = inlined_call_operand.hbm [shape: f32[2808,128], index: 2, kind: input, shape index: {}]
  %s3 = inlined_call_operand.hbm [shape: f32[6,128], index: 3, kind: input, shape index: {}]
  %s4 = inlined_call_operand.vmem [shape: f32[128,64], index: 4, kind: input, shape index: {}]
  %s5 = inlined_call_operand.vmem [shape: f32[64,32], index: 5, kind: input, shape index: {}]
  %s6 = inlined_call_operand.hbm [shape: f32[32,128], index: 6, kind: input, shape index: {}]
  %s7 = inlined_call_operand.hbm [shape: f32[8,128], index: 7, kind: input, shape index: {}]
  %s8 = inlined_call_operand.vmem [shape: f32[16,128], index: 8, kind: output, shape index: {}]
  %s9 = sld [smem:[#allocation0]]
  $region85: #{action_classifier_forward.1} parent=0
    _
  %s11 = ssub.s32 1, %s9
  %s12 = scalar_select 0, %s11, %s9
  $region1: #{action_classifier_forward.1} parent=0
    #allocation2 [shape = 'u8[180224]{0}', space=vmem, size = 0x2c000, scoped, tag = 'input window, operand 0']
    #allocation3 [shape = 's32[2]{0}', space=sflag, size = 0x8, scoped, tag = 'scoped memory for action_classifier_forward.1']
    #allocation4 [shape = 'u8[1437696]{0}', space=vmem, size = 0x15f000, scoped, tag = 'input window, operand 2, single buffered']
    #allocation5 [shape = 's32[1]{0}', space=sflag, size = 0x4, scoped, tag = 'scoped memory for action_classifier_forward.1']
    #allocation6 [shape = 'u8[4096]{0}', space=vmem, size = 0x1000, scoped, tag = 'input window, operand 3, single buffered']
    #allocation7 [shape = 'u8[16384]{0}', space=vmem, size = 0x4000, scoped, tag = 'input window, operand 6, single buffered']
    #allocation8 [shape = 's32[1]{0}', space=sflag, size = 0x4, scoped, tag = 'scoped memory for action_classifier_forward.1']
    #allocation9 [shape = 'u8[4096]{0}', space=vmem, size = 0x1000, scoped, tag = 'input window, operand 7, single buffered']
    %13 = vsyncpa [#allocation3], 0
    %s14 = scalar_lea.sflag [#allocation3], 1
    %15 = vsyncpa %s14, 0
    %16 = vsyncpa [#allocation5], 0
    %17 = vsyncpa [#allocation8], 0
    loop: start=0, step=1, limit=4
    $region2: #{action_classifier_forward.1} parent=1 // loop_pre_header
      _
    $region3: #{action_classifier_forward.1} parent=1 // loop_header
      %s19 = sphi 0, %s23
      %p20 = scmp.ge.s32.totalorder %s19, 4
      %s29 = sphi 0, %s31
      %s32 = sphi 0, %s29
      %s33 = sphi 0, %s32
      %s49 = sphi 0, %s33
      %s55 = sphi 0, %s57
      %s58 = sphi 0, %s55
      %s59 = sphi 0, %s58
      %s75 = sphi 0, %s59
      %s79 = sphi 0, %s79
      %s81 = sphi 0, %s79
      %s82 = sphi 0, %s81
      %s96 = sphi 0, %s82
      %s100 = sphi 0, %s100
      %s102 = sphi 0, %s100
      %s103 = sphi 0, %s102
      %s117 = sphi 0, %s103
      %s121 = sphi 0, %s121
      %s123 = sphi 0, %s121
      %s124 = sphi 0, %s123
      %s138 = sphi 0, %s124
      %s142 = sphi 0, %s142
      %s144 = sphi 0, %s142
      %s145 = sphi 0, %s144
      %s159 = sphi 0, %s145
      %s163 = sphi 0, %s163
      %s165 = sphi 0, %s163
      %s166 = sphi 0, %s165
      %s180 = sphi 0, %s166
      %s184 = sphi 0, %s184
      %s186 = sphi 0, %s184
      %s187 = sphi 0, %s186
      %s201 = sphi 0, %s187
      %s207 = sphi 0, %s209
      %s210 = sphi 0, %s207
      %s211 = sphi 0, %s210
      %s227 = sphi 0, %s211
    $region4: #{action_classifier_forward.1} parent=1 // loop_header_branch
      %22 = sbr.rel (%p20) target = $region8
    $region5: #{action_classifier_forward.1} parent=1 // loop_body
      %s24 = ssub.s32 %s19, 1
      %s25 = ssub.s32 %s19, 2
      %s26 = sadd.s32 %s19, 1
      %s27 = ssub.s32 %s19, %s26
      %p28 = scmp.eq.s32.totalorder %s27, 0
      %s30 = sadd.s32 %s29, 1
      %s31 = scalar_select %p28, %s29, %s30
      %p34 = pneg %p28
      %p35 = scmp.eq.s32.totalorder %s19, 1
      %p36 = por %p34, %p35
      %p37 = scmp.ne.s32.totalorder %s29, %s32
      %p38 = scmp.eq.s32.totalorder %s19, 0
      %p39 = por %p37, %p38
      %p40 = scmp.ne.s32.totalorder %s29, %s32
      %p41 = scmp.eq.s32.totalorder %s24, 1
      %p42 = por %p40, %p41
      %p43 = scmp.ne.s32.totalorder %s32, %s33
      %p44 = scmp.eq.s32.totalorder %s24, 0
      %p45 = por %p43, %p44
      %p46 = scmp.ne.s32.totalorder %s32, %s33
      %p47 = scmp.eq.s32.totalorder %s25, 1
      %p48 = por %p46, %p47
      %p50 = scmp.ne.s32.totalorder %s33, %s49
      %p51 = scmp.eq.s32.totalorder %s25, 0
      %p52 = por %p50, %p51
      %s53 = ssub.s32 %s19, %s26
      %p54 = scmp.eq.s32.totalorder %s53, 0
      %s56 = sadd.s32 %s55, 1
      %s57 = scalar_select %p54, %s55, %s56
      %p60 = pneg %p54
      %p61 = scmp.eq.s32.totalorder %s19, 1
      %p62 = por %p60, %p61
      %p63 = scmp.ne.s32.totalorder %s55, %s58
      %p64 = scmp.eq.s32.totalorder %s19, 0
      %p65 = por %p63, %p64
      %p66 = scmp.ne.s32.totalorder %s55, %s58
      %p67 = scmp.eq.s32.totalorder %s24, 1
      %p68 = por %p66, %p67
      %p69 = scmp.ne.s32.totalorder %s58, %s59
      %p70 = scmp.eq.s32.totalorder %s24, 0
      %p71 = por %p69, %p70
      %p72 = scmp.ne.s32.totalorder %s58, %s59
      %p73 = scmp.eq.s32.totalorder %s25, 1
      %p74 = por %p72, %p73
      %p76 = scmp.ne.s32.totalorder %s59, %s75
      %p77 = scmp.eq.s32.totalorder %s25, 0
      %p78 = por %p76, %p77
      %s80 = sadd.s32 %s79, 1
      %p83 = scmp.eq.s32.totalorder %s19, 1
      %p84 = scmp.ne.s32.totalorder %s79, %s81
      %p85 = scmp.eq.s32.totalorder %s19, 0
      %p86 = por %p84, %p85
      %p87 = scmp.ne.s32.totalorder %s79, %s81
      %p88 = scmp.eq.s32.totalorder %s24, 1
      %p89 = por %p87, %p88
      %p90 = scmp.ne.s32.totalorder %s81, %s82
      %p91 = scmp.eq.s32.totalorder %s24, 0
      %p92 = por %p90, %p91
      %p93 = scmp.ne.s32.totalorder %s81, %s82
      %p94 = scmp.eq.s32.totalorder %s25, 1
      %p95 = por %p93, %p94
      %p97 = scmp.ne.s32.totalorder %s82, %s96
      %p98 = scmp.eq.s32.totalorder %s25, 0
      %p99 = por %p97, %p98
      %s101 = sadd.s32 %s100, 1
      %p104 = scmp.eq.s32.totalorder %s19, 1
      %p105 = scmp.ne.s32.totalorder %s100, %s102
      %p106 = scmp.eq.s32.totalorder %s19, 0
      %p107 = por %p105, %p106
      %p108 = scmp.ne.s32.totalorder %s100, %s102
      %p109 = scmp.eq.s32.totalorder %s24, 1
      %p110 = por %p108, %p109
      %p111 = scmp.ne.s32.totalorder %s102, %s103
      %p112 = scmp.eq.s32.totalorder %s24, 0
      %p113 = por %p111, %p112
      %p114 = scmp.ne.s32.totalorder %s102, %s103
      %p115 = scmp.eq.s32.totalorder %s25, 1
      %p116 = por %p114, %p115
      %p118 = scmp.ne.s32.totalorder %s103, %s117
      %p119 = scmp.eq.s32.totalorder %s25, 0
      %p120 = por %p118, %p119
      %s122 = sadd.s32 %s121, 1
      %p125 = scmp.eq.s32.totalorder %s19, 1
      %p126 = scmp.ne.s32.totalorder %s121, %s123
      %p127 = scmp.eq.s32.totalorder %s19, 0
      %p128 = por %p126, %p127
      %p129 = scmp.ne.s32.totalorder %s121, %s123
      %p130 = scmp.eq.s32.totalorder %s24, 1
      %p131 = por %p129, %p130
      %p132 = scmp.ne.s32.totalorder %s123, %s124
      %p133 = scmp.eq.s32.totalorder %s24, 0
      %p134 = por %p132, %p133
      %p135 = scmp.ne.s32.totalorder %s123, %s124
      %p136 = scmp.eq.s32.totalorder %s25, 1
      %p137 = por %p135, %p136
      %p139 = scmp.ne.s32.totalorder %s124, %s138
      %p140 = scmp.eq.s32.totalorder %s25, 0
      %p141 = por %p139, %p140
      %s143 = sadd.s32 %s142, 1
      %p146 = scmp.eq.s32.totalorder %s19, 1
      %p147 = scmp.ne.s32.totalorder %s142, %s144
      %p148 = scmp.eq.s32.totalorder %s19, 0
      %p149 = por %p147, %p148
      %p150 = scmp.ne.s32.totalorder %s142, %s144
      %p151 = scmp.eq.s32.totalorder %s24, 1
      %p152 = por %p150, %p151
      %p153 = scmp.ne.s32.totalorder %s144, %s145
      %p154 = scmp.eq.s32.totalorder %s24, 0
      %p155 = por %p153, %p154
      %p156 = scmp.ne.s32.totalorder %s144, %s145
      %p157 = scmp.eq.s32.totalorder %s25, 1
      %p158 = por %p156, %p157
      %p160 = scmp.ne.s32.totalorder %s145, %s159
      %p161 = scmp.eq.s32.totalorder %s25, 0
      %p162 = por %p160, %p161
      %s164 = sadd.s32 %s163, 1
      %p167 = scmp.eq.s32.totalorder %s19, 1
      %p168 = scmp.ne.s32.totalorder %s163, %s165
      %p169 = scmp.eq.s32.totalorder %s19, 0
      %p170 = por %p168, %p169
      %p171 = scmp.ne.s32.totalorder %s163, %s165
      %p172 = scmp.eq.s32.totalorder %s24, 1
      %p173 = por %p171, %p172
      %p174 = scmp.ne.s32.totalorder %s165, %s166
      %p175 = scmp.eq.s32.totalorder %s24, 0
      %p176 = por %p174, %p175
      %p177 = scmp.ne.s32.totalorder %s165, %s166
      %p178 = scmp.eq.s32.totalorder %s25, 1
      %p179 = por %p177, %p178
      %p181 = scmp.ne.s32.totalorder %s166, %s180
      %p182 = scmp.eq.s32.totalorder %s25, 0
      %p183 = por %p181, %p182
      %s185 = sadd.s32 %s184, 1
      %p188 = scmp.eq.s32.totalorder %s19, 1
      %p189 = scmp.ne.s32.totalorder %s184, %s186
      %p190 = scmp.eq.s32.totalorder %s19, 0
      %p191 = por %p189, %p190
      %p192 = scmp.ne.s32.totalorder %s184, %s186
      %p193 = scmp.eq.s32.totalorder %s24, 1
      %p194 = por %p192, %p193
      %p195 = scmp.ne.s32.totalorder %s186, %s187
      %p196 = scmp.eq.s32.totalorder %s24, 0
      %p197 = por %p195, %p196
      %p198 = scmp.ne.s32.totalorder %s186, %s187
      %p199 = scmp.eq.s32.totalorder %s25, 1
      %p200 = por %p198, %p199
      %p202 = scmp.ne.s32.totalorder %s187, %s201
      %p203 = scmp.eq.s32.totalorder %s25, 0
      %p204 = por %p202, %p203
      %s205 = ssub.s32 %s19, %s26
      %p206 = scmp.eq.s32.totalorder %s205, 0
      %s208 = sadd.s32 %s207, 1
      %s209 = scalar_select %p206, %s207, %s208
      %p212 = pneg %p206
      %p213 = scmp.eq.s32.totalorder %s19, 1
      %p214 = por %p212, %p213
      %p215 = scmp.ne.s32.totalorder %s207, %s210
      %p216 = scmp.eq.s32.totalorder %s19, 0
      %p217 = por %p215, %p216
      %p218 = scmp.ne.s32.totalorder %s207, %s210
      %p219 = scmp.eq.s32.totalorder %s24, 1
      %p220 = por %p218, %p219
      %p221 = scmp.ne.s32.totalorder %s210, %s211
      %p222 = scmp.eq.s32.totalorder %s24, 0
      %p223 = por %p221, %p222
      %p224 = scmp.ne.s32.totalorder %s210, %s211
      %p225 = scmp.eq.s32.totalorder %s25, 1
      %p226 = por %p224, %p225
      %p228 = scmp.ne.s32.totalorder %s211, %s227
      %p229 = scmp.eq.s32.totalorder %s25, 0
      %p230 = por %p228, %p229
      %p231 = scmp.le.s32.totalorder 1, %s19
      %p232 = scmp.lt.s32.totalorder %s19, 3
      %p233 = pnand %p231, %p232
      %p234 = pneg %p233
      // Predicated region
      $region9: #{action_classifier_forward.1} parent=5 // pred_check
        _
      $region10: #{action_classifier_forward.1} parent=5 // pred_check_branch
        %236 = sbr.rel (%p233) target = $region12
      $region11: #{action_classifier_forward.1} parent=5 // pred_region
        %s237 = ssub.s32 %s19, 1
        // Predicated region
        $region13: #{action_classifier_forward.1} parent=11 // pred_check
          %p238 = pneg %p92
        $region14: #{action_classifier_forward.1} parent=11 // pred_check_branch
          %240 = sbr.rel (%p238) target = $region16
        $region15: #{action_classifier_forward.1} parent=11 // pred_region
          %s242 = ssub.s32 44928, 44928
          %243 = vsyncadd [#allocation5], %s242
          %s244 = sshll.u32 [#allocation4], 4
          %s245 = int_to_ptr.vmem [resolvable:$true] %s244
          %250 = dma.hbm_to_vmem [thread:$0]  %s2, 44928, %s245, [#allocation5], 128, 128, 8
        $region16: #{action_classifier_forward.1} parent=11 // pred_fallthru
          _
        // Predicated region
        $region17: #{action_classifier_forward.1} parent=11 // pred_check
          %p251 = pneg %p113
        $region18: #{action_classifier_forward.1} parent=11 // pred_check_branch
          %253 = sbr.rel (%p251) target = $region20
        $region19: #{action_classifier_forward.1} parent=11 // pred_region
          %s255 = ssub.s32 128, 128
          %256 = vsyncadd [#allocation5], %s255
          %s258 = sshll.u32 [#allocation6], 4
          %s259 = int_to_ptr.vmem [resolvable:$true] %s258
          %261 = dma.hbm_to_vmem [thread:$0]  %s3, 128, %s259, [#allocation5]
        $region20: #{action_classifier_forward.1} parent=11 // pred_fallthru
          _
        // Predicated region
        $region21: #{action_classifier_forward.1} parent=11 // pred_check
          %p262 = pneg %p134
        $region22: #{action_classifier_forward.1} parent=11 // pred_check_branch
          %264 = sbr.rel (%p262) target = $region24
        $region23: #{action_classifier_forward.1} parent=11 // pred_region
          _
        $region24: #{action_classifier_forward.1} parent=11 // pred_fallthru
          _
        // Predicated region
        $region25: #{action_classifier_forward.1} parent=11 // pred_check
          %p265 = pneg %p155
        $region26: #{action_classifier_forward.1} parent=11 // pred_check_branch
          %267 = sbr.rel (%p265) target = $region28
        $region27: #{action_classifier_forward.1} parent=11 // pred_region
          _
        $region28: #{action_classifier_forward.1} parent=11 // pred_fallthru
          _
        // Predicated region
        $region29: #{action_classifier_forward.1} parent=11 // pred_check
          %p268 = pneg %p176
        $region30: #{action_classifier_forward.1} parent=11 // pred_check_branch
          %270 = sbr.rel (%p268) target = $region32
        $region31: #{action_classifier_forward.1} parent=11 // pred_region
          %s272 = ssub.s32 512, 512
          %273 = vsyncadd [#allocation8], %s272
          %s274 = sshll.u32 [#allocation7], 4
          %s275 = int_to_ptr.vmem [resolvable:$true] %s274
          %280 = dma.hbm_to_vmem [thread:$0]  %s6, 512, %s275, [#allocation8], 128, 128, 8
        $region32: #{action_classifier_forward.1} parent=11 // pred_fallthru
          _
        // Predicated region
        $region33: #{action_classifier_forward.1} parent=11 // pred_check
          %p281 = pneg %p197
        $region34: #{action_classifier_forward.1} parent=11 // pred_check_branch
          %283 = sbr.rel (%p281) target = $region36
        $region35: #{action_classifier_forward.1} parent=11 // pred_region
          %s285 = ssub.s32 128, 128
          %286 = vsyncadd [#allocation8], %s285
          %s288 = sshll.u32 [#allocation9], 4
          %s289 = int_to_ptr.vmem [resolvable:$true] %s288
          %291 = dma.hbm_to_vmem [thread:$0]  %s7, 128, %s289, [#allocation8]
        $region36: #{action_classifier_forward.1} parent=11 // pred_fallthru
          _
      $region12: #{action_classifier_forward.1} parent=5 // pred_fallthru
        _
      %p292 = scmp.lt.s32.totalorder %s19, 2
      // Predicated region
      $region37: #{action_classifier_forward.1} parent=5 // pred_check
        %p293 = pneg %p292
      $region38: #{action_classifier_forward.1} parent=5 // pred_check_branch
        %295 = sbr.rel (%p293) target = $region40
      $region39: #{action_classifier_forward.1} parent=5 // pred_region
        // Predicated region
        $region41: #{action_classifier_forward.1} parent=39 // pred_check
          %p296 = pneg %p39
        $region42: #{action_classifier_forward.1} parent=39 // pred_check_branch
          %298 = sbr.rel (%p296) target = $region44
        $region43: #{action_classifier_forward.1} parent=39 // pred_region
          %s299 = sand.u32 %s29, 1
          %s300 = scalar_lea.sflag [#allocation3], %s299
          %s301 = sand.u32 %s29, 1
          %s302 = smul.addr %s301, 176
          %s303 = scalar_lea.vmem [#allocation2], %s302
          %s305 = ssub.s32 2816, 2816
          %306 = vsyncadd %s300, %s305
          %s307 = smul.addr %s19, 22
          %s308 = smul.addr %s307, 128
          %s309 = scalar_lea.hbm %s0, %s308
          %s311 = sshll.u32 %s303, 4
          %s312 = int_to_ptr.vmem [resolvable:$true] %s311
          %314 = dma.hbm_to_vmem [thread:$0]  %s309, 2816, %s312, %s300
        $region44: #{action_classifier_forward.1} parent=39 // pred_fallthru
          _
        // Predicated region
        $region45: #{action_classifier_forward.1} parent=39 // pred_check
          %p315 = pneg %p65
        $region46: #{action_classifier_forward.1} parent=39 // pred_check_branch
          %317 = sbr.rel (%p315) target = $region48
        $region47: #{action_classifier_forward.1} parent=39 // pred_region
          %p318 = scmp.lt.s32.totalorder %s19, 1
          %s319 = scalar_select %p318, %s19, 1
          %s320 = smul.addr %s319, 8
          %s321 = scalar_lea.vmem %s1, %s320
        $region48: #{action_classifier_forward.1} parent=39 // pred_fallthru
          _
      $region40: #{action_classifier_forward.1} parent=5 // pred_fallthru
        _
      %p322 = scmp.le.s32.totalorder 1, %s19
      %p323 = scmp.lt.s32.totalorder %s19, 3
      %p324 = pnand %p322, %p323
      %p325 = pneg %p324
      // Predicated region
      $region49: #{action_classifier_forward.1} parent=5 // pred_check
        _
      $region50: #{action_classifier_forward.1} parent=5 // pred_check_branch
        %327 = sbr.rel (%p324) target = $region52
      $region51: #{action_classifier_forward.1} parent=5 // pred_region
        %s328 = ssub.s32 %s19, 1
        %s329 = sand.u32 %s32, 1
        %s330 = scalar_lea.sflag [#allocation3], %s329
        %s331 = sand.u32 %s32, 1
        %s332 = smul.addr %s331, 176
        %s333 = scalar_lea.vmem [#allocation2], %s332
        // Predicated region
        $region53: #{action_classifier_forward.1} parent=51 // pred_check
          %p334 = pneg %p45
        $region54: #{action_classifier_forward.1} parent=51 // pred_check_branch
          %336 = sbr.rel (%p334) target = $region56
        $region55: #{action_classifier_forward.1} parent=51 // pred_region
          %337 = dma.done %s330, 2816
        $region56: #{action_classifier_forward.1} parent=51 // pred_fallthru
          _
        // Predicated region
        $region57: #{action_classifier_forward.1} parent=51 // pred_check
          %p338 = pneg %p92
        $region58: #{action_classifier_forward.1} parent=51 // pred_check_branch
          %340 = sbr.rel (%p338) target = $region60
        $region59: #{action_classifier_forward.1} parent=51 // pred_region
          %341 = dma.done [#allocation5], 44928
        $region60: #{action_classifier_forward.1} parent=51 // pred_fallthru
          _
        // Predicated region
        $region61: #{action_classifier_forward.1} parent=51 // pred_check
          %p342 = pneg %p113
        $region62: #{action_classifier_forward.1} parent=51 // pred_check_branch
          %344 = sbr.rel (%p342) target = $region64
        $region63: #{action_classifier_forward.1} parent=51 // pred_region
          %345 = dma.done [#allocation5], 128
        $region64: #{action_classifier_forward.1} parent=51 // pred_fallthru
          _
        // Predicated region
        $region65: #{action_classifier_forward.1} parent=51 // pred_check
          %p346 = pneg %p176
        $region66: #{action_classifier_forward.1} parent=51 // pred_check_branch
          %348 = sbr.rel (%p346) target = $region68
        $region67: #{action_classifier_forward.1} parent=51 // pred_region
          %349 = dma.done [#allocation8], 512
        $region68: #{action_classifier_forward.1} parent=51 // pred_fallthru
          _
        // Predicated region
        $region69: #{action_classifier_forward.1} parent=51 // pred_check
          %p350 = pneg %p197
        $region70: #{action_classifier_forward.1} parent=51 // pred_check_branch
          %352 = sbr.rel (%p350) target = $region72
        $region71: #{action_classifier_forward.1} parent=51 // pred_region
          %353 = dma.done [#allocation8], 128
        $region72: #{action_classifier_forward.1} parent=51 // pred_fallthru
          _
        %s354 = sand.u32 %s32, 1
        %s355 = scalar_lea.sflag [#allocation3], %s354
        %s356 = sand.u32 %s32, 1
        %s357 = smul.addr %s356, 176
        %s358 = scalar_lea.vmem [#allocation2], %s357
        %p359 = pneg %p45
        %p360 = pneg %p42
        %p361 = scmp.lt.s32.totalorder %s24, 1
        %s362 = scalar_select %p361, %s24, 1
        %s363 = smul.addr %s362, 8
        %s364 = scalar_lea.vmem %s1, %s363
        %p365 = pneg %p71
        %p366 = pneg %p68
        %p367 = pneg %p92
        %p368 = pneg %p89
        %p369 = pneg %p113
        %p370 = pneg %p110
        %p371 = pneg %p134
        %p372 = pneg %p131
        %p373 = pneg %p155
        %p374 = pneg %p152
        %p375 = pneg %p176
        %p376 = pneg %p173
        %p377 = pneg %p197
        %p378 = pneg %p194
        %p379 = pneg %p223
        %p380 = pneg %p220
        %p381 = scmp.lt.s32.totalorder %s24, 1
        %s382 = scalar_select %p381, %s24, 1
        %s383 = smul.addr %s382, 8
        %s384 = scalar_lea.vmem %s8, %s383
        %p385 = scmp.lt.s32.totalorder %s24, 1
        %s386 = scalar_select %p385, %s24, 1
        %s387 = smul.addr %s386, 8
        %s388 = scalar_lea.vmem %s1, %s387
        %p389 = scmp.lt.s32.totalorder %s24, 1
        %s390 = scalar_select %p389, %s24, 1
        %s391 = smul.addr %s390, 8
        %s392 = scalar_lea.vmem %s8, %s391
        %v393 = vld [vmem:[#allocation9] sm:$0xff]
        %v394 = vld [vmem:[%s333] sm:$0xff]
        %v395 = vld [vmem:[%s333 + $0x8] sm:$0xff]
        %v396 = vld [vmem:[%s333 + $0x10] sm:$0xff]
        %v397 = vld [vmem:[%s333 + $0x18] sm:$0xff]
        %v398 = vld [vmem:[%s333 + $0x20] sm:$0xff]
        %v399 = vld [vmem:[%s333 + $0x28] sm:$0xff]
        %v400 = vld [vmem:[%s333 + $0x30] sm:$0xff]
        %v401 = vld [vmem:[%s333 + $0x38] sm:$0xff]
        %v402 = vld [vmem:[%s333 + $0x40] sm:$0xff]
        %v403 = vld [vmem:[%s333 + $0x48] sm:$0xff]
        %v404 = vld [vmem:[%s333 + $0x50] sm:$0xff]
        %v405 = vld [vmem:[%s333 + $0x58] sm:$0xff]
        %v406 = vld [vmem:[%s333 + $0x60] sm:$0xff]
        %v407 = vld [vmem:[%s333 + $0x68] sm:$0xff]
        %v408 = vld [vmem:[%s333 + $0x70] sm:$0xff]
        %v409 = vld [vmem:[%s333 + $0x78] sm:$0xff]
        %v410 = vld [vmem:[%s333 + $0x80] sm:$0xff]
        %v411 = vld [vmem:[%s333 + $0x88] sm:$0xff]
        %v412 = vld [vmem:[%s333 + $0x90] sm:$0xff]
        %v413 = vld [vmem:[%s333 + $0x98] sm:$0xff]
        %v414 = vld [vmem:[%s333 + $0xa0] sm:$0xff]
        %v415 = vld [vmem:[%s333 + $0xa8] sm:$0xff]
        %v416 = vld [vmem:[%s388] sm:$0xff]
        %v417 = vld [vmem:[#allocation4] sm:$0xff]
        %v418 = vld [vmem:[#allocation4 + $0x8] sm:$0xff]
        %v419 = vld [vmem:[#allocation4 + $0x10] sm:$0xff]
        %v420 = vld [vmem:[#allocation4 + $0x18] sm:$0xff]
        %v421 = vld [vmem:[#allocation4 + $0x20] sm:$0xff]
        %v422 = vld [vmem:[#allocation4 + $0x28] sm:$0xff]
        %v423 = vld [vmem:[#allocation4 + $0x30] sm:$0xff]
        %v424 = vld [vmem:[#allocation4 + $0x38] sm:$0xff]
        %v425 = vld [vmem:[#allocation4 + $0x40] sm:$0xff]
        %v426 = vld [vmem:[#allocation4 + $0x48] sm:$0xff]
        %v427 = vld [vmem:[#allocation4 + $0x50] sm:$0xff]
        %v428 = vld [vmem:[#allocation4 + $0x58] sm:$0xff]
        %v429 = vld [vmem:[#allocation4 + $0x60] sm:$0xff]
        %v430 = vld [vmem:[#allocation4 + $0x68] sm:$0xff]
        %v431 = vld [vmem:[#allocation4 + $0x70] sm:$0xff]
        %v432 = vld [vmem:[#allocation4 + $0x78] sm:$0xff]
        %v433 = vld [vmem:[#allocation4 + $0x80] sm:$0xff]
        %v434 = vld [vmem:[#allocation4 + $0x88] sm:$0xff]
        %v435 = vld [vmem:[#allocation4 + $0x90] sm:$0xff]
        %v436 = vld [vmem:[#allocation4 + $0x98] sm:$0xff]
        %v437 = vld [vmem:[#allocation4 + $0xa0] sm:$0xff]
        %v438 = vld [vmem:[#allocation4 + $0xa8] sm:$0xff]
        %v439 = vld [vmem:[#allocation4 + $0xb0] sm:$0xff]
        %v440 = vld [vmem:[#allocation4 + $0xb8] sm:$0xff]
        %v441 = vld [vmem:[#allocation4 + $0xc0] sm:$0xff]
        %v442 = vld [vmem:[#allocation4 + $0xc8] sm:$0xff]
        %v443 = vld [vmem:[#allocation4 + $0xd0] sm:$0xff]
        %v444 = vld [vmem:[#allocation4 + $0xd8] sm:$0xff]
        %v445 = vld [vmem:[#allocation4 + $0xe0] sm:$0xff]
        %v446 = vld [vmem:[#allocation4 + $0xe8] sm:$0xff]
        %v447 = vld [vmem:[#allocation4 + $0xf0] sm:$0xff]
        %v448 = vld [vmem:[#allocation4 + $0xf8] sm:$0xff]
        %v449 = vld [vmem:[#allocation4 + $0x100] sm:$0xff]
        %v450 = vld [vmem:[#allocation4 + $0x108] sm:$0xff]
        %v451 = vld [vmem:[#allocation4 + $0x110] sm:$0xff]
        %v452 = vld [vmem:[#allocation4 + $0x118] sm:$0xff]
        %v453 = vld [vmem:[#allocation4 + $0x120] sm:$0xff]
        %v454 = vld [vmem:[#allocation4 + $0x128] sm:$0xff]
        %v455 = vld [vmem:[#allocation4 + $0x130] sm:$0xff]
        %v456 = vld [vmem:[#allocation4 + $0x138] sm:$0xff]
        %v457 = vld [vmem:[#allocation4 + $0x140] sm:$0xff]
        %v458 = vld [vmem:[#allocation4 + $0x148] sm:$0xff]
        %v459 = vld [vmem:[#allocation4 + $0x150] sm:$0xff]
        %v460 = vld [vmem:[#allocation4 + $0x158] sm:$0xff]
        %v461 = vld [vmem:[#allocation4 + $0x160] sm:$0xff]
        %v462 = vld [vmem:[#allocation4 + $0x168] sm:$0xff]
        %v463 = vld [vmem:[#allocation4 + $0x170] sm:$0xff]
        %v464 = vld [vmem:[#allocation4 + $0x178] sm:$0xff]
        %v465 = vld [vmem:[#allocation4 + $0x180] sm:$0xff]
        %v466 = vld [vmem:[#allocation4 + $0x188] sm:$0xff]
        %v467 = vld [vmem:[#allocation4 + $0x190] sm:$0xff]
        %v468 = vld [vmem:[#allocation4 + $0x198] sm:$0xff]
        %v469 = vld [vmem:[#allocation4 + $0x1a0] sm:$0xff]
        %v470 = vld [vmem:[#allocation4 + $0x1a8] sm:$0xff]
        %v471 = vld [vmem:[#allocation4 + $0x1b0] sm:$0xff]
        %v472 = vld [vmem:[#allocation4 + $0x1b8] sm:$0xff]
        %v473 = vld [vmem:[#allocation4 + $0x1c0] sm:$0xff]
        %v474 = vld [vmem:[#allocation4 + $0x1c8] sm:$0xff]
        %v475 = vld [vmem:[#allocation4 + $0x1d0] sm:$0xff]
        %v476 = vld [vmem:[#allocation4 + $0x1d8] sm:$0xff]
        %v477 = vld [vmem:[#allocation4 + $0x1e0] sm:$0xff]
        %v478 = vld [vmem:[#allocation4 + $0x1e8] sm:$0xff]
        %v479 = vld [vmem:[#allocation4 + $0x1f0] sm:$0xff]
        %v480 = vld [vmem:[#allocation4 + $0x1f8] sm:$0xff]
        %v481 = vld [vmem:[#allocation4 + $0x200] sm:$0xff]
        %v482 = vld [vmem:[#allocation4 + $0x208] sm:$0xff]
        %v483 = vld [vmem:[#allocation4 + $0x210] sm:$0xff]
        %v484 = vld [vmem:[#allocation4 + $0x218] sm:$0xff]
        %v485 = vld [vmem:[#allocation4 + $0x220] sm:$0xff]
        %v486 = vld [vmem:[#allocation4 + $0x228] sm:$0xff]
        %v487 = vld [vmem:[#allocation4 + $0x230] sm:$0xff]
        %v488 = vld [vmem:[#allocation4 + $0x238] sm:$0xff]
        %v489 = vld [vmem:[#allocation4 + $0x240] sm:$0xff]
        %v490 = vld [vmem:[#allocation4 + $0x248] sm:$0xff]
        %v491 = vld [vmem:[#allocation4 + $0x250] sm:$0xff]
        %v492 = vld [vmem:[#allocation4 + $0x258] sm:$0xff]
        %v493 = vld [vmem:[#allocation4 + $0x260] sm:$0xff]
        %v494 = vld [vmem:[#allocation4 + $0x268] sm:$0xff]
        %v495 = vld [vmem:[#allocation4 + $0x270] sm:$0xff]
        %v496 = vld [vmem:[#allocation4 + $0x278] sm:$0xff]
        %v497 = vld [vmem:[#allocation4 + $0x280] sm:$0xff]
        %v498 = vld [vmem:[#allocation4 + $0x288] sm:$0xff]
        %v499 = vld [vmem:[#allocation4 + $0x290] sm:$0xff]
        %v500 = vld [vmem:[#allocation4 + $0x298] sm:$0xff]
        %v501 = vld [vmem:[#allocation4 + $0x2a0] sm:$0xff]
        %v502 = vld [vmem:[#allocation4 + $0x2a8] sm:$0xff]
        %v503 = vld [vmem:[#allocation4 + $0x2b0] sm:$0xff]
        %v504 = vld [vmem:[#allocation4 + $0x2b8] sm:$0xff]
        %v505 = vld [vmem:[#allocation4 + $0x2c0] sm:$0xff]
        %v506 = vld [vmem:[#allocation4 + $0x2c8] sm:$0xff]
        %v507 = vld [vmem:[#allocation4 + $0x2d0] sm:$0xff]
        %v508 = vld [vmem:[#allocation4 + $0x2d8] sm:$0xff]
        %v509 = vld [vmem:[#allocation4 + $0x2e0] sm:$0xff]
        %v510 = vld [vmem:[#allocation4 + $0x2e8] sm:$0xff]
        %v511 = vld [vmem:[#allocation4 + $0x2f0] sm:$0xff]
        %v512 = vld [vmem:[#allocation4 + $0x2f8] sm:$0xff]
        %v513 = vld [vmem:[#allocation4 + $0x300] sm:$0xff]
        %v514 = vld [vmem:[#allocation4 + $0x308] sm:$0xff]
        %v515 = vld [vmem:[#allocation4 + $0x310] sm:$0xff]
        %v516 = vld [vmem:[#allocation4 + $0x318] sm:$0xff]
        %v517 = vld [vmem:[#allocation4 + $0x320] sm:$0xff]
        %v518 = vld [vmem:[#allocation4 + $0x328] sm:$0xff]
        %v519 = vld [vmem:[#allocation4 + $0x330] sm:$0xff]
        %v520 = vld [vmem:[#allocation4 + $0x338] sm:$0xff]
        %v521 = vld [vmem:[#allocation4 + $0x340] sm:$0xff]
        %v522 = vld [vmem:[#allocation4 + $0x348] sm:$0xff]
        %v523 = vld [vmem:[#allocation4 + $0x350] sm:$0xff]
        %v524 = vld [vmem:[#allocation4 + $0x358] sm:$0xff]
        %v525 = vld [vmem:[#allocation4 + $0x360] sm:$0xff]
        %v526 = vld [vmem:[#allocation4 + $0x368] sm:$0xff]
        %v527 = vld [vmem:[#allocation4 + $0x370] sm:$0xff]
        %v528 = vld [vmem:[#allocation4 + $0x378] sm:$0xff]
        %v529 = vld [vmem:[#allocation4 + $0x380] sm:$0xff]
        %v530 = vld [vmem:[#allocation4 + $0x388] sm:$0xff]
        %v531 = vld [vmem:[#allocation4 + $0x390] sm:$0xff]
        %v532 = vld [vmem:[#allocation4 + $0x398] sm:$0xff]
        %v533 = vld [vmem:[#allocation4 + $0x3a0] sm:$0xff]
        %v534 = vld [vmem:[#allocation4 + $0x3a8] sm:$0xff]
        %v535 = vld [vmem:[#allocation4 + $0x3b0] sm:$0xff]
        %v536 = vld [vmem:[#allocation4 + $0x3b8] sm:$0xff]
        %v537 = vld [vmem:[#allocation4 + $0x3c0] sm:$0xff]
        %v538 = vld [vmem:[#allocation4 + $0x3c8] sm:$0xff]
        %v539 = vld [vmem:[#allocation4 + $0x3d0] sm:$0xff]
        %v540 = vld [vmem:[#allocation4 + $0x3d8] sm:$0xff]
        %v541 = vld [vmem:[#allocation4 + $0x3e0] sm:$0xff]
        %v542 = vld [vmem:[#allocation4 + $0x3e8] sm:$0xff]
        %v543 = vld [vmem:[#allocation4 + $0x3f0] sm:$0xff]
        %v544 = vld [vmem:[#allocation4 + $0x3f8] sm:$0xff]
        %v545 = vld [vmem:[#allocation4 + $0x400] sm:$0xff]
        %v546 = vld [vmem:[#allocation4 + $0x408] sm:$0xff]
        %v547 = vld [vmem:[#allocation4 + $0x410] sm:$0xff]
        %v548 = vld [vmem:[#allocation4 + $0x418] sm:$0xff]
        %v549 = vld [vmem:[#allocation4 + $0x420] sm:$0xff]
        %v550 = vld [vmem:[#allocation4 + $0x428] sm:$0xff]
        %v551 = vld [vmem:[#allocation4 + $0x430] sm:$0xff]
        %v552 = vld [vmem:[#allocation4 + $0x438] sm:$0xff]
        %v553 = vld [vmem:[#allocation4 + $0x440] sm:$0xff]
        %v554 = vld [vmem:[#allocation4 + $0x448] sm:$0xff]
        %v555 = vld [vmem:[#allocation4 + $0x450] sm:$0xff]
        %v556 = vld [vmem:[#allocation4 + $0x458] sm:$0xff]
        %v557 = vld [vmem:[#allocation4 + $0x460] sm:$0xff]
        %v558 = vld [vmem:[#allocation4 + $0x468] sm:$0xff]
        %v559 = vld [vmem:[#allocation4 + $0x470] sm:$0xff]
        %v560 = vld [vmem:[#allocation4 + $0x478] sm:$0xff]
        %v561 = vld [vmem:[#allocation4 + $0x480] sm:$0xff]
        %v562 = vld [vmem:[#allocation4 + $0x488] sm:$0xff]
        %v563 = vld [vmem:[#allocation4 + $0x490] sm:$0xff]
        %v564 = vld [vmem:[#allocation4 + $0x498] sm:$0xff]
        %v565 = vld [vmem:[#allocation4 + $0x4a0] sm:$0xff]
        %v566 = vld [vmem:[#allocation4 + $0x4a8] sm:$0xff]
        %v567 = vld [vmem:[#allocation4 + $0x4b0] sm:$0xff]
        %v568 = vld [vmem:[#allocation4 + $0x4b8] sm:$0xff]
        %v569 = vld [vmem:[#allocation4 + $0x4c0] sm:$0xff]
        %v570 = vld [vmem:[#allocation4 + $0x4c8] sm:$0xff]
        %v571 = vld [vmem:[#allocation4 + $0x4d0] sm:$0xff]
        %v572 = vld [vmem:[#allocation4 + $0x4d8] sm:$0xff]
        %v573 = vld [vmem:[#allocation4 + $0x4e0] sm:$0xff]
        %v574 = vld [vmem:[#allocation4 + $0x4e8] sm:$0xff]
        %v575 = vld [vmem:[#allocation4 + $0x4f0] sm:$0xff]
        %v576 = vld [vmem:[#allocation4 + $0x4f8] sm:$0xff]
        %v577 = vld [vmem:[#allocation4 + $0x500] sm:$0xff]
        %v578 = vld [vmem:[#allocation4 + $0x508] sm:$0xff]
        %v579 = vld [vmem:[#allocation4 + $0x510] sm:$0xff]
        %v580 = vld [vmem:[#allocation4 + $0x518] sm:$0xff]
        %v581 = vld [vmem:[#allocation4 + $0x520] sm:$0xff]
        %v582 = vld [vmem:[#allocation4 + $0x528] sm:$0xff]
        %v583 = vld [vmem:[#allocation4 + $0x530] sm:$0xff]
        %v584 = vld [vmem:[#allocation4 + $0x538] sm:$0xff]
        %v585 = vld [vmem:[#allocation4 + $0x540] sm:$0xff]
        %v586 = vld [vmem:[#allocation4 + $0x548] sm:$0xff]
        %v587 = vld [vmem:[#allocation4 + $0x550] sm:$0xff]
        %v588 = vld [vmem:[#allocation4 + $0x558] sm:$0xff]
        %v589 = vld [vmem:[#allocation4 + $0x560] sm:$0xff]
        %v590 = vld [vmem:[#allocation4 + $0x568] sm:$0xff]
        %v591 = vld [vmem:[#allocation4 + $0x570] sm:$0xff]
        %v592 = vld [vmem:[#allocation4 + $0x578] sm:$0xff]
        %v593 = vld [vmem:[#allocation4 + $0x580] sm:$0xff]
        %v594 = vld [vmem:[#allocation4 + $0x588] sm:$0xff]
        %v595 = vld [vmem:[#allocation4 + $0x590] sm:$0xff]
        %v596 = vld [vmem:[#allocation4 + $0x598] sm:$0xff]
        %v597 = vld [vmem:[#allocation4 + $0x5a0] sm:$0xff]
        %v598 = vld [vmem:[#allocation4 + $0x5a8] sm:$0xff]
        %v599 = vld [vmem:[#allocation4 + $0x5b0] sm:$0xff]
        %v600 = vld [vmem:[#allocation4 + $0x5b8] sm:$0xff]
        %v601 = vld [vmem:[#allocation4 + $0x5c0] sm:$0xff]
        %v602 = vld [vmem:[#allocation4 + $0x5c8] sm:$0xff]
        %v603 = vld [vmem:[#allocation4 + $0x5d0] sm:$0xff]
        %v604 = vld [vmem:[#allocation4 + $0x5d8] sm:$0xff]
        %v605 = vld [vmem:[#allocation4 + $0x5e0] sm:$0xff]
        %v606 = vld [vmem:[#allocation4 + $0x5e8] sm:$0xff]
        %v607 = vld [vmem:[#allocation4 + $0x5f0] sm:$0xff]
        %v608 = vld [vmem:[#allocation4 + $0x5f8] sm:$0xff]
        %v609 = vld [vmem:[#allocation4 + $0x600] sm:$0xff]
        %v610 = vld [vmem:[#allocation4 + $0x608] sm:$0xff]
        %v611 = vld [vmem:[#allocation4 + $0x610] sm:$0xff]
        %v612 = vld [vmem:[#allocation4 + $0x618] sm:$0xff]
        %v613 = vld [vmem:[#allocation4 + $0x620] sm:$0xff]
        %v614 = vld [vmem:[#allocation4 + $0x628] sm:$0xff]
        %v615 = vld [vmem:[#allocation4 + $0x630] sm:$0xff]
        %v616 = vld [vmem:[#allocation4 + $0x638] sm:$0xff]
        %v617 = vld [vmem:[#allocation4 + $0x640] sm:$0xff]
        %v618 = vld [vmem:[#allocation4 + $0x648] sm:$0xff]
        %v619 = vld [vmem:[#allocation4 + $0x650] sm:$0xff]
        %v620 = vld [vmem:[#allocation4 + $0x658] sm:$0xff]
        %v621 = vld [vmem:[#allocation4 + $0x660] sm:$0xff]
        %v622 = vld [vmem:[#allocation4 + $0x668] sm:$0xff]
        %v623 = vld [vmem:[#allocation4 + $0x670] sm:$0xff]
        %v624 = vld [vmem:[#allocation4 + $0x678] sm:$0xff]
        %v625 = vld [vmem:[#allocation4 + $0x680] sm:$0xff]
        %v626 = vld [vmem:[#allocation4 + $0x688] sm:$0xff]
        %v627 = vld [vmem:[#allocation4 + $0x690] sm:$0xff]
        %v628 = vld [vmem:[#allocation4 + $0x698] sm:$0xff]
        %v629 = vld [vmem:[#allocation4 + $0x6a0] sm:$0xff]
        %v630 = vld [vmem:[#allocation4 + $0x6a8] sm:$0xff]
        %v631 = vld [vmem:[#allocation4 + $0x6b0] sm:$0xff]
        %v632 = vld [vmem:[#allocation4 + $0x6b8] sm:$0xff]
        %v633 = vld [vmem:[#allocation4 + $0x6c0] sm:$0xff]
        %v634 = vld [vmem:[#allocation4 + $0x6c8] sm:$0xff]
        %v635 = vld [vmem:[#allocation4 + $0x6d0] sm:$0xff]
        %v636 = vld [vmem:[#allocation4 + $0x6d8] sm:$0xff]
        %v637 = vld [vmem:[#allocation4 + $0x6e0] sm:$0xff]
        %v638 = vld [vmem:[#allocation4 + $0x6e8] sm:$0xff]
        %v639 = vld [vmem:[#allocation4 + $0x6f0] sm:$0xff]
        %v640 = vld [vmem:[#allocation4 + $0x6f8] sm:$0xff]
        %v641 = vld [vmem:[#allocation4 + $0x700] sm:$0xff]
        %v642 = vld [vmem:[#allocation4 + $0x708] sm:$0xff]
        %v643 = vld [vmem:[#allocation4 + $0x710] sm:$0xff]
        %v644 = vld [vmem:[#allocation4 + $0x718] sm:$0xff]
        %v645 = vld [vmem:[#allocation4 + $0x720] sm:$0xff]
        %v646 = vld [vmem:[#allocation4 + $0x728] sm:$0xff]
        %v647 = vld [vmem:[#allocation4 + $0x730] sm:$0xff]
        %v648 = vld [vmem:[#allocation4 + $0x738] sm:$0xff]
        %v649 = vld [vmem:[#allocation4 + $0x740] sm:$0xff]
        %v650 = vld [vmem:[#allocation4 + $0x748] sm:$0xff]
        %v651 = vld [vmem:[#allocation4 + $0x750] sm:$0xff]
        %v652 = vld [vmem:[#allocation4 + $0x758] sm:$0xff]
        %v653 = vld [vmem:[#allocation4 + $0x760] sm:$0xff]
        %v654 = vld [vmem:[#allocation4 + $0x768] sm:$0xff]
        %v655 = vld [vmem:[#allocation4 + $0x770] sm:$0xff]
        %v656 = vld [vmem:[#allocation4 + $0x778] sm:$0xff]
        %v657 = vld [vmem:[#allocation4 + $0x780] sm:$0xff]
        %v658 = vld [vmem:[#allocation4 + $0x788] sm:$0xff]
        %v659 = vld [vmem:[#allocation4 + $0x790] sm:$0xff]
        %v660 = vld [vmem:[#allocation4 + $0x798] sm:$0xff]
        %v661 = vld [vmem:[#allocation4 + $0x7a0] sm:$0xff]
        %v662 = vld [vmem:[#allocation4 + $0x7a8] sm:$0xff]
        %v663 = vld [vmem:[#allocation4 + $0x7b0] sm:$0xff]
        %v664 = vld [vmem:[#allocation4 + $0x7b8] sm:$0xff]
        %v665 = vld [vmem:[#allocation4 + $0x7c0] sm:$0xff]
        %v666 = vld [vmem:[#allocation4 + $0x7c8] sm:$0xff]
        %v667 = vld [vmem:[#allocation4 + $0x7d0] sm:$0xff]
        %v668 = vld [vmem:[#allocation4 + $0x7d8] sm:$0xff]
        %v669 = vld [vmem:[#allocation4 + $0x7e0] sm:$0xff]
        %v670 = vld [vmem:[#allocation4 + $0x7e8] sm:$0xff]
        %v671 = vld [vmem:[#allocation4 + $0x7f0] sm:$0xff]
        %v672 = vld [vmem:[#allocation4 + $0x7f8] sm:$0xff]
        %v673 = vld [vmem:[#allocation4 + $0x800] sm:$0xff]
        %v674 = vld [vmem:[#allocation4 + $0x808] sm:$0xff]
        %v675 = vld [vmem:[#allocation4 + $0x810] sm:$0xff]
        %v676 = vld [vmem:[#allocation4 + $0x818] sm:$0xff]
        %v677 = vld [vmem:[#allocation4 + $0x820] sm:$0xff]
        %v678 = vld [vmem:[#allocation4 + $0x828] sm:$0xff]
        %v679 = vld [vmem:[#allocation4 + $0x830] sm:$0xff]
        %v680 = vld [vmem:[#allocation4 + $0x838] sm:$0xff]
        %v681 = vld [vmem:[#allocation4 + $0x840] sm:$0xff]
        %v682 = vld [vmem:[#allocation4 + $0x848] sm:$0xff]
        %v683 = vld [vmem:[#allocation4 + $0x850] sm:$0xff]
        %v684 = vld [vmem:[#allocation4 + $0x858] sm:$0xff]
        %v685 = vld [vmem:[#allocation4 + $0x860] sm:$0xff]
        %v686 = vld [vmem:[#allocation4 + $0x868] sm:$0xff]
        %v687 = vld [vmem:[#allocation4 + $0x870] sm:$0xff]
        %v688 = vld [vmem:[#allocation4 + $0x878] sm:$0xff]
        %v689 = vld [vmem:[#allocation4 + $0x880] sm:$0xff]
        %v690 = vld [vmem:[#allocation4 + $0x888] sm:$0xff]
        %v691 = vld [vmem:[#allocation4 + $0x890] sm:$0xff]
        %v692 = vld [vmem:[#allocation4 + $0x898] sm:$0xff]
        %v693 = vld [vmem:[#allocation4 + $0x8a0] sm:$0xff]
        %v694 = vld [vmem:[#allocation4 + $0x8a8] sm:$0xff]
        %v695 = vld [vmem:[#allocation4 + $0x8b0] sm:$0xff]
        %v696 = vld [vmem:[#allocation4 + $0x8b8] sm:$0xff]
        %v697 = vld [vmem:[#allocation4 + $0x8c0] sm:$0xff]
        %v698 = vld [vmem:[#allocation4 + $0x8c8] sm:$0xff]
        %v699 = vld [vmem:[#allocation4 + $0x8d0] sm:$0xff]
        %v700 = vld [vmem:[#allocation4 + $0x8d8] sm:$0xff]
        %v701 = vld [vmem:[#allocation4 + $0x8e0] sm:$0xff]
        %v702 = vld [vmem:[#allocation4 + $0x8e8] sm:$0xff]
        %v703 = vld [vmem:[#allocation4 + $0x8f0] sm:$0xff]
        %v704 = vld [vmem:[#allocation4 + $0x8f8] sm:$0xff]
        %v705 = vld [vmem:[#allocation4 + $0x900] sm:$0xff]
        %v706 = vld [vmem:[#allocation4 + $0x908] sm:$0xff]
        %v707 = vld [vmem:[#allocation4 + $0x910] sm:$0xff]
        %v708 = vld [vmem:[#allocation4 + $0x918] sm:$0xff]
        %v709 = vld [vmem:[#allocation4 + $0x920] sm:$0xff]
        %v710 = vld [vmem:[#allocation4 + $0x928] sm:$0xff]
        %v711 = vld [vmem:[#allocation4 + $0x930] sm:$0xff]
        %v712 = vld [vmem:[#allocation4 + $0x938] sm:$0xff]
        %v713 = vld [vmem:[#allocation4 + $0x940] sm:$0xff]
        %v714 = vld [vmem:[#allocation4 + $0x948] sm:$0xff]
        %v715 = vld [vmem:[#allocation4 + $0x950] sm:$0xff]
        %v716 = vld [vmem:[#allocation4 + $0x958] sm:$0xff]
        %v717 = vld [vmem:[#allocation4 + $0x960] sm:$0xff]
        %v718 = vld [vmem:[#allocation4 + $0x968] sm:$0xff]
        %v719 = vld [vmem:[#allocation4 + $0x970] sm:$0xff]
        %v720 = vld [vmem:[#allocation4 + $0x978] sm:$0xff]
        %v721 = vld [vmem:[#allocation4 + $0x980] sm:$0xff]
        %v722 = vld [vmem:[#allocation4 + $0x988] sm:$0xff]
        %v723 = vld [vmem:[#allocation4 + $0x990] sm:$0xff]
        %v724 = vld [vmem:[#allocation4 + $0x998] sm:$0xff]
        %v725 = vld [vmem:[#allocation4 + $0x9a0] sm:$0xff]
        %v726 = vld [vmem:[#allocation4 + $0x9a8] sm:$0xff]
        %v727 = vld [vmem:[#allocation4 + $0x9b0] sm:$0xff]
        %v728 = vld [vmem:[#allocation4 + $0x9b8] sm:$0xff]
        %v729 = vld [vmem:[#allocation4 + $0x9c0] sm:$0xff]
        %v730 = vld [vmem:[#allocation4 + $0x9c8] sm:$0xff]
        %v731 = vld [vmem:[#allocation4 + $0x9d0] sm:$0xff]
        %v732 = vld [vmem:[#allocation4 + $0x9d8] sm:$0xff]
        %v733 = vld [vmem:[#allocation4 + $0x9e0] sm:$0xff]
        %v734 = vld [vmem:[#allocation4 + $0x9e8] sm:$0xff]
        %v735 = vld [vmem:[#allocation4 + $0x9f0] sm:$0xff]
        %v736 = vld [vmem:[#allocation4 + $0x9f8] sm:$0xff]
        %v737 = vld [vmem:[#allocation4 + $0xa00] sm:$0xff]
        %v738 = vld [vmem:[#allocation4 + $0xa08] sm:$0xff]
        %v739 = vld [vmem:[#allocation4 + $0xa10] sm:$0xff]
        %v740 = vld [vmem:[#allocation4 + $0xa18] sm:$0xff]
        %v741 = vld [vmem:[#allocation4 + $0xa20] sm:$0xff]
        %v742 = vld [vmem:[#allocation4 + $0xa28] sm:$0xff]
        %v743 = vld [vmem:[#allocation4 + $0xa30] sm:$0xff]
        %v744 = vld [vmem:[#allocation4 + $0xa38] sm:$0xff]
        %v745 = vld [vmem:[#allocation4 + $0xa40] sm:$0xff]
        %v746 = vld [vmem:[#allocation4 + $0xa48] sm:$0xff]
        %v747 = vld [vmem:[#allocation4 + $0xa50] sm:$0xff]
        %v748 = vld [vmem:[#allocation4 + $0xa58] sm:$0xff]
        %v749 = vld [vmem:[#allocation4 + $0xa60] sm:$0xff]
        %v750 = vld [vmem:[#allocation4 + $0xa68] sm:$0xff]
        %v751 = vld [vmem:[#allocation4 + $0xa70] sm:$0xff]
        %v752 = vld [vmem:[#allocation4 + $0xa78] sm:$0xff]
        %v753 = vld [vmem:[#allocation4 + $0xa80] sm:$0xff]
        %v754 = vld [vmem:[#allocation4 + $0xa88] sm:$0xff]
        %v755 = vld [vmem:[#allocation4 + $0xa90] sm:$0xff]
        %v756 = vld [vmem:[#allocation4 + $0xa98] sm:$0xff]
        %v757 = vld [vmem:[#allocation4 + $0xaa0] sm:$0xff]
        %v758 = vld [vmem:[#allocation4 + $0xaa8] sm:$0xff]
        %v759 = vld [vmem:[#allocation4 + $0xab0] sm:$0xff]
        %v760 = vld [vmem:[#allocation4 + $0xab8] sm:$0xff]
        %v761 = vld [vmem:[#allocation4 + $0xac0] sm:$0xff]
        %v762 = vld [vmem:[#allocation4 + $0xac8] sm:$0xff]
        %v763 = vld [vmem:[#allocation4 + $0xad0] sm:$0xff]
        %v764 = vld [vmem:[#allocation4 + $0xad8] sm:$0xff]
        %v765 = vld [vmem:[#allocation4 + $0xae0] sm:$0xff]
        %v766 = vld [vmem:[#allocation4 + $0xae8] sm:$0xff]
        %v767 = vld [vmem:[#allocation4 + $0xaf0] sm:$0xff]
        %v768 = vld [vmem:[#allocation6] sm:$0x3f]
        %vm769 = vcmask 48128
        %v771 = vsel %vm769, %v416, 0
        %vm773 = vcmask 1045504
        %v775 = vsel %vm773, %v768, 0
        %777 = vmatprep.subr.mxu0 0.0
        %778 = vmatpush1.msra.mxu0 0.0
        %779 = vmatprep.subr.mxu0 0.0
        %780 = vmatpush1.msra.mxu0 0.0
        %781 = vmatprep.subr.mxu0 0.0
        %782 = vmatpush1.msra.mxu0 0.0
        %783 = vmatprep.subr.mxu0 0.0
        %784 = vmatpush1.msra.mxu0 0.0
        %785 = vmatprep.subr.mxu0 0.0
        %786 = vmatpush1.msra.mxu0 0.0
        %787 = vmatprep.subr.mxu0 0.0
        %788 = vmatpush1.msra.mxu0 0.0
        %789 = vmatprep.subr.mxu0 0.0
        %790 = vmatpush1.msra.mxu0 0.0
        %791 = vmatprep.subr.mxu0 0.0
        %792 = vmatpush1.msra.mxu0 0.0
        %793 = vmatprep.subr.mxu0 0.0
        %794 = vmatpush1.msra.mxu0 0.0
        %795 = vmatprep.subr.mxu0 0.0
        %796 = vmatpush1.msra.mxu0 0.0
        %797 = vmatprep.subr.mxu0 0.0
        %798 = vmatpush1.msra.mxu0 0.0
        %799 = vmatprep.subr.mxu0 0.0
        %800 = vmatpush1.msra.mxu0 0.0
        %801 = vmatprep.subr.mxu0 0.0
        %802 = vmatpush1.msra.mxu0 0.0
        %803 = vmatprep.subr.mxu0 0.0
        %804 = vmatpush1.msra.mxu0 0.0
        %805 = vmatprep.subr.mxu0 0.0
        %806 = vmatpush1.msra.mxu0 0.0
        %807 = vmatprep.subr.mxu0 0.0
        %808 = vmatpush1.msra.mxu0 %v775
        %809 = vmatprep.subr.mxu0 0.0
        %810 = vmatpush2.msra.mxu0 0.0
        %811 = vmatprep.subr.mxu0 0.0
        %812 = vmatpush2.msra.mxu0 0.0
        %813 = vmatprep.subr.mxu0 0.0
        %814 = vmatpush2.msra.mxu0 0.0
        %815 = vmatprep.subr.mxu0 0.0
        %816 = vmatpush2.msra.mxu0 0.0
        %817 = vmatprep.subr.mxu0 0.0
        %818 = vmatpush2.msra.mxu0 0.0
        %819 = vmatprep.subr.mxu0 0.0
        %820 = vmatpush2.msra.mxu0 0.0
        %821 = vmatprep.subr.mxu0 0.0
        %822 = vmatpush2.msra.mxu0 0.0
        %823 = vmatprep.subr.mxu0 0.0
        %824 = vmatpush2.msra.mxu0 0.0
        %825 = vmatprep.subr.mxu0 0.0
        %826 = vmatpush2.msra.mxu0 0.0
        %827 = vmatprep.subr.mxu0 0.0
        %828 = vmatpush2.msra.mxu0 0.0
        %829 = vmatprep.subr.mxu0 0.0
        %830 = vmatpush2.msra.mxu0 0.0
        %831 = vmatprep.subr.mxu0 0.0
        %832 = vmatpush2.msra.mxu0 0.0
        %833 = vmatprep.subr.mxu0 0.0
        %834 = vmatpush2.msra.mxu0 0.0
        %835 = vmatprep.subr.mxu0 0.0
        %836 = vmatpush2.msra.mxu0 0.0
        %837 = vmatprep.subr.mxu0 0.0
        %838 = vmatpush2.msra.mxu0 0.0
        %839 = vmatprep.subr.mxu0 0.0
        %840 = vmatpush2.msra.mxu0 0.0
        %841 = vmatprep.mubr.f32.mxu0 0.0
        %842 = vmatmul.mubr.f32.gmra.mxu0 %v771
        %v843 = vpop.f32.mrf.mxu0
        %v844 = vadd.f32 0.0, %v843
        %v845 = vpop.f32.mrf.mxu0
        %846 = vdwg.mxu0
        %vm847 = vcmask 982016
        %v849 = vsel %vm847, %v415, 0
        %851 = vmatprep.subr.mxu0 0.0
        %852 = vmatpush1.msra.mxu0 %v432
        %853 = vmatprep.subr.mxu0 0.0
        %854 = vmatpush1.msra.mxu0 %v431
        %855 = vmatprep.subr.mxu0 0.0
        %856 = vmatpush1.msra.mxu0 %v430
        %857 = vmatprep.subr.mxu0 0.0
        %858 = vmatpush1.msra.mxu0 %v429
        %859 = vmatprep.subr.mxu0 0.0
        %860 = vmatpush1.msra.mxu0 %v428
        %861 = vmatprep.subr.mxu0 0.0
        %862 = vmatpush1.msra.mxu0 %v427
        %863 = vmatprep.subr.mxu0 0.0
        %864 = vmatpush1.msra.mxu0 %v426
        %865 = vmatprep.subr.mxu0 0.0
        %866 = vmatpush1.msra.mxu0 %v425
        %867 = vmatprep.subr.mxu0 0.0
        %868 = vmatpush1.msra.mxu0 %v424
        %869 = vmatprep.subr.mxu0 0.0
        %870 = vmatpush1.msra.mxu0 %v423
        %871 = vmatprep.subr.mxu0 0.0
        %872 = vmatpush1.msra.mxu0 %v422
        %873 = vmatprep.subr.mxu0 0.0
        %874 = vmatpush1.msra.mxu0 %v421
        %875 = vmatprep.subr.mxu0 0.0
        %876 = vmatpush1.msra.mxu0 %v420
        %877 = vmatprep.subr.mxu0 0.0
        %878 = vmatpush1.msra.mxu0 %v419
        %879 = vmatprep.subr.mxu0 0.0
        %880 = vmatpush1.msra.mxu0 %v418
        %881 = vmatprep.subr.mxu0 0.0
        %882 = vmatpush1.msra.mxu0 %v417
        %883 = vmatprep.subr.mxu0 0.0
        %884 = vmatpush2.msra.mxu0 %v448
        %885 = vmatprep.subr.mxu0 0.0
        %886 = vmatpush2.msra.mxu0 %v447
        %887 = vmatprep.subr.mxu0 0.0
        %888 = vmatpush2.msra.mxu0 %v446
        %889 = vmatprep.subr.mxu0 0.0
        %890 = vmatpush2.msra.mxu0 %v445
        %891 = vmatprep.subr.mxu0 0.0
        %892 = vmatpush2.msra.mxu0 %v444
        %893 = vmatprep.subr.mxu0 0.0
        %894 = vmatpush2.msra.mxu0 %v443
        %895 = vmatprep.subr.mxu0 0.0
        %896 = vmatpush2.msra.mxu0 %v442
        %897 = vmatprep.subr.mxu0 0.0
        %898 = vmatpush2.msra.mxu0 %v441
        %899 = vmatprep.subr.mxu0 0.0
        %900 = vmatpush2.msra.mxu0 %v440
        %901 = vmatprep.subr.mxu0 0.0
        %902 = vmatpush2.msra.mxu0 %v439
        %903 = vmatprep.subr.mxu0 0.0
        %904 = vmatpush2.msra.mxu0 %v438
        %905 = vmatprep.subr.mxu0 0.0
        %906 = vmatpush2.msra.mxu0 %v437
        %907 = vmatprep.subr.mxu0 0.0
        %908 = vmatpush2.msra.mxu0 %v436
        %909 = vmatprep.subr.mxu0 0.0
        %910 = vmatpush2.msra.mxu0 %v435
        %911 = vmatprep.subr.mxu0 0.0
        %912 = vmatpush2.msra.mxu0 %v434
        %913 = vmatprep.subr.mxu0 0.0
        %914 = vmatpush2.msra.mxu0 %v433
        %915 = vmatprep.mubr.f32.mxu0 %v395
        %916 = vmatmul.mubr.f32.gmra.mxu0 %v394
        %v917 = vpop.f32.mrf.mxu0
        %v918 = vadd.f32 %v844, %v917
        %v919 = vpop.f32.mrf.mxu0
        %920 = vdwg.mxu0
        %921 = vmatprep.subr.mxu0 0.0
        %922 = vmatpush1.msra.mxu0 %v464
        %923 = vmatprep.subr.mxu0 0.0
        %924 = vmatpush1.msra.mxu0 %v463
        %925 = vmatprep.subr.mxu0 0.0
        %926 = vmatpush1.msra.mxu0 %v462
        %927 = vmatprep.subr.mxu0 0.0
        %928 = vmatpush1.msra.mxu0 %v461
        %929 = vmatprep.subr.mxu0 0.0
        %930 = vmatpush1.msra.mxu0 %v460
        %931 = vmatprep.subr.mxu0 0.0
        %932 = vmatpush1.msra.mxu0 %v459
        %933 = vmatprep.subr.mxu0 0.0
        %934 = vmatpush1.msra.mxu0 %v458
        %935 = vmatprep.subr.mxu0 0.0
        %936 = vmatpush1.msra.mxu0 %v457
        %937 = vmatprep.subr.mxu0 0.0
        %938 = vmatpush1.msra.mxu0 %v456
        %939 = vmatprep.subr.mxu0 0.0
        %940 = vmatpush1.msra.mxu0 %v455
        %941 = vmatprep.subr.mxu0 0.0
        %942 = vmatpush1.msra.mxu0 %v454
        %943 = vmatprep.subr.mxu0 0.0
        %944 = vmatpush1.msra.mxu0 %v453
        %945 = vmatprep.subr.mxu0 0.0
        %946 = vmatpush1.msra.mxu0 %v452
        %947 = vmatprep.subr.mxu0 0.0
        %948 = vmatpush1.msra.mxu0 %v451
        %949 = vmatprep.subr.mxu0 0.0
        %950 = vmatpush1.msra.mxu0 %v450
        %951 = vmatprep.subr.mxu0 0.0
        %952 = vmatpush1.msra.mxu0 %v449
        %953 = vmatprep.subr.mxu0 0.0
        %954 = vmatpush2.msra.mxu0 %v480
        %955 = vmatprep.subr.mxu0 0.0
        %956 = vmatpush2.msra.mxu0 %v479
        %957 = vmatprep.subr.mxu0 0.0
        %958 = vmatpush2.msra.mxu0 %v478
        %959 = vmatprep.subr.mxu0 0.0
        %960 = vmatpush2.msra.mxu0 %v477
        %961 = vmatprep.subr.mxu0 0.0
        %962 = vmatpush2.msra.mxu0 %v476
        %963 = vmatprep.subr.mxu0 0.0
        %964 = vmatpush2.msra.mxu0 %v475
        %965 = vmatprep.subr.mxu0 0.0
        %966 = vmatpush2.msra.mxu0 %v474
        %967 = vmatprep.subr.mxu0 0.0
        %968 = vmatpush2.msra.mxu0 %v473
        %969 = vmatprep.subr.mxu0 0.0
        %970 = vmatpush2.msra.mxu0 %v472
        %971 = vmatprep.subr.mxu0 0.0
        %972 = vmatpush2.msra.mxu0 %v471
        %973 = vmatprep.subr.mxu0 0.0
        %974 = vmatpush2.msra.mxu0 %v470
        %975 = vmatprep.subr.mxu0 0.0
        %976 = vmatpush2.msra.mxu0 %v469
        %977 = vmatprep.subr.mxu0 0.0
        %978 = vmatpush2.msra.mxu0 %v468
        %979 = vmatprep.subr.mxu0 0.0
        %980 = vmatpush2.msra.mxu0 %v467
        %981 = vmatprep.subr.mxu0 0.0
        %982 = vmatpush2.msra.mxu0 %v466
        %983 = vmatprep.subr.mxu0 0.0
        %984 = vmatpush2.msra.mxu0 %v465
        %985 = vmatprep.mubr.f32.mxu0 %v397
        %986 = vmatmul.mubr.f32.gmra.mxu0 %v396
        %v987 = vpop.f32.mrf.mxu0
        %v988 = vadd.f32 %v918, %v987
        %v989 = vpop.f32.mrf.mxu0
        %990 = vdwg.mxu0
        %991 = vmatprep.subr.mxu0 0.0
        %992 = vmatpush1.msra.mxu0 %v496
        %993 = vmatprep.subr.mxu0 0.0
        %994 = vmatpush1.msra.mxu0 %v495
        %995 = vmatprep.subr.mxu0 0.0
        %996 = vmatpush1.msra.mxu0 %v494
        %997 = vmatprep.subr.mxu0 0.0
        %998 = vmatpush1.msra.mxu0 %v493
        %999 = vmatprep.subr.mxu0 0.0
        %1000 = vmatpush1.msra.mxu0 %v492
        %1001 = vmatprep.subr.mxu0 0.0
        %1002 = vmatpush1.msra.mxu0 %v491
        %1003 = vmatprep.subr.mxu0 0.0
        %1004 = vmatpush1.msra.mxu0 %v490
        %1005 = vmatprep.subr.mxu0 0.0
        %1006 = vmatpush1.msra.mxu0 %v489
        %1007 = vmatprep.subr.mxu0 0.0
        %1008 = vmatpush1.msra.mxu0 %v488
        %1009 = vmatprep.subr.mxu0 0.0
        %1010 = vmatpush1.msra.mxu0 %v487
        %1011 = vmatprep.subr.mxu0 0.0
        %1012 = vmatpush1.msra.mxu0 %v486
        %1013 = vmatprep.subr.mxu0 0.0
        %1014 = vmatpush1.msra.mxu0 %v485
        %1015 = vmatprep.subr.mxu0 0.0
        %1016 = vmatpush1.msra.mxu0 %v484
        %1017 = vmatprep.subr.mxu0 0.0
        %1018 = vmatpush1.msra.mxu0 %v483
        %1019 = vmatprep.subr.mxu0 0.0
        %1020 = vmatpush1.msra.mxu0 %v482
        %1021 = vmatprep.subr.mxu0 0.0
        %1022 = vmatpush1.msra.mxu0 %v481
        %1023 = vmatprep.subr.mxu0 0.0
        %1024 = vmatpush2.msra.mxu0 %v512
        %1025 = vmatprep.subr.mxu0 0.0
        %1026 = vmatpush2.msra.mxu0 %v511
        %1027 = vmatprep.subr.mxu0 0.0
        %1028 = vmatpush2.msra.mxu0 %v510
        %1029 = vmatprep.subr.mxu0 0.0
        %1030 = vmatpush2.msra.mxu0 %v509
        %1031 = vmatprep.subr.mxu0 0.0
        %1032 = vmatpush2.msra.mxu0 %v508
        %1033 = vmatprep.subr.mxu0 0.0
        %1034 = vmatpush2.msra.mxu0 %v507
        %1035 = vmatprep.subr.mxu0 0.0
        %1036 = vmatpush2.msra.mxu0 %v506
        %1037 = vmatprep.subr.mxu0 0.0
        %1038 = vmatpush2.msra.mxu0 %v505
        %1039 = vmatprep.subr.mxu0 0.0
        %1040 = vmatpush2.msra.mxu0 %v504
        %1041 = vmatprep.subr.mxu0 0.0
        %1042 = vmatpush2.msra.mxu0 %v503
        %1043 = vmatprep.subr.mxu0 0.0
        %1044 = vmatpush2.msra.mxu0 %v502
        %1045 = vmatprep.subr.mxu0 0.0
        %1046 = vmatpush2.msra.mxu0 %v501
        %1047 = vmatprep.subr.mxu0 0.0
        %1048 = vmatpush2.msra.mxu0 %v500
        %1049 = vmatprep.subr.mxu0 0.0
        %1050 = vmatpush2.msra.mxu0 %v499
        %1051 = vmatprep.subr.mxu0 0.0
        %1052 = vmatpush2.msra.mxu0 %v498
        %1053 = vmatprep.subr.mxu0 0.0
        %1054 = vmatpush2.msra.mxu0 %v497
        %1055 = vmatprep.mubr.f32.mxu0 %v399
        %1056 = vmatmul.mubr.f32.gmra.mxu0 %v398
        %v1057 = vpop.f32.mrf.mxu0
        %v1058 = vadd.f32 %v988, %v1057
        %v1059 = vpop.f32.mrf.mxu0
        %1060 = vdwg.mxu0
        %1061 = vmatprep.subr.mxu0 0.0
        %1062 = vmatpush1.msra.mxu0 %v528
        %1063 = vmatprep.subr.mxu0 0.0
        %1064 = vmatpush1.msra.mxu0 %v527
        %1065 = vmatprep.subr.mxu0 0.0
        %1066 = vmatpush1.msra.mxu0 %v526
        %1067 = vmatprep.subr.mxu0 0.0
        %1068 = vmatpush1.msra.mxu0 %v525
        %1069 = vmatprep.subr.mxu0 0.0
        %1070 = vmatpush1.msra.mxu0 %v524
        %1071 = vmatprep.subr.mxu0 0.0
        %1072 = vmatpush1.msra.mxu0 %v523
        %1073 = vmatprep.subr.mxu0 0.0
        %1074 = vmatpush1.msra.mxu0 %v522
        %1075 = vmatprep.subr.mxu0 0.0
        %1076 = vmatpush1.msra.mxu0 %v521
        %1077 = vmatprep.subr.mxu0 0.0
        %1078 = vmatpush1.msra.mxu0 %v520
        %1079 = vmatprep.subr.mxu0 0.0
        %1080 = vmatpush1.msra.mxu0 %v519
        %1081 = vmatprep.subr.mxu0 0.0
        %1082 = vmatpush1.msra.mxu0 %v518
        %1083 = vmatprep.subr.mxu0 0.0
        %1084 = vmatpush1.msra.mxu0 %v517
        %1085 = vmatprep.subr.mxu0 0.0
        %1086 = vmatpush1.msra.mxu0 %v516
        %1087 = vmatprep.subr.mxu0 0.0
        %1088 = vmatpush1.msra.mxu0 %v515
        %1089 = vmatprep.subr.mxu0 0.0
        %1090 = vmatpush1.msra.mxu0 %v514
        %1091 = vmatprep.subr.mxu0 0.0
        %1092 = vmatpush1.msra.mxu0 %v513
        %1093 = vmatprep.subr.mxu0 0.0
        %1094 = vmatpush2.msra.mxu0 %v544
        %1095 = vmatprep.subr.mxu0 0.0
        %1096 = vmatpush2.msra.mxu0 %v543
        %1097 = vmatprep.subr.mxu0 0.0
        %1098 = vmatpush2.msra.mxu0 %v542
        %1099 = vmatprep.subr.mxu0 0.0
        %1100 = vmatpush2.msra.mxu0 %v541
        %1101 = vmatprep.subr.mxu0 0.0
        %1102 = vmatpush2.msra.mxu0 %v540
        %1103 = vmatprep.subr.mxu0 0.0
        %1104 = vmatpush2.msra.mxu0 %v539
        %1105 = vmatprep.subr.mxu0 0.0
        %1106 = vmatpush2.msra.mxu0 %v538
        %1107 = vmatprep.subr.mxu0 0.0
        %1108 = vmatpush2.msra.mxu0 %v537
        %1109 = vmatprep.subr.mxu0 0.0
        %1110 = vmatpush2.msra.mxu0 %v536
        %1111 = vmatprep.subr.mxu0 0.0
        %1112 = vmatpush2.msra.mxu0 %v535
        %1113 = vmatprep.subr.mxu0 0.0
        %1114 = vmatpush2.msra.mxu0 %v534
        %1115 = vmatprep.subr.mxu0 0.0
        %1116 = vmatpush2.msra.mxu0 %v533
        %1117 = vmatprep.subr.mxu0 0.0
        %1118 = vmatpush2.msra.mxu0 %v532
        %1119 = vmatprep.subr.mxu0 0.0
        %1120 = vmatpush2.msra.mxu0 %v531
        %1121 = vmatprep.subr.mxu0 0.0
        %1122 = vmatpush2.msra.mxu0 %v530
        %1123 = vmatprep.subr.mxu0 0.0
        %1124 = vmatpush2.msra.mxu0 %v529
        %1125 = vmatprep.mubr.f32.mxu0 %v401
        %1126 = vmatmul.mubr.f32.gmra.mxu0 %v400
        %v1127 = vpop.f32.mrf.mxu0
        %v1128 = vadd.f32 %v1058, %v1127
        %v1129 = vpop.f32.mrf.mxu0
        %1130 = vdwg.mxu0
        %1131 = vmatprep.subr.mxu0 0.0
        %1132 = vmatpush1.msra.mxu0 %v560
        %1133 = vmatprep.subr.mxu0 0.0
        %1134 = vmatpush1.msra.mxu0 %v559
        %1135 = vmatprep.subr.mxu0 0.0
        %1136 = vmatpush1.msra.mxu0 %v558
        %1137 = vmatprep.subr.mxu0 0.0
        %1138 = vmatpush1.msra.mxu0 %v557
        %1139 = vmatprep.subr.mxu0 0.0
        %1140 = vmatpush1.msra.mxu0 %v556
        %1141 = vmatprep.subr.mxu0 0.0
        %1142 = vmatpush1.msra.mxu0 %v555
        %1143 = vmatprep.subr.mxu0 0.0
        %1144 = vmatpush1.msra.mxu0 %v554
        %1145 = vmatprep.subr.mxu0 0.0
        %1146 = vmatpush1.msra.mxu0 %v553
        %1147 = vmatprep.subr.mxu0 0.0
        %1148 = vmatpush1.msra.mxu0 %v552
        %1149 = vmatprep.subr.mxu0 0.0
        %1150 = vmatpush1.msra.mxu0 %v551
        %1151 = vmatprep.subr.mxu0 0.0
        %1152 = vmatpush1.msra.mxu0 %v550
        %1153 = vmatprep.subr.mxu0 0.0
        %1154 = vmatpush1.msra.mxu0 %v549
        %1155 = vmatprep.subr.mxu0 0.0
        %1156 = vmatpush1.msra.mxu0 %v548
        %1157 = vmatprep.subr.mxu0 0.0
        %1158 = vmatpush1.msra.mxu0 %v547
        %1159 = vmatprep.subr.mxu0 0.0
        %1160 = vmatpush1.msra.mxu0 %v546
        %1161 = vmatprep.subr.mxu0 0.0
        %1162 = vmatpush1.msra.mxu0 %v545
        %1163 = vmatprep.subr.mxu0 0.0
        %1164 = vmatpush2.msra.mxu0 %v576
        %1165 = vmatprep.subr.mxu0 0.0
        %1166 = vmatpush2.msra.mxu0 %v575
        %1167 = vmatprep.subr.mxu0 0.0
        %1168 = vmatpush2.msra.mxu0 %v574
        %1169 = vmatprep.subr.mxu0 0.0
        %1170 = vmatpush2.msra.mxu0 %v573
        %1171 = vmatprep.subr.mxu0 0.0
        %1172 = vmatpush2.msra.mxu0 %v572
        %1173 = vmatprep.subr.mxu0 0.0
        %1174 = vmatpush2.msra.mxu0 %v571
        %1175 = vmatprep.subr.mxu0 0.0
        %1176 = vmatpush2.msra.mxu0 %v570
        %1177 = vmatprep.subr.mxu0 0.0
        %1178 = vmatpush2.msra.mxu0 %v569
        %1179 = vmatprep.subr.mxu0 0.0
        %1180 = vmatpush2.msra.mxu0 %v568
        %1181 = vmatprep.subr.mxu0 0.0
        %1182 = vmatpush2.msra.mxu0 %v567
        %1183 = vmatprep.subr.mxu0 0.0
        %1184 = vmatpush2.msra.mxu0 %v566
        %1185 = vmatprep.subr.mxu0 0.0
        %1186 = vmatpush2.msra.mxu0 %v565
        %1187 = vmatprep.subr.mxu0 0.0
        %1188 = vmatpush2.msra.mxu0 %v564
        %1189 = vmatprep.subr.mxu0 0.0
        %1190 = vmatpush2.msra.mxu0 %v563
        %1191 = vmatprep.subr.mxu0 0.0
        %1192 = vmatpush2.msra.mxu0 %v562
        %1193 = vmatprep.subr.mxu0 0.0
        %1194 = vmatpush2.msra.mxu0 %v561
        %1195 = vmatprep.mubr.f32.mxu0 %v403
        %1196 = vmatmul.mubr.f32.gmra.mxu0 %v402
        %v1197 = vpop.f32.mrf.mxu0
        %v1198 = vadd.f32 %v1128, %v1197
        %v1199 = vpop.f32.mrf.mxu0
        %1200 = vdwg.mxu0
        %1201 = vmatprep.subr.mxu0 0.0
        %1202 = vmatpush1.msra.mxu0 %v592
        %1203 = vmatprep.subr.mxu0 0.0
        %1204 = vmatpush1.msra.mxu0 %v591
        %1205 = vmatprep.subr.mxu0 0.0
        %1206 = vmatpush1.msra.mxu0 %v590
        %1207 = vmatprep.subr.mxu0 0.0
        %1208 = vmatpush1.msra.mxu0 %v589
        %1209 = vmatprep.subr.mxu0 0.0
        %1210 = vmatpush1.msra.mxu0 %v588
        %1211 = vmatprep.subr.mxu0 0.0
        %1212 = vmatpush1.msra.mxu0 %v587
        %1213 = vmatprep.subr.mxu0 0.0
        %1214 = vmatpush1.msra.mxu0 %v586
        %1215 = vmatprep.subr.mxu0 0.0
        %1216 = vmatpush1.msra.mxu0 %v585
        %1217 = vmatprep.subr.mxu0 0.0
        %1218 = vmatpush1.msra.mxu0 %v584
        %1219 = vmatprep.subr.mxu0 0.0
        %1220 = vmatpush1.msra.mxu0 %v583
        %1221 = vmatprep.subr.mxu0 0.0
        %1222 = vmatpush1.msra.mxu0 %v582
        %1223 = vmatprep.subr.mxu0 0.0
        %1224 = vmatpush1.msra.mxu0 %v581
        %1225 = vmatprep.subr.mxu0 0.0
        %1226 = vmatpush1.msra.mxu0 %v580
        %1227 = vmatprep.subr.mxu0 0.0
        %1228 = vmatpush1.msra.mxu0 %v579
        %1229 = vmatprep.subr.mxu0 0.0
        %1230 = vmatpush1.msra.mxu0 %v578
        %1231 = vmatprep.subr.mxu0 0.0
        %1232 = vmatpush1.msra.mxu0 %v577
        %1233 = vmatprep.subr.mxu0 0.0
        %1234 = vmatpush2.msra.mxu0 %v608
        %1235 = vmatprep.subr.mxu0 0.0
        %1236 = vmatpush2.msra.mxu0 %v607
        %1237 = vmatprep.subr.mxu0 0.0
        %1238 = vmatpush2.msra.mxu0 %v606
        %1239 = vmatprep.subr.mxu0 0.0
        %1240 = vmatpush2.msra.mxu0 %v605
        %1241 = vmatprep.subr.mxu0 0.0
        %1242 = vmatpush2.msra.mxu0 %v604
        %1243 = vmatprep.subr.mxu0 0.0
        %1244 = vmatpush2.msra.mxu0 %v603
        %1245 = vmatprep.subr.mxu0 0.0
        %1246 = vmatpush2.msra.mxu0 %v602
        %1247 = vmatprep.subr.mxu0 0.0
        %1248 = vmatpush2.msra.mxu0 %v601
        %1249 = vmatprep.subr.mxu0 0.0
        %1250 = vmatpush2.msra.mxu0 %v600
        %1251 = vmatprep.subr.mxu0 0.0
        %1252 = vmatpush2.msra.mxu0 %v599
        %1253 = vmatprep.subr.mxu0 0.0
        %1254 = vmatpush2.msra.mxu0 %v598
        %1255 = vmatprep.subr.mxu0 0.0
        %1256 = vmatpush2.msra.mxu0 %v597
        %1257 = vmatprep.subr.mxu0 0.0
        %1258 = vmatpush2.msra.mxu0 %v596
        %1259 = vmatprep.subr.mxu0 0.0
        %1260 = vmatpush2.msra.mxu0 %v595
        %1261 = vmatprep.subr.mxu0 0.0
        %1262 = vmatpush2.msra.mxu0 %v594
        %1263 = vmatprep.subr.mxu0 0.0
        %1264 = vmatpush2.msra.mxu0 %v593
        %1265 = vmatprep.mubr.f32.mxu0 %v405
        %1266 = vmatmul.mubr.f32.gmra.mxu0 %v404
        %v1267 = vpop.f32.mrf.mxu0
        %v1268 = vadd.f32 %v1198, %v1267
        %v1269 = vpop.f32.mrf.mxu0
        %1270 = vdwg.mxu0
        %1271 = vmatprep.subr.mxu0 0.0
        %1272 = vmatpush1.msra.mxu0 %v624
        %1273 = vmatprep.subr.mxu0 0.0
        %1274 = vmatpush1.msra.mxu0 %v623
        %1275 = vmatprep.subr.mxu0 0.0
        %1276 = vmatpush1.msra.mxu0 %v622
        %1277 = vmatprep.subr.mxu0 0.0
        %1278 = vmatpush1.msra.mxu0 %v621
        %1279 = vmatprep.subr.mxu0 0.0
        %1280 = vmatpush1.msra.mxu0 %v620
        %1281 = vmatprep.subr.mxu0 0.0
        %1282 = vmatpush1.msra.mxu0 %v619
        %1283 = vmatprep.subr.mxu0 0.0
        %1284 = vmatpush1.msra.mxu0 %v618
        %1285 = vmatprep.subr.mxu0 0.0
        %1286 = vmatpush1.msra.mxu0 %v617
        %1287 = vmatprep.subr.mxu0 0.0
        %1288 = vmatpush1.msra.mxu0 %v616
        %1289 = vmatprep.subr.mxu0 0.0
        %1290 = vmatpush1.msra.mxu0 %v615
        %1291 = vmatprep.subr.mxu0 0.0
        %1292 = vmatpush1.msra.mxu0 %v614
        %1293 = vmatprep.subr.mxu0 0.0
        %1294 = vmatpush1.msra.mxu0 %v613
        %1295 = vmatprep.subr.mxu0 0.0
        %1296 = vmatpush1.msra.mxu0 %v612
        %1297 = vmatprep.subr.mxu0 0.0
        %1298 = vmatpush1.msra.mxu0 %v611
        %1299 = vmatprep.subr.mxu0 0.0
        %1300 = vmatpush1.msra.mxu0 %v610
        %1301 = vmatprep.subr.mxu0 0.0
        %1302 = vmatpush1.msra.mxu0 %v609
        %1303 = vmatprep.subr.mxu0 0.0
        %1304 = vmatpush2.msra.mxu0 %v640
        %1305 = vmatprep.subr.mxu0 0.0
        %1306 = vmatpush2.msra.mxu0 %v639
        %1307 = vmatprep.subr.mxu0 0.0
        %1308 = vmatpush2.msra.mxu0 %v638
        %1309 = vmatprep.subr.mxu0 0.0
        %1310 = vmatpush2.msra.mxu0 %v637
        %1311 = vmatprep.subr.mxu0 0.0
        %1312 = vmatpush2.msra.mxu0 %v636
        %1313 = vmatprep.subr.mxu0 0.0
        %1314 = vmatpush2.msra.mxu0 %v635
        %1315 = vmatprep.subr.mxu0 0.0
        %1316 = vmatpush2.msra.mxu0 %v634
        %1317 = vmatprep.subr.mxu0 0.0
        %1318 = vmatpush2.msra.mxu0 %v633
        %1319 = vmatprep.subr.mxu0 0.0
        %1320 = vmatpush2.msra.mxu0 %v632
        %1321 = vmatprep.subr.mxu0 0.0
        %1322 = vmatpush2.msra.mxu0 %v631
        %1323 = vmatprep.subr.mxu0 0.0
        %1324 = vmatpush2.msra.mxu0 %v630
        %1325 = vmatprep.subr.mxu0 0.0
        %1326 = vmatpush2.msra.mxu0 %v629
        %1327 = vmatprep.subr.mxu0 0.0
        %1328 = vmatpush2.msra.mxu0 %v628
        %1329 = vmatprep.subr.mxu0 0.0
        %1330 = vmatpush2.msra.mxu0 %v627
        %1331 = vmatprep.subr.mxu0 0.0
        %1332 = vmatpush2.msra.mxu0 %v626
        %1333 = vmatprep.subr.mxu0 0.0
        %1334 = vmatpush2.msra.mxu0 %v625
        %1335 = vmatprep.mubr.f32.mxu0 %v407
        %1336 = vmatmul.mubr.f32.gmra.mxu0 %v406
        %v1337 = vpop.f32.mrf.mxu0
        %v1338 = vadd.f32 %v1268, %v1337
        %v1339 = vpop.f32.mrf.mxu0
        %1340 = vdwg.mxu0
        %1341 = vmatprep.subr.mxu0 0.0
        %1342 = vmatpush1.msra.mxu0 %v656
        %1343 = vmatprep.subr.mxu0 0.0
        %1344 = vmatpush1.msra.mxu0 %v655
        %1345 = vmatprep.subr.mxu0 0.0
        %1346 = vmatpush1.msra.mxu0 %v654
        %1347 = vmatprep.subr.mxu0 0.0
        %1348 = vmatpush1.msra.mxu0 %v653
        %1349 = vmatprep.subr.mxu0 0.0
        %1350 = vmatpush1.msra.mxu0 %v652
        %1351 = vmatprep.subr.mxu0 0.0
        %1352 = vmatpush1.msra.mxu0 %v651
        %1353 = vmatprep.subr.mxu0 0.0
        %1354 = vmatpush1.msra.mxu0 %v650
        %1355 = vmatprep.subr.mxu0 0.0
        %1356 = vmatpush1.msra.mxu0 %v649
        %1357 = vmatprep.subr.mxu0 0.0
        %1358 = vmatpush1.msra.mxu0 %v648
        %1359 = vmatprep.subr.mxu0 0.0
        %1360 = vmatpush1.msra.mxu0 %v647
        %1361 = vmatprep.subr.mxu0 0.0
        %1362 = vmatpush1.msra.mxu0 %v646
        %1363 = vmatprep.subr.mxu0 0.0
        %1364 = vmatpush1.msra.mxu0 %v645
        %1365 = vmatprep.subr.mxu0 0.0
        %1366 = vmatpush1.msra.mxu0 %v644
        %1367 = vmatprep.subr.mxu0 0.0
        %1368 = vmatpush1.msra.mxu0 %v643
        %1369 = vmatprep.subr.mxu0 0.0
        %1370 = vmatpush1.msra.mxu0 %v642
        %1371 = vmatprep.subr.mxu0 0.0
        %1372 = vmatpush1.msra.mxu0 %v641
        %1373 = vmatprep.subr.mxu0 0.0
        %1374 = vmatpush2.msra.mxu0 %v672
        %1375 = vmatprep.subr.mxu0 0.0
        %1376 = vmatpush2.msra.mxu0 %v671
        %1377 = vmatprep.subr.mxu0 0.0
        %1378 = vmatpush2.msra.mxu0 %v670
        %1379 = vmatprep.subr.mxu0 0.0
        %1380 = vmatpush2.msra.mxu0 %v669
        %1381 = vmatprep.subr.mxu0 0.0
        %1382 = vmatpush2.msra.mxu0 %v668
        %1383 = vmatprep.subr.mxu0 0.0
        %1384 = vmatpush2.msra.mxu0 %v667
        %1385 = vmatprep.subr.mxu0 0.0
        %1386 = vmatpush2.msra.mxu0 %v666
        %1387 = vmatprep.subr.mxu0 0.0
        %1388 = vmatpush2.msra.mxu0 %v665
        %1389 = vmatprep.subr.mxu0 0.0
        %1390 = vmatpush2.msra.mxu0 %v664
        %1391 = vmatprep.subr.mxu0 0.0
        %1392 = vmatpush2.msra.mxu0 %v663
        %1393 = vmatprep.subr.mxu0 0.0
        %1394 = vmatpush2.msra.mxu0 %v662
        %1395 = vmatprep.subr.mxu0 0.0
        %1396 = vmatpush2.msra.mxu0 %v661
        %1397 = vmatprep.subr.mxu0 0.0
        %1398 = vmatpush2.msra.mxu0 %v660
        %1399 = vmatprep.subr.mxu0 0.0
        %1400 = vmatpush2.msra.mxu0 %v659
        %1401 = vmatprep.subr.mxu0 0.0
        %1402 = vmatpush2.msra.mxu0 %v658
        %1403 = vmatprep.subr.mxu0 0.0
        %1404 = vmatpush2.msra.mxu0 %v657
        %1405 = vmatprep.mubr.f32.mxu0 %v409
        %1406 = vmatmul.mubr.f32.gmra.mxu0 %v408
        %v1407 = vpop.f32.mrf.mxu0
        %v1408 = vadd.f32 %v1338, %v1407
        %v1409 = vpop.f32.mrf.mxu0
        %1410 = vdwg.mxu0
        %1411 = vmatprep.subr.mxu0 0.0
        %1412 = vmatpush1.msra.mxu0 %v688
        %1413 = vmatprep.subr.mxu0 0.0
        %1414 = vmatpush1.msra.mxu0 %v687
        %1415 = vmatprep.subr.mxu0 0.0
        %1416 = vmatpush1.msra.mxu0 %v686
        %1417 = vmatprep.subr.mxu0 0.0
        %1418 = vmatpush1.msra.mxu0 %v685
        %1419 = vmatprep.subr.mxu0 0.0
        %1420 = vmatpush1.msra.mxu0 %v684
        %1421 = vmatprep.subr.mxu0 0.0
        %1422 = vmatpush1.msra.mxu0 %v683
        %1423 = vmatprep.subr.mxu0 0.0
        %1424 = vmatpush1.msra.mxu0 %v682
        %1425 = vmatprep.subr.mxu0 0.0
        %1426 = vmatpush1.msra.mxu0 %v681
        %1427 = vmatprep.subr.mxu0 0.0
        %1428 = vmatpush1.msra.mxu0 %v680
        %1429 = vmatprep.subr.mxu0 0.0
        %1430 = vmatpush1.msra.mxu0 %v679
        %1431 = vmatprep.subr.mxu0 0.0
        %1432 = vmatpush1.msra.mxu0 %v678
        %1433 = vmatprep.subr.mxu0 0.0
        %1434 = vmatpush1.msra.mxu0 %v677
        %1435 = vmatprep.subr.mxu0 0.0
        %1436 = vmatpush1.msra.mxu0 %v676
        %1437 = vmatprep.subr.mxu0 0.0
        %1438 = vmatpush1.msra.mxu0 %v675
        %1439 = vmatprep.subr.mxu0 0.0
        %1440 = vmatpush1.msra.mxu0 %v674
        %1441 = vmatprep.subr.mxu0 0.0
        %1442 = vmatpush1.msra.mxu0 %v673
        %1443 = vmatprep.subr.mxu0 0.0
        %1444 = vmatpush2.msra.mxu0 %v704
        %1445 = vmatprep.subr.mxu0 0.0
        %1446 = vmatpush2.msra.mxu0 %v703
        %1447 = vmatprep.subr.mxu0 0.0
        %1448 = vmatpush2.msra.mxu0 %v702
        %1449 = vmatprep.subr.mxu0 0.0
        %1450 = vmatpush2.msra.mxu0 %v701
        %1451 = vmatprep.subr.mxu0 0.0
        %1452 = vmatpush2.msra.mxu0 %v700
        %1453 = vmatprep.subr.mxu0 0.0
        %1454 = vmatpush2.msra.mxu0 %v699
        %1455 = vmatprep.subr.mxu0 0.0
        %1456 = vmatpush2.msra.mxu0 %v698
        %1457 = vmatprep.subr.mxu0 0.0
        %1458 = vmatpush2.msra.mxu0 %v697
        %1459 = vmatprep.subr.mxu0 0.0
        %1460 = vmatpush2.msra.mxu0 %v696
        %1461 = vmatprep.subr.mxu0 0.0
        %1462 = vmatpush2.msra.mxu0 %v695
        %1463 = vmatprep.subr.mxu0 0.0
        %1464 = vmatpush2.msra.mxu0 %v694
        %1465 = vmatprep.subr.mxu0 0.0
        %1466 = vmatpush2.msra.mxu0 %v693
        %1467 = vmatprep.subr.mxu0 0.0
        %1468 = vmatpush2.msra.mxu0 %v692
        %1469 = vmatprep.subr.mxu0 0.0
        %1470 = vmatpush2.msra.mxu0 %v691
        %1471 = vmatprep.subr.mxu0 0.0
        %1472 = vmatpush2.msra.mxu0 %v690
        %1473 = vmatprep.subr.mxu0 0.0
        %1474 = vmatpush2.msra.mxu0 %v689
        %1475 = vmatprep.mubr.f32.mxu0 %v411
        %1476 = vmatmul.mubr.f32.gmra.mxu0 %v410
        %v1477 = vpop.f32.mrf.mxu0
        %v1478 = vadd.f32 %v1408, %v1477
        %v1479 = vpop.f32.mrf.mxu0
        %1480 = vdwg.mxu0
        %1481 = vmatprep.subr.mxu0 0.0
        %1482 = vmatpush1.msra.mxu0 %v720
        %1483 = vmatprep.subr.mxu0 0.0
        %1484 = vmatpush1.msra.mxu0 %v719
        %1485 = vmatprep.subr.mxu0 0.0
        %1486 = vmatpush1.msra.mxu0 %v718
        %1487 = vmatprep.subr.mxu0 0.0
        %1488 = vmatpush1.msra.mxu0 %v717
        %1489 = vmatprep.subr.mxu0 0.0
        %1490 = vmatpush1.msra.mxu0 %v716
        %1491 = vmatprep.subr.mxu0 0.0
        %1492 = vmatpush1.msra.mxu0 %v715
        %1493 = vmatprep.subr.mxu0 0.0
        %1494 = vmatpush1.msra.mxu0 %v714
        %1495 = vmatprep.subr.mxu0 0.0
        %1496 = vmatpush1.msra.mxu0 %v713
        %1497 = vmatprep.subr.mxu0 0.0
        %1498 = vmatpush1.msra.mxu0 %v712
        %1499 = vmatprep.subr.mxu0 0.0
        %1500 = vmatpush1.msra.mxu0 %v711
        %1501 = vmatprep.subr.mxu0 0.0
        %1502 = vmatpush1.msra.mxu0 %v710
        %1503 = vmatprep.subr.mxu0 0.0
        %1504 = vmatpush1.msra.mxu0 %v709
        %1505 = vmatprep.subr.mxu0 0.0
        %1506 = vmatpush1.msra.mxu0 %v708
        %1507 = vmatprep.subr.mxu0 0.0
        %1508 = vmatpush1.msra.mxu0 %v707
        %1509 = vmatprep.subr.mxu0 0.0
        %1510 = vmatpush1.msra.mxu0 %v706
        %1511 = vmatprep.subr.mxu0 0.0
        %1512 = vmatpush1.msra.mxu0 %v705
        %1513 = vmatprep.subr.mxu0 0.0
        %1514 = vmatpush2.msra.mxu0 %v736
        %1515 = vmatprep.subr.mxu0 0.0
        %1516 = vmatpush2.msra.mxu0 %v735
        %1517 = vmatprep.subr.mxu0 0.0
        %1518 = vmatpush2.msra.mxu0 %v734
        %1519 = vmatprep.subr.mxu0 0.0
        %1520 = vmatpush2.msra.mxu0 %v733
        %1521 = vmatprep.subr.mxu0 0.0
        %1522 = vmatpush2.msra.mxu0 %v732
        %1523 = vmatprep.subr.mxu0 0.0
        %1524 = vmatpush2.msra.mxu0 %v731
        %1525 = vmatprep.subr.mxu0 0.0
        %1526 = vmatpush2.msra.mxu0 %v730
        %1527 = vmatprep.subr.mxu0 0.0
        %1528 = vmatpush2.msra.mxu0 %v729
        %1529 = vmatprep.subr.mxu0 0.0
        %1530 = vmatpush2.msra.mxu0 %v728
        %1531 = vmatprep.subr.mxu0 0.0
        %1532 = vmatpush2.msra.mxu0 %v727
        %1533 = vmatprep.subr.mxu0 0.0
        %1534 = vmatpush2.msra.mxu0 %v726
        %1535 = vmatprep.subr.mxu0 0.0
        %1536 = vmatpush2.msra.mxu0 %v725
        %1537 = vmatprep.subr.mxu0 0.0
        %1538 = vmatpush2.msra.mxu0 %v724
        %1539 = vmatprep.subr.mxu0 0.0
        %1540 = vmatpush2.msra.mxu0 %v723
        %1541 = vmatprep.subr.mxu0 0.0
        %1542 = vmatpush2.msra.mxu0 %v722
        %1543 = vmatprep.subr.mxu0 0.0
        %1544 = vmatpush2.msra.mxu0 %v721
        %1545 = vmatprep.mubr.f32.mxu0 %v413
        %1546 = vmatmul.mubr.f32.gmra.mxu0 %v412
        %v1547 = vpop.f32.mrf.mxu0
        %v1548 = vadd.f32 %v1478, %v1547
        %v1549 = vpop.f32.mrf.mxu0
        %1550 = vdwg.mxu0
        %1551 = vmatprep.subr.mxu0 0.0
        %1552 = vmatpush1.msra.mxu0 %v752
        %1553 = vmatprep.subr.mxu0 0.0
        %1554 = vmatpush1.msra.mxu0 %v751
        %1555 = vmatprep.subr.mxu0 0.0
        %1556 = vmatpush1.msra.mxu0 %v750
        %1557 = vmatprep.subr.mxu0 0.0
        %1558 = vmatpush1.msra.mxu0 %v749
        %1559 = vmatprep.subr.mxu0 0.0
        %1560 = vmatpush1.msra.mxu0 %v748
        %1561 = vmatprep.subr.mxu0 0.0
        %1562 = vmatpush1.msra.mxu0 %v747
        %1563 = vmatprep.subr.mxu0 0.0
        %1564 = vmatpush1.msra.mxu0 %v746
        %1565 = vmatprep.subr.mxu0 0.0
        %1566 = vmatpush1.msra.mxu0 %v745
        %1567 = vmatprep.subr.mxu0 0.0
        %1568 = vmatpush1.msra.mxu0 %v744
        %1569 = vmatprep.subr.mxu0 0.0
        %1570 = vmatpush1.msra.mxu0 %v743
        %1571 = vmatprep.subr.mxu0 0.0
        %1572 = vmatpush1.msra.mxu0 %v742
        %1573 = vmatprep.subr.mxu0 0.0
        %1574 = vmatpush1.msra.mxu0 %v741
        %1575 = vmatprep.subr.mxu0 0.0
        %1576 = vmatpush1.msra.mxu0 %v740
        %1577 = vmatprep.subr.mxu0 0.0
        %1578 = vmatpush1.msra.mxu0 %v739
        %1579 = vmatprep.subr.mxu0 0.0
        %1580 = vmatpush1.msra.mxu0 %v738
        %1581 = vmatprep.subr.mxu0 0.0
        %1582 = vmatpush1.msra.mxu0 %v737
        %1583 = vmatprep.subr.mxu0 0.0
        %1584 = vmatpush2.msra.mxu0 0.0
        %1585 = vmatprep.subr.mxu0 0.0
        %1586 = vmatpush2.msra.mxu0 %v767
        %1587 = vmatprep.subr.mxu0 0.0
        %1588 = vmatpush2.msra.mxu0 %v766
        %1589 = vmatprep.subr.mxu0 0.0
        %1590 = vmatpush2.msra.mxu0 %v765
        %1591 = vmatprep.subr.mxu0 0.0
        %1592 = vmatpush2.msra.mxu0 %v764
        %1593 = vmatprep.subr.mxu0 0.0
        %1594 = vmatpush2.msra.mxu0 %v763
        %1595 = vmatprep.subr.mxu0 0.0
        %1596 = vmatpush2.msra.mxu0 %v762
        %1597 = vmatprep.subr.mxu0 0.0
        %1598 = vmatpush2.msra.mxu0 %v761
        %1599 = vmatprep.subr.mxu0 0.0
        %1600 = vmatpush2.msra.mxu0 %v760
        %1601 = vmatprep.subr.mxu0 0.0
        %1602 = vmatpush2.msra.mxu0 %v759
        %1603 = vmatprep.subr.mxu0 0.0
        %1604 = vmatpush2.msra.mxu0 %v758
        %1605 = vmatprep.subr.mxu0 0.0
        %1606 = vmatpush2.msra.mxu0 %v757
        %1607 = vmatprep.subr.mxu0 0.0
        %1608 = vmatpush2.msra.mxu0 %v756
        %1609 = vmatprep.subr.mxu0 0.0
        %1610 = vmatpush2.msra.mxu0 %v755
        %1611 = vmatprep.subr.mxu0 0.0
        %1612 = vmatpush2.msra.mxu0 %v754
        %1613 = vmatprep.subr.mxu0 0.0
        %1614 = vmatpush2.msra.mxu0 %v753
        %1615 = vmatprep.mubr.f32.mxu0 %v849
        %1616 = vmatmul.mubr.f32.gmra.mxu0 %v414
        %v1617 = vpop.f32.mrf.mxu0
        %v1618 = vadd.f32 %v1548, %v1617
        %v1619 = vpop.f32.mrf.mxu0
        %1620 = vdwg.mxu0
        %v1621 = vlaneseq
        %v1622 = vshrl.u32 %v1621, 7
        %v1623 = vsub.s32 0, %v1622
        %v1624 = vrot.slane %v393, %v1623
        %v1625 = vmul.f32 %v1618, %v1624
        %v1626 = vlaneseq
        %v1627 = vshrl.u32 %v1626, 7
        %v1628 = vsub.s32 1, %v1627
        %v1629 = vrot.slane %v393, %v1628
        %v1630 = vadd.f32 %v1625, %v1629
        %vm1631 = vcmp.gt.f32.partialorder %v1630, 0.0
        %v1632 = vmul.f32 %v1630, 0.01
        %v1633 = vsel %vm1631, %v1630, %v1632
        %v1634 = vld [vmem:[%s4] sm:$0xff]
        %v1635 = vld [vmem:[%s4 + $0x8] sm:$0xff]
        %v1636 = vld [vmem:[%s4 + $0x10] sm:$0xff]
        %v1637 = vld [vmem:[%s4 + $0x18] sm:$0xff]
        %v1638 = vld [vmem:[%s4 + $0x20] sm:$0xff]
        %v1639 = vld [vmem:[%s4 + $0x28] sm:$0xff]
        %v1640 = vld [vmem:[%s4 + $0x30] sm:$0xff]
        %v1641 = vld [vmem:[%s4 + $0x38] sm:$0xff]
        %v1642 = vld [vmem:[%s4 + $0x40] sm:$0xff]
        %v1643 = vld [vmem:[%s4 + $0x48] sm:$0xff]
        %v1644 = vld [vmem:[%s4 + $0x50] sm:$0xff]
        %v1645 = vld [vmem:[%s4 + $0x58] sm:$0xff]
        %v1646 = vld [vmem:[%s4 + $0x60] sm:$0xff]
        %v1647 = vld [vmem:[%s4 + $0x68] sm:$0xff]
        %v1648 = vld [vmem:[%s4 + $0x70] sm:$0xff]
        %v1649 = vld [vmem:[%s4 + $0x78] sm:$0xff]
        %1650 = vmatprep.subr.mxu0 0.0
        %1651 = vmatpush1.msra.mxu0 %v1649
        %1652 = vmatprep.subr.mxu0 0.0
        %1653 = vmatpush1.msra.mxu0 %v1648
        %1654 = vmatprep.subr.mxu0 0.0
        %1655 = vmatpush1.msra.mxu0 %v1647
        %1656 = vmatprep.subr.mxu0 0.0
        %1657 = vmatpush1.msra.mxu0 %v1646
        %1658 = vmatprep.subr.mxu0 0.0
        %1659 = vmatpush1.msra.mxu0 %v1645
        %1660 = vmatprep.subr.mxu0 0.0
        %1661 = vmatpush1.msra.mxu0 %v1644
        %1662 = vmatprep.subr.mxu0 0.0
        %1663 = vmatpush1.msra.mxu0 %v1643
        %1664 = vmatprep.subr.mxu0 0.0
        %1665 = vmatpush1.msra.mxu0 %v1642
        %1666 = vmatprep.subr.mxu0 0.0
        %1667 = vmatpush1.msra.mxu0 %v1641
        %1668 = vmatprep.subr.mxu0 0.0
        %1669 = vmatpush1.msra.mxu0 %v1640
        %1670 = vmatprep.subr.mxu0 0.0
        %1671 = vmatpush1.msra.mxu0 %v1639
        %1672 = vmatprep.subr.mxu0 0.0
        %1673 = vmatpush1.msra.mxu0 %v1638
        %1674 = vmatprep.subr.mxu0 0.0
        %1675 = vmatpush1.msra.mxu0 %v1637
        %1676 = vmatprep.subr.mxu0 0.0
        %1677 = vmatpush1.msra.mxu0 %v1636
        %1678 = vmatprep.subr.mxu0 0.0
        %1679 = vmatpush1.msra.mxu0 %v1635
        %1680 = vmatprep.subr.mxu0 0.0
        %1681 = vmatpush1.msra.mxu0 %v1634
        %1682 = vmatprep.subr.mxu0 0.0
        %1683 = vmatpush2.msra.mxu0 0.0
        %1684 = vmatprep.subr.mxu0 0.0
        %1685 = vmatpush2.msra.mxu0 0.0
        %1686 = vmatprep.subr.mxu0 0.0
        %1687 = vmatpush2.msra.mxu0 0.0
        %1688 = vmatprep.subr.mxu0 0.0
        %1689 = vmatpush2.msra.mxu0 0.0
        %1690 = vmatprep.subr.mxu0 0.0
        %1691 = vmatpush2.msra.mxu0 0.0
        %1692 = vmatprep.subr.mxu0 0.0
        %1693 = vmatpush2.msra.mxu0 0.0
        %1694 = vmatprep.subr.mxu0 0.0
        %1695 = vmatpush2.msra.mxu0 0.0
        %1696 = vmatprep.subr.mxu0 0.0
        %1697 = vmatpush2.msra.mxu0 0.0
        %1698 = vmatprep.subr.mxu0 0.0
        %1699 = vmatpush2.msra.mxu0 0.0
        %1700 = vmatprep.subr.mxu0 0.0
        %1701 = vmatpush2.msra.mxu0 0.0
        %1702 = vmatprep.subr.mxu0 0.0
        %1703 = vmatpush2.msra.mxu0 0.0
        %1704 = vmatprep.subr.mxu0 0.0
        %1705 = vmatpush2.msra.mxu0 0.0
        %1706 = vmatprep.subr.mxu0 0.0
        %1707 = vmatpush2.msra.mxu0 0.0
        %1708 = vmatprep.subr.mxu0 0.0
        %1709 = vmatpush2.msra.mxu0 0.0
        %1710 = vmatprep.subr.mxu0 0.0
        %1711 = vmatpush2.msra.mxu0 0.0
        %1712 = vmatprep.subr.mxu0 0.0
        %1713 = vmatpush2.msra.mxu0 0.0
        %1714 = vmatprep.mubr.f32.mxu0 0.0
        %1715 = vmatmul.mubr.f32.gmra.mxu0 %v1633
        %v1716 = vpop.f32.mrf.mxu0
        %v1717 = vadd.f32 0.0, %v1716
        %v1718 = vpop.f32.mrf.mxu0
        %1719 = vdwg.mxu0
        %v1720 = vlaneseq
        %v1721 = vshrl.u32 %v1720, 7
        %v1722 = vsub.s32 2, %v1721
        %v1723 = vrot.slane %v393, %v1722
        %v1724 = vmul.f32 %v1717, %v1723
        %v1725 = vlaneseq
        %v1726 = vshrl.u32 %v1725, 7
        %v1727 = vsub.s32 3, %v1726
        %v1728 = vrot.slane %v393, %v1727
        %v1729 = vadd.f32 %v1724, %v1728
        %vm1730 = vcmp.gt.f32.partialorder %v1729, 0.0
        %v1731 = vmul.f32 %v1729, 0.01
        %v1732 = vsel %vm1730, %v1729, %v1731
        %v1733 = vld [vmem:[%s5] sm:$0xff]
        %v1734 = vld [vmem:[%s5 + $0x8] sm:$0xff]
        %v1735 = vld [vmem:[%s5 + $0x10] sm:$0xff]
        %v1736 = vld [vmem:[%s5 + $0x18] sm:$0xff]
        %v1737 = vld [vmem:[%s5 + $0x20] sm:$0xff]
        %v1738 = vld [vmem:[%s5 + $0x28] sm:$0xff]
        %v1739 = vld [vmem:[%s5 + $0x30] sm:$0xff]
        %v1740 = vld [vmem:[%s5 + $0x38] sm:$0xff]
        %vm1741 = vcmask 523264
        %v1743 = vsel %vm1741, %v1732, 0
        %1745 = vmatprep.subr.mxu0 0.0
        %1746 = vmatpush1.msra.mxu0 0.0
        %1747 = vmatprep.subr.mxu0 0.0
        %1748 = vmatpush1.msra.mxu0 0.0
        %1749 = vmatprep.subr.mxu0 0.0
        %1750 = vmatpush1.msra.mxu0 0.0
        %1751 = vmatprep.subr.mxu0 0.0
        %1752 = vmatpush1.msra.mxu0 0.0
        %1753 = vmatprep.subr.mxu0 0.0
        %1754 = vmatpush1.msra.mxu0 0.0
        %1755 = vmatprep.subr.mxu0 0.0
        %1756 = vmatpush1.msra.mxu0 0.0
        %1757 = vmatprep.subr.mxu0 0.0
        %1758 = vmatpush1.msra.mxu0 0.0
        %1759 = vmatprep.subr.mxu0 0.0
        %1760 = vmatpush1.msra.mxu0 0.0
        %1761 = vmatprep.subr.mxu0 0.0
        %1762 = vmatpush1.msra.mxu0 %v1740
        %1763 = vmatprep.subr.mxu0 0.0
        %1764 = vmatpush1.msra.mxu0 %v1739
        %1765 = vmatprep.subr.mxu0 0.0
        %1766 = vmatpush1.msra.mxu0 %v1738
        %1767 = vmatprep.subr.mxu0 0.0
        %1768 = vmatpush1.msra.mxu0 %v1737
        %1769 = vmatprep.subr.mxu0 0.0
        %1770 = vmatpush1.msra.mxu0 %v1736
        %1771 = vmatprep.subr.mxu0 0.0
        %1772 = vmatpush1.msra.mxu0 %v1735
        %1773 = vmatprep.subr.mxu0 0.0
        %1774 = vmatpush1.msra.mxu0 %v1734
        %1775 = vmatprep.subr.mxu0 0.0
        %1776 = vmatpush1.msra.mxu0 %v1733
        %1777 = vmatprep.subr.mxu0 0.0
        %1778 = vmatpush2.msra.mxu0 0.0
        %1779 = vmatprep.subr.mxu0 0.0
        %1780 = vmatpush2.msra.mxu0 0.0
        %1781 = vmatprep.subr.mxu0 0.0
        %1782 = vmatpush2.msra.mxu0 0.0
        %1783 = vmatprep.subr.mxu0 0.0
        %1784 = vmatpush2.msra.mxu0 0.0
        %1785 = vmatprep.subr.mxu0 0.0
        %1786 = vmatpush2.msra.mxu0 0.0
        %1787 = vmatprep.subr.mxu0 0.0
        %1788 = vmatpush2.msra.mxu0 0.0
        %1789 = vmatprep.subr.mxu0 0.0
        %1790 = vmatpush2.msra.mxu0 0.0
        %1791 = vmatprep.subr.mxu0 0.0
        %1792 = vmatpush2.msra.mxu0 0.0
        %1793 = vmatprep.subr.mxu0 0.0
        %1794 = vmatpush2.msra.mxu0 0.0
        %1795 = vmatprep.subr.mxu0 0.0
        %1796 = vmatpush2.msra.mxu0 0.0
        %1797 = vmatprep.subr.mxu0 0.0
        %1798 = vmatpush2.msra.mxu0 0.0
        %1799 = vmatprep.subr.mxu0 0.0
        %1800 = vmatpush2.msra.mxu0 0.0
        %1801 = vmatprep.subr.mxu0 0.0
        %1802 = vmatpush2.msra.mxu0 0.0
        %1803 = vmatprep.subr.mxu0 0.0
        %1804 = vmatpush2.msra.mxu0 0.0
        %1805 = vmatprep.subr.mxu0 0.0
        %1806 = vmatpush2.msra.mxu0 0.0
        %1807 = vmatprep.subr.mxu0 0.0
        %1808 = vmatpush2.msra.mxu0 0.0
        %1809 = vmatprep.mubr.f32.mxu0 0.0
        %1810 = vmatmul.mubr.f32.gmra.mxu0 %v1743
        %v1811 = vpop.f32.mrf.mxu0
        %v1812 = vadd.f32 0.0, %v1811
        %v1813 = vpop.f32.mrf.mxu0
        %1814 = vdwg.mxu0
        %v1815 = vlaneseq
        %v1816 = vshrl.u32 %v1815, 7
        %v1817 = vsub.s32 4, %v1816
        %v1818 = vrot.slane %v393, %v1817
        %v1819 = vmul.f32 %v1812, %v1818
        %v1820 = vlaneseq
        %v1821 = vshrl.u32 %v1820, 7
        %v1822 = vsub.s32 5, %v1821
        %v1823 = vrot.slane %v393, %v1822
        %v1824 = vadd.f32 %v1819, %v1823
        %vm1825 = vcmp.gt.f32.partialorder %v1824, 0.0
        %v1826 = vmul.f32 %v1824, 0.01
        %v1827 = vsel %vm1825, %v1824, %v1826
        %v1828 = vld [vmem:[#allocation7] sm:$0xff]
        %v1829 = vld [vmem:[#allocation7 + $0x8] sm:$0xff]
        %v1830 = vld [vmem:[#allocation7 + $0x10] sm:$0xff]
        %v1831 = vld [vmem:[#allocation7 + $0x18] sm:$0xff]
        %v1832 = vlaneseq
        %v1833 = vshrl.u32 %v1832, 7
        %v1834 = vsub.s32 6, %v1833
        %v1835 = vrot.slane %v393, %v1834
        %vm1836 = vcmask 261120
        %v1838 = vsel %vm1836, %v1827, 0
        %1840 = vmatprep.subr.mxu0 0.0
        %1841 = vmatpush1.msra.mxu0 0.0
        %1842 = vmatprep.subr.mxu0 0.0
        %1843 = vmatpush1.msra.mxu0 0.0
        %1844 = vmatprep.subr.mxu0 0.0
        %1845 = vmatpush1.msra.mxu0 0.0
        %1846 = vmatprep.subr.mxu0 0.0
        %1847 = vmatpush1.msra.mxu0 0.0
        %1848 = vmatprep.subr.mxu0 0.0
        %1849 = vmatpush1.msra.mxu0 0.0
        %1850 = vmatprep.subr.mxu0 0.0
        %1851 = vmatpush1.msra.mxu0 0.0
        %1852 = vmatprep.subr.mxu0 0.0
        %1853 = vmatpush1.msra.mxu0 0.0
        %1854 = vmatprep.subr.mxu0 0.0
        %1855 = vmatpush1.msra.mxu0 0.0
        %1856 = vmatprep.subr.mxu0 0.0
        %1857 = vmatpush1.msra.mxu0 0.0
        %1858 = vmatprep.subr.mxu0 0.0
        %1859 = vmatpush1.msra.mxu0 0.0
        %1860 = vmatprep.subr.mxu0 0.0
        %1861 = vmatpush1.msra.mxu0 0.0
        %1862 = vmatprep.subr.mxu0 0.0
        %1863 = vmatpush1.msra.mxu0 0.0
        %1864 = vmatprep.subr.mxu0 0.0
        %1865 = vmatpush1.msra.mxu0 %v1831
        %1866 = vmatprep.subr.mxu0 0.0
        %1867 = vmatpush1.msra.mxu0 %v1830
        %1868 = vmatprep.subr.mxu0 0.0
        %1869 = vmatpush1.msra.mxu0 %v1829
        %1870 = vmatprep.subr.mxu0 0.0
        %1871 = vmatpush1.msra.mxu0 %v1828
        %1872 = vmatprep.subr.mxu0 0.0
        %1873 = vmatpush2.msra.mxu0 0.0
        %1874 = vmatprep.subr.mxu0 0.0
        %1875 = vmatpush2.msra.mxu0 0.0
        %1876 = vmatprep.subr.mxu0 0.0
        %1877 = vmatpush2.msra.mxu0 0.0
        %1878 = vmatprep.subr.mxu0 0.0
        %1879 = vmatpush2.msra.mxu0 0.0
        %1880 = vmatprep.subr.mxu0 0.0
        %1881 = vmatpush2.msra.mxu0 0.0
        %1882 = vmatprep.subr.mxu0 0.0
        %1883 = vmatpush2.msra.mxu0 0.0
        %1884 = vmatprep.subr.mxu0 0.0
        %1885 = vmatpush2.msra.mxu0 0.0
        %1886 = vmatprep.subr.mxu0 0.0
        %1887 = vmatpush2.msra.mxu0 0.0
        %1888 = vmatprep.subr.mxu0 0.0
        %1889 = vmatpush2.msra.mxu0 0.0
        %1890 = vmatprep.subr.mxu0 0.0
        %1891 = vmatpush2.msra.mxu0 0.0
        %1892 = vmatprep.subr.mxu0 0.0
        %1893 = vmatpush2.msra.mxu0 0.0
        %1894 = vmatprep.subr.mxu0 0.0
        %1895 = vmatpush2.msra.mxu0 0.0
        %1896 = vmatprep.subr.mxu0 0.0
        %1897 = vmatpush2.msra.mxu0 0.0
        %1898 = vmatprep.subr.mxu0 0.0
        %1899 = vmatpush2.msra.mxu0 0.0
        %1900 = vmatprep.subr.mxu0 0.0
        %1901 = vmatpush2.msra.mxu0 0.0
        %1902 = vmatprep.subr.mxu0 0.0
        %1903 = vmatpush2.msra.mxu0 0.0
        %1904 = vmatprep.mubr.f32.mxu0 0.0
        %1905 = vmatmul.mubr.f32.gmra.mxu0 %v1838
        %v1906 = vpop.f32.mrf.mxu0
        %v1907 = vadd.f32 %v1835, %v1906
        %v1908 = vpop.f32.mrf.mxu0
        %1909 = vdwg.mxu0
        %1910 = vst [vmem:[%s392] sm:$0xff] %v1907
        %p1911 = scmp.lt.s32.totalorder %s24, 1
        %s1912 = scalar_select %p1911, %s24, 1
        %s1913 = smul.addr %s1912, 8
        %s1914 = scalar_lea.vmem %s8, %s1913
        // Predicated region
        $region73: #{action_classifier_forward.1} parent=51 // pred_check
          %p1915 = pneg %p220
        $region74: #{action_classifier_forward.1} parent=51 // pred_check_branch
          %1917 = sbr.rel (%p1915) target = $region76
        $region75: #{action_classifier_forward.1} parent=51 // pred_region
          _
        $region76: #{action_classifier_forward.1} parent=51 // pred_fallthru
          _
      $region52: #{action_classifier_forward.1} parent=5 // pred_fallthru
        _
      %p1918 = scmp.le.s32.totalorder 2, %s19
      // Predicated region
      $region77: #{action_classifier_forward.1} parent=5 // pred_check
        %p1919 = pneg %p1918
      $region78: #{action_classifier_forward.1} parent=5 // pred_check_branch
        %1921 = sbr.rel (%p1919) target = $region80
      $region79: #{action_classifier_forward.1} parent=5 // pred_region
        %s1922 = ssub.s32 %s19, 2
        // Predicated region
        $region81: #{action_classifier_forward.1} parent=79 // pred_check
          %p1923 = pneg %p226
        $region82: #{action_classifier_forward.1} parent=79 // pred_check_branch
          %1925 = sbr.rel (%p1923) target = $region84
        $region83: #{action_classifier_forward.1} parent=79 // pred_region
          %p1926 = scmp.lt.s32.totalorder %s25, 1
          %s1927 = scalar_select %p1926, %s25, 1
          %s1928 = smul.addr %s1927, 8
          %s1929 = scalar_lea.vmem %s8, %s1928
        $region84: #{action_classifier_forward.1} parent=79 // pred_fallthru
          _
      $region80: #{action_classifier_forward.1} parent=5 // pred_fallthru
        _
    $region6: #{action_classifier_forward.1} parent=1 // loop_footer
      %s23 = sadd.s32 1, %s19
    $region7: #{action_classifier_forward.1} parent=1 // loop_footer_branch
      %18 = sbr.rel target = $region3
    $region8: #{action_classifier_forward.1} parent=1 // loop_exit
      _
    %1930 = vsyncpa [#allocation3], 1
    %s1931 = scalar_lea.sflag [#allocation3], 1
    %1932 = vsyncpa %s1931, 1
    %1933 = vsyncpa [#allocation5], 1
    %1934 = vsyncpa [#allocation8], 1

</llo_original>
